<compile_context>
chip_gen: v7x
topology: tpu7x:2x2x1
jax: 0.10.0
libtpu: 0.0.40
codegen_flags: <defaults>
</compile_context>

<pallas_src>
import functools

import jax
import jax.numpy as jnp
from jax.experimental import pallas as pl
from jax.experimental.pallas import tpu as pltpu


def _iwae_forward_kernel(
    x_ref, eps_ref,
    w1_ref, b1_ref, w2_ref, b2_ref,
    wml_ref, bml_ref,
    w3a_ref, b3a_ref, w3b_ref, b3b_ref,
    wd_ref, bd_ref,
    out_ref,
    *, sigmoid_dtype,
):
    f32 = jnp.float32
    bf16 = jnp.bfloat16
    latent = eps_ref.shape[1]

    x = x_ref[...]          # bf16 [tb, 784] (already bf16 from the wrapper)
    eps = eps_ref[...]      # f32  [tb, latent]

    # fc1: Linear(784 -> h1) + ReLU, Linear(h1 -> h2) + ReLU   (bf16 MXU, f32 acc)
    h = jnp.dot(x, w1_ref[...], preferred_element_type=f32) + b1_ref[...]
    h = jnp.maximum(h, 0.0)
    h = jnp.dot(h.astype(bf16), w2_ref[...], preferred_element_type=f32) + b2_ref[...]
    h = jnp.maximum(h, 0.0)

    # fused fc21|fc22: one matmul producing [mu | log_var]
    ml = jnp.dot(h.astype(bf16), wml_ref[...], preferred_element_type=f32) + bml_ref[...]
    mu = ml[:, :latent]
    log_var = ml[:, latent:]

    # reparameterization: z = mu + exp(0.5 * log_var) * eps    (f32, EUP exp)
    z = mu + jnp.exp(log_var * 0.5) * eps

    # fc3: Linear(latent -> h2) + ReLU, Linear(h2 -> h1) + ReLU
    d = jnp.dot(z.astype(bf16), w3a_ref[...], preferred_element_type=f32) + b3a_ref[...]
    d = jnp.maximum(d, 0.0)
    d = jnp.dot(d.astype(bf16), w3b_ref[...], preferred_element_type=f32) + b3b_ref[...]
    d = jnp.maximum(d, 0.0)

    # decode: Linear(h1 -> 784), then sigmoid (bf16 epilogue on v6e/v7x)
    logits = jnp.dot(d.astype(bf16), wd_ref[...], preferred_element_type=f32) + bd_ref[...]
    out_ref[...] = jax.nn.sigmoid(logits.astype(sigmoid_dtype)).astype(out_ref.dtype)


def _pick_batch_tile(B):
    # >= 2 grid steps so x/out DMAs pipeline against compute and v7x's two
    # TensorCores both get work; 256 at large B fills the 256-tall MXU and
    # amortizes per-step overhead on v6e/v7x.
    return 256 if B >= 1024 else 128


def iwae_forward(x, eps, params, *, batch_tile=None, out_dtype=jnp.bfloat16):
    """x: [B, 784] (any float), eps: [B, latent] f32, params: dict (bf16 W, f32 b)."""
    B, F_in = x.shape
    latent = eps.shape[1]
    F_out = params["bd"].shape[1]
    assert F_in == 784 and F_out == 784

    # bf16 input: halves the largest input DMA; it is consumed by bf16 matmuls.
    x = x.astype(jnp.bfloat16)
    eps = eps.astype(jnp.float32)

    tb = _pick_batch_tile(B) if batch_tile is None else batch_tile
    assert tb % 8 == 0, "batch_tile must be a multiple of 8 (sublane count)"

    # Pad the batch up to a multiple of the tile so any B works.
    B_pad = ((B + tb - 1) // tb) * tb
    if B_pad != B:
        x = jnp.pad(x, ((0, B_pad - B), (0, 0)))
        eps = jnp.pad(eps, ((0, B_pad - B), (0, 0)))
    grid = (B_pad // tb,)

    # bf16 sigmoid epilogue only where the EUP/VPU handle bf16 natively
    # (v6e / v7x); on v5e keep the transcendental in f32.
    device_kind = jax.devices()[0].device_kind.lower()
    use_bf16_epilogue = (
        jnp.dtype(out_dtype) == jnp.dtype(jnp.bfloat16) and "v5" not in device_kind
    )
    sigmoid_dtype = jnp.bfloat16 if use_bf16_epilogue else jnp.float32

    def batch_spec(feat):
        return pl.BlockSpec((tb, feat), lambda i: (i, 0))

    def full_spec(shape):
        # Constant block index -> fetched once, resident across all grid steps.
        return pl.BlockSpec(shape, lambda i: (0, 0))

    in_specs = [
        batch_spec(F_in),                          # x (bf16)
        batch_spec(latent),                        # eps
        full_spec(params["w1"].shape), full_spec(params["b1"].shape),
        full_spec(params["w2"].shape), full_spec(params["b2"].shape),
        full_spec(params["wml"].shape), full_spec(params["bml"].shape),
        full_spec(params["w3a"].shape), full_spec(params["b3a"].shape),
        full_spec(params["w3b"].shape), full_spec(params["b3b"].shape),
        full_spec(params["wd"].shape), full_spec(params["bd"].shape),
    ]

    kernel = functools.partial(_iwae_forward_kernel, sigmoid_dtype=sigmoid_dtype)

    out = pl.pallas_call(
        kernel,
        out_shape=jax.ShapeDtypeStruct((B_pad, F_out), out_dtype),
        grid_spec=pltpu.PrefetchScalarGridSpec(
            num_scalar_prefetch=0,
            grid=grid,
            in_specs=in_specs,
            out_specs=batch_spec(F_out),
        ),
        compiler_params=pltpu.CompilerParams(
            dimension_semantics=("parallel",),
            vmem_limit_bytes=32 * 1024 * 1024,
        ),
    )(
        x, eps,
        params["w1"], params["b1"], params["w2"], params["b2"],
        params["wml"], params["bml"],
        params["w3a"], params["b3a"], params["w3b"], params["b3b"],
        params["wd"], params["bd"],
    )
    return out[:B] if B_pad != B else out


def init_params(key, num_hidden1, num_hidden2, latent_space):
    """Kaiming-normal weights ([in, out] layout, bf16), uniform biases (f32).

    fc21 and fc22 are packed into one fused weight/bias: wml = [w21 | w22].
    """
    dims = {
        "1":  (784, num_hidden1),
        "2":  (num_hidden1, num_hidden2),
        "21": (num_hidden2, latent_space),
        "22": (num_hidden2, latent_space),
        "3a": (latent_space, num_hidden2),
        "3b": (num_hidden2, num_hidden1),
        "d":  (num_hidden1, 784),
    }
    raw = {}
    for name, (fan_in, fan_out) in dims.items():
        key, kw, kb = jax.random.split(key, 3)
        std = jnp.sqrt(2.0 / fan_in)  # kaiming_normal_, mode='fan_in', relu gain
        raw[f"w{name}"] = (std * jax.random.normal(kw, (fan_in, fan_out))).astype(jnp.float32)
        bound = 1.0 / jnp.sqrt(fan_in)
        raw[f"b{name}"] = jax.random.uniform(
            kb, (1, fan_out), minval=-bound, maxval=bound
        ).astype(jnp.float32)

    params = {}
    for name in ("1", "2", "3a", "3b", "d"):
        params[f"w{name}"] = raw[f"w{name}"].astype(jnp.bfloat16)
        params[f"b{name}"] = raw[f"b{name}"]
    # Fused mu/log_var layer.
    params["wml"] = jnp.concatenate([raw["w21"], raw["w22"]], axis=1).astype(jnp.bfloat16)
    params["bml"] = jnp.concatenate([raw["b21"], raw["b22"]], axis=1)
    return params


def _reference_forward(x, eps, p):
    """Pure-JAX reference: same bf16-input / f32-accumulate matmuls, f32 epilogue."""
    bf16 = jnp.bfloat16

    def mm(a, w):
        return jnp.dot(a.astype(bf16), w, preferred_element_type=jnp.float32)

    relu = lambda v: jnp.maximum(v, 0.0)
    L = eps.shape[1]
    h = relu(mm(x, p["w1"]) + p["b1"])
    h = relu(mm(h, p["w2"]) + p["b2"])
    ml = mm(h, p["wml"]) + p["bml"]
    mu, log_var = ml[:, :L], ml[:, L:]
    z = mu + jnp.exp(0.5 * log_var) * eps
    d = relu(mm(z, p["w3a"]) + p["b3a"])
    d = relu(mm(d, p["w3b"]) + p["b3b"])
    return jax.nn.sigmoid(mm(d, p["wd"]) + p["bd"])


if __name__ == "__main__":
    num_hidden1, num_hidden2, latent_space = 128, 64, 32
    B = 256            # tb auto-selects 128 -> 2 grid steps (feeds both v7x TCs)

    key = jax.random.PRNGKey(0)
    key, kx, ke, kp = jax.random.split(key, 4)

    # MNIST-like input: flattened 28x28 pixels in [0, 1].
    x = jax.random.uniform(kx, (B, 784), dtype=jnp.float32)
    # eps replaces torch.randn_like(log_var); passed in for determinism.
    # TODO(synk): the PyTorch module draws eps internally with torch.randn_like.
    eps = jax.random.normal(ke, (B, latent_space), dtype=jnp.float32)

    params = init_params(kp, num_hidden1, num_hidden2, latent_space)

    recon = iwae_forward(x, eps, params)          # bf16 output by default
    recon = jax.block_until_ready(recon)

    ref = _reference_forward(x, eps, params)
    assert recon.shape == (B, 784)
    recon_f32 = recon.astype(jnp.float32)
    assert bool(jnp.all(jnp.isfinite(recon_f32)))
    # bf16 matmul inputs + bf16 sigmoid epilogue + bf16 output vs f32-epilogue
    # reference -> ~4e-3 worst-case abs error on sigmoid outputs; 2e-2 is ample
    # while any structural bug would be orders of magnitude larger.
    assert jnp.allclose(recon_f32, ref, atol=2e-2, rtol=0), "mismatch vs reference"

    print("KERNEL_OK")
</pallas_src>

<mosaic_0001>
module attributes {stable_mosaic.version = 11 : i64} {
  func.func @_iwae_forward_kernel(%arg0: i32, %arg1: memref<128x784xbf16, #tpu.memory_space<vmem>>, %arg2: memref<128x32xf32, #tpu.memory_space<vmem>>, %arg3: memref<784x128xbf16, #tpu.memory_space<vmem>>, %arg4: memref<1x128xf32, #tpu.memory_space<vmem>>, %arg5: memref<128x64xbf16, #tpu.memory_space<vmem>>, %arg6: memref<1x64xf32, #tpu.memory_space<vmem>>, %arg7: memref<64x64xbf16, #tpu.memory_space<vmem>>, %arg8: memref<1x64xf32, #tpu.memory_space<vmem>>, %arg9: memref<32x64xbf16, #tpu.memory_space<vmem>>, %arg10: memref<1x64xf32, #tpu.memory_space<vmem>>, %arg11: memref<64x128xbf16, #tpu.memory_space<vmem>>, %arg12: memref<1x128xf32, #tpu.memory_space<vmem>>, %arg13: memref<128x784xbf16, #tpu.memory_space<vmem>>, %arg14: memref<1x784xf32, #tpu.memory_space<vmem>>, %arg15: memref<128x784xbf16, #tpu.memory_space<vmem>>) attributes {dimension_semantics = [#tpu.dimension_semantics<parallel>], iteration_bounds = array<i64: 2>, scalar_prefetch = 0 : i64, scratch_operands = 0 : i64, tpu.core_type = #tpu.core_type<tc>, window_params = [{transform_indices = @transform_0, window_bounds = array<i64: 128, 784>}, {transform_indices = @transform_1, window_bounds = array<i64: 128, 32>}, {pipeline_mode = #tpu.pipeline_mode<synchronous>, transform_indices = @transform_2, window_bounds = array<i64: 784, 128>}, {pipeline_mode = #tpu.pipeline_mode<synchronous>, transform_indices = @transform_3, window_bounds = array<i64: 1, 128>}, {pipeline_mode = #tpu.pipeline_mode<synchronous>, transform_indices = @transform_4, window_bounds = array<i64: 128, 64>}, {pipeline_mode = #tpu.pipeline_mode<synchronous>, transform_indices = @transform_5, window_bounds = array<i64: 1, 64>}, {pipeline_mode = #tpu.pipeline_mode<synchronous>, transform_indices = @transform_6, window_bounds = array<i64: 64, 64>}, {pipeline_mode = #tpu.pipeline_mode<synchronous>, transform_indices = @transform_7, window_bounds = array<i64: 1, 64>}, {pipeline_mode = #tpu.pipeline_mode<synchronous>, transform_indices = @transform_8, window_bounds = array<i64: 32, 64>}, {pipeline_mode = #tpu.pipeline_mode<synchronous>, transform_indices = @transform_9, window_bounds = array<i64: 1, 64>}, {pipeline_mode = #tpu.pipeline_mode<synchronous>, transform_indices = @transform_10, window_bounds = array<i64: 64, 128>}, {pipeline_mode = #tpu.pipeline_mode<synchronous>, transform_indices = @transform_11, window_bounds = array<i64: 1, 128>}, {pipeline_mode = #tpu.pipeline_mode<synchronous>, transform_indices = @transform_12, window_bounds = array<i64: 128, 784>}, {pipeline_mode = #tpu.pipeline_mode<synchronous>, transform_indices = @transform_13, window_bounds = array<i64: 1, 784>}, {transform_indices = @transform_14, window_bounds = array<i64: 128, 784>}]} {
    %c0 = arith.constant 0 : index
    %c0_0 = arith.constant 0 : index
    %0 = vector.load %arg1[%c0, %c0_0] : memref<128x784xbf16, #tpu.memory_space<vmem>>, vector<128x784xbf16>
    %c0_1 = arith.constant 0 : index
    %c0_2 = arith.constant 0 : index
    %1 = vector.load %arg2[%c0_1, %c0_2] : memref<128x32xf32, #tpu.memory_space<vmem>>, vector<128x32xf32>
    %c0_3 = arith.constant 0 : index
    %c0_4 = arith.constant 0 : index
    %2 = vector.load %arg3[%c0_3, %c0_4] : memref<784x128xbf16, #tpu.memory_space<vmem>>, vector<784x128xbf16>
    %cst = arith.constant dense<0.000000e+00> : vector<128x128xf32>
    %3 = tpu.matmul %0, %2, %cst {dimension_numbers = #tpu.dot_dimension_numbers<[1], [0], [0], [1], [0, 0, 1, 1], [], []>} : vector<128x784xbf16>, vector<784x128xbf16>, vector<128x128xf32> -> vector<128x128xf32>
    %c0_5 = arith.constant 0 : index
    %c0_6 = arith.constant 0 : index
    %4 = vector.load %arg4[%c0_5, %c0_6] : memref<1x128xf32, #tpu.memory_space<vmem>>, vector<1x128xf32>
    %5 = vector.broadcast %4 : vector<1x128xf32> to vector<128x128xf32>
    %6 = arith.addf %3, %5 : vector<128x128xf32>
    %cst_7 = arith.constant 0.000000e+00 : f32
    %7 = vector.broadcast %cst_7 : f32 to vector<128x128xf32>
    %8 = arith.maximumf %6, %7 : vector<128x128xf32>
    %9 = arith.truncf %8 : vector<128x128xf32> to vector<128x128xbf16>
    %c0_8 = arith.constant 0 : index
    %c0_9 = arith.constant 0 : index
    %10 = vector.load %arg5[%c0_8, %c0_9] : memref<128x64xbf16, #tpu.memory_space<vmem>>, vector<128x64xbf16>
    %cst_10 = arith.constant dense<0.000000e+00> : vector<128x64xf32>
    %11 = tpu.matmul %9, %10, %cst_10 {dimension_numbers = #tpu.dot_dimension_numbers<[1], [0], [0], [1], [0, 0, 1, 1], [], []>} : vector<128x128xbf16>, vector<128x64xbf16>, vector<128x64xf32> -> vector<128x64xf32>
    %c0_11 = arith.constant 0 : index
    %c0_12 = arith.constant 0 : index
    %12 = vector.load %arg6[%c0_11, %c0_12] : memref<1x64xf32, #tpu.memory_space<vmem>>, vector<1x64xf32>
    %13 = vector.broadcast %12 : vector<1x64xf32> to vector<128x64xf32>
    %14 = arith.addf %11, %13 : vector<128x64xf32>
    %cst_13 = arith.constant 0.000000e+00 : f32
    %15 = vector.broadcast %cst_13 : f32 to vector<128x64xf32>
    %16 = arith.maximumf %14, %15 : vector<128x64xf32>
    %17 = arith.truncf %16 : vector<128x64xf32> to vector<128x64xbf16>
    %c0_14 = arith.constant 0 : index
    %c0_15 = arith.constant 0 : index
    %18 = vector.load %arg7[%c0_14, %c0_15] : memref<64x64xbf16, #tpu.memory_space<vmem>>, vector<64x64xbf16>
    %cst_16 = arith.constant dense<0.000000e+00> : vector<128x64xf32>
    %19 = tpu.matmul %17, %18, %cst_16 {dimension_numbers = #tpu.dot_dimension_numbers<[1], [0], [0], [1], [0, 0, 1, 1], [], []>} : vector<128x64xbf16>, vector<64x64xbf16>, vector<128x64xf32> -> vector<128x64xf32>
    %c0_17 = arith.constant 0 : index
    %c0_18 = arith.constant 0 : index
    %20 = vector.load %arg8[%c0_17, %c0_18] : memref<1x64xf32, #tpu.memory_space<vmem>>, vector<1x64xf32>
    %21 = vector.broadcast %20 : vector<1x64xf32> to vector<128x64xf32>
    %22 = arith.addf %19, %21 : vector<128x64xf32>
    %23 = vector.extract_strided_slice %22 {offsets = [0, 0], sizes = [128, 32], strides = [1, 1]} : vector<128x64xf32> to vector<128x32xf32>
    %24 = vector.extract_strided_slice %22 {offsets = [0, 32], sizes = [128, 32], strides = [1, 1]} : vector<128x64xf32> to vector<128x32xf32>
    %cst_19 = arith.constant 5.000000e-01 : f32
    %25 = vector.broadcast %cst_19 : f32 to vector<128x32xf32>
    %26 = arith.mulf %24, %25 : vector<128x32xf32>
    %27 = math.exp %26 : vector<128x32xf32>
    %28 = arith.mulf %27, %1 : vector<128x32xf32>
    %29 = arith.addf %23, %28 : vector<128x32xf32>
    %30 = arith.truncf %29 : vector<128x32xf32> to vector<128x32xbf16>
    %c0_20 = arith.constant 0 : index
    %c0_21 = arith.constant 0 : index
    %31 = vector.load %arg9[%c0_20, %c0_21] : memref<32x64xbf16, #tpu.memory_space<vmem>>, vector<32x64xbf16>
    %cst_22 = arith.constant dense<0.000000e+00> : vector<128x64xf32>
    %32 = tpu.matmul %30, %31, %cst_22 {dimension_numbers = #tpu.dot_dimension_numbers<[1], [0], [0], [1], [0, 0, 1, 1], [], []>} : vector<128x32xbf16>, vector<32x64xbf16>, vector<128x64xf32> -> vector<128x64xf32>
    %c0_23 = arith.constant 0 : index
    %c0_24 = arith.constant 0 : index
    %33 = vector.load %arg10[%c0_23, %c0_24] : memref<1x64xf32, #tpu.memory_space<vmem>>, vector<1x64xf32>
    %34 = vector.broadcast %33 : vector<1x64xf32> to vector<128x64xf32>
    %35 = arith.addf %32, %34 : vector<128x64xf32>
    %cst_25 = arith.constant 0.000000e+00 : f32
    %36 = vector.broadcast %cst_25 : f32 to vector<128x64xf32>
    %37 = arith.maximumf %35, %36 : vector<128x64xf32>
    %38 = arith.truncf %37 : vector<128x64xf32> to vector<128x64xbf16>
    %c0_26 = arith.constant 0 : index
    %c0_27 = arith.constant 0 : index
    %39 = vector.load %arg11[%c0_26, %c0_27] : memref<64x128xbf16, #tpu.memory_space<vmem>>, vector<64x128xbf16>
    %cst_28 = arith.constant dense<0.000000e+00> : vector<128x128xf32>
    %40 = tpu.matmul %38, %39, %cst_28 {dimension_numbers = #tpu.dot_dimension_numbers<[1], [0], [0], [1], [0, 0, 1, 1], [], []>} : vector<128x64xbf16>, vector<64x128xbf16>, vector<128x128xf32> -> vector<128x128xf32>
    %c0_29 = arith.constant 0 : index
    %c0_30 = arith.constant 0 : index
    %41 = vector.load %arg12[%c0_29, %c0_30] : memref<1x128xf32, #tpu.memory_space<vmem>>, vector<1x128xf32>
    %42 = vector.broadcast %41 : vector<1x128xf32> to vector<128x128xf32>
    %43 = arith.addf %40, %42 : vector<128x128xf32>
    %cst_31 = arith.constant 0.000000e+00 : f32
    %44 = vector.broadcast %cst_31 : f32 to vector<128x128xf32>
    %45 = arith.maximumf %43, %44 : vector<128x128xf32>
    %46 = arith.truncf %45 : vector<128x128xf32> to vector<128x128xbf16>
    %c0_32 = arith.constant 0 : index
    %c0_33 = arith.constant 0 : index
    %47 = vector.load %arg13[%c0_32, %c0_33] : memref<128x784xbf16, #tpu.memory_space<vmem>>, vector<128x784xbf16>
    %cst_34 = arith.constant dense<0.000000e+00> : vector<128x784xf32>
    %48 = tpu.matmul %46, %47, %cst_34 {dimension_numbers = #tpu.dot_dimension_numbers<[1], [0], [0], [1], [0, 0, 1, 1], [], []>} : vector<128x128xbf16>, vector<128x784xbf16>, vector<128x784xf32> -> vector<128x784xf32>
    %c0_35 = arith.constant 0 : index
    %c0_36 = arith.constant 0 : index
    %49 = vector.load %arg14[%c0_35, %c0_36] : memref<1x784xf32, #tpu.memory_space<vmem>>, vector<1x784xf32>
    %50 = vector.broadcast %49 : vector<1x784xf32> to vector<128x784xf32>
    %51 = arith.addf %48, %50 : vector<128x784xf32>
    %52 = arith.truncf %51 : vector<128x784xf32> to vector<128x784xbf16>
    %53 = arith.negf %52 : vector<128x784xbf16>
    %54 = math.exp %53 : vector<128x784xbf16>
    %cst_37 = arith.constant 1.000000e+00 : bf16
    %55 = vector.broadcast %cst_37 : bf16 to vector<128x784xbf16>
    %56 = arith.addf %55, %54 : vector<128x784xbf16>
    %57 = arith.divf %55, %56 : vector<128x784xbf16>
    %c0_38 = arith.constant 0 : index
    %c0_39 = arith.constant 0 : index
    %58 = vector.load %arg15[%c0_38, %c0_39] : memref<128x784xbf16, #tpu.memory_space<vmem>>, vector<128x784xbf16>
    tpu.vector_store %arg15[%c0_38, %c0_39], %57 {strides = array<i32>} : memref<128x784xbf16, #tpu.memory_space<vmem>>, vector<128x784xbf16>,
    return
  }
  func.func @transform_0(%arg0: i32) -> (i32, i32) {
    %c0_i32 = arith.constant 0 : i32
    %c0_i32_0 = arith.constant 0 : i32
    return %arg0, %c0_i32 : i32, i32
  }
  func.func @transform_1(%arg0: i32) -> (i32, i32) {
    %c0_i32 = arith.constant 0 : i32
    %c0_i32_0 = arith.constant 0 : i32
    return %arg0, %c0_i32 : i32, i32
  }
  func.func @transform_2(%arg0: i32) -> (i32, i32) {
    %c0_i32 = arith.constant 0 : i32
    %c0_i32_0 = arith.constant 0 : i32
    %c0_i32_1 = arith.constant 0 : i32
    return %c0_i32, %c0_i32_0 : i32, i32
  }
  func.func @transform_3(%arg0: i32) -> (i32, i32) {
    %c0_i32 = arith.constant 0 : i32
    %c0_i32_0 = arith.constant 0 : i32
    %c0_i32_1 = arith.constant 0 : i32
    return %c0_i32, %c0_i32_0 : i32, i32
  }
  func.func @transform_4(%arg0: i32) -> (i32, i32) {
    %c0_i32 = arith.constant 0 : i32
    %c0_i32_0 = arith.constant 0 : i32
    %c0_i32_1 = arith.constant 0 : i32
    return %c0_i32, %c0_i32_0 : i32, i32
  }
  func.func @transform_5(%arg0: i32) -> (i32, i32) {
    %c0_i32 = arith.constant 0 : i32
    %c0_i32_0 = arith.constant 0 : i32
    %c0_i32_1 = arith.constant 0 : i32
    return %c0_i32, %c0_i32_0 : i32, i32
  }
  func.func @transform_6(%arg0: i32) -> (i32, i32) {
    %c0_i32 = arith.constant 0 : i32
    %c0_i32_0 = arith.constant 0 : i32
    %c0_i32_1 = arith.constant 0 : i32
    return %c0_i32, %c0_i32_0 : i32, i32
  }
  func.func @transform_7(%arg0: i32) -> (i32, i32) {
    %c0_i32 = arith.constant 0 : i32
    %c0_i32_0 = arith.constant 0 : i32
    %c0_i32_1 = arith.constant 0 : i32
    return %c0_i32, %c0_i32_0 : i32, i32
  }
  func.func @transform_8(%arg0: i32) -> (i32, i32) {
    %c0_i32 = arith.constant 0 : i32
    %c0_i32_0 = arith.constant 0 : i32
    %c0_i32_1 = arith.constant 0 : i32
    return %c0_i32, %c0_i32_0 : i32, i32
  }
  func.func @transform_9(%arg0: i32) -> (i32, i32) {
    %c0_i32 = arith.constant 0 : i32
    %c0_i32_0 = arith.constant 0 : i32
    %c0_i32_1 = arith.constant 0 : i32
    return %c0_i32, %c0_i32_0 : i32, i32
  }
  func.func @transform_10(%arg0: i32) -> (i32, i32) {
    %c0_i32 = arith.constant 0 : i32
    %c0_i32_0 = arith.constant 0 : i32
    %c0_i32_1 = arith.constant 0 : i32
    return %c0_i32, %c0_i32_0 : i32, i32
  }
  func.func @transform_11(%arg0: i32) -> (i32, i32) {
    %c0_i32 = arith.constant 0 : i32
    %c0_i32_0 = arith.constant 0 : i32
    %c0_i32_1 = arith.constant 0 : i32
    return %c0_i32, %c0_i32_0 : i32, i32
  }
  func.func @transform_12(%arg0: i32) -> (i32, i32) {
    %c0_i32 = arith.constant 0 : i32
    %c0_i32_0 = arith.constant 0 : i32
    %c0_i32_1 = arith.constant 0 : i32
    return %c0_i32, %c0_i32_0 : i32, i32
  }
  func.func @transform_13(%arg0: i32) -> (i32, i32) {
    %c0_i32 = arith.constant 0 : i32
    %c0_i32_0 = arith.constant 0 : i32
    %c0_i32_1 = arith.constant 0 : i32
    return %c0_i32, %c0_i32_0 : i32, i32
  }
  func.func @transform_14(%arg0: i32) -> (i32, i32) {
    %c0_i32 = arith.constant 0 : i32
    %c0_i32_0 = arith.constant 0 : i32
    return %arg0, %c0_i32 : i32, i32
  }
}

</mosaic_0001>

<llo_original>
// kernel: tpu_custom_call.1
$region0: #{tpu_custom_call.1}
  #allocation0 [shape = 'u32[]', space=smem, size = 0x4, offset = 0x4, fixed_abs, tag = 'smem constant byte address 0x4 - core index']
  #allocation1 [shape = 'u32[144,128]{1,0:T(1,128)}', space=vmem, size = 0x12000, scoped, tag = 'internal scratch']
  %s0 = inlined_call_operand.vmem [shape: bf16[256,784], index: 0, kind: input, shape index: {}]
  %s1 = inlined_call_operand.vmem [shape: f32[256,32], index: 1, kind: input, shape index: {}]
  %s2 = inlined_call_operand.vmem [shape: bf16[784,128], index: 2, kind: input, shape index: {}]
  %s3 = inlined_call_operand.vmem [shape: f32[1,128], index: 3, kind: input, shape index: {}]
  %s4 = inlined_call_operand.vmem [shape: bf16[128,64], index: 4, kind: input, shape index: {}]
  %s5 = inlined_call_operand.vmem [shape: f32[1,64], index: 5, kind: input, shape index: {}]
  %s6 = inlined_call_operand.vmem [shape: bf16[64,64], index: 6, kind: input, shape index: {}]
  %s7 = inlined_call_operand.vmem [shape: f32[1,64], index: 7, kind: input, shape index: {}]
  %s8 = inlined_call_operand.vmem [shape: bf16[32,64], index: 8, kind: input, shape index: {}]
  %s9 = inlined_call_operand.vmem [shape: f32[1,64], index: 9, kind: input, shape index: {}]
  %s10 = inlined_call_operand.vmem [shape: bf16[64,128], index: 10, kind: input, shape index: {}]
  %s11 = inlined_call_operand.vmem [shape: f32[1,128], index: 11, kind: input, shape index: {}]
  %s12 = inlined_call_operand.vmem [shape: bf16[128,784], index: 12, kind: input, shape index: {}]
  %s13 = inlined_call_operand.vmem [shape: f32[1,784], index: 13, kind: input, shape index: {}]
  %s14 = inlined_call_operand.vmem [shape: bf16[256,784], index: 14, kind: output, shape index: {}]
  %s15 = sld [smem:[#allocation0]]
  $region89: #{tpu_custom_call.1} parent=0
    _
  %s17 = ssub.s32 1, %s15
  %s18 = scalar_select 0, %s17, %s15
  loop: start=0, step=1, limit=4
  $region2: #{tpu_custom_call.1} parent=0 // loop_pre_header
    _
  $region3: #{tpu_custom_call.1} parent=0 // loop_header
    %s20 = sphi 0, %s24
    %p21 = scmp.ge.s32.totalorder %s20, 4
    %s30 = sphi 0, %s32
    %s33 = sphi 0, %s30
    %s34 = sphi 0, %s33
    %s50 = sphi 0, %s34
    %s56 = sphi 0, %s58
    %s59 = sphi 0, %s56
    %s60 = sphi 0, %s59
    %s76 = sphi 0, %s60
    %s80 = sphi 0, %s80
    %s82 = sphi 0, %s80
    %s83 = sphi 0, %s82
    %s97 = sphi 0, %s83
    %s101 = sphi 0, %s101
    %s103 = sphi 0, %s101
    %s104 = sphi 0, %s103
    %s118 = sphi 0, %s104
    %s122 = sphi 0, %s122
    %s124 = sphi 0, %s122
    %s125 = sphi 0, %s124
    %s139 = sphi 0, %s125
    %s143 = sphi 0, %s143
    %s145 = sphi 0, %s143
    %s146 = sphi 0, %s145
    %s160 = sphi 0, %s146
    %s164 = sphi 0, %s164
    %s166 = sphi 0, %s164
    %s167 = sphi 0, %s166
    %s181 = sphi 0, %s167
    %s185 = sphi 0, %s185
    %s187 = sphi 0, %s185
    %s188 = sphi 0, %s187
    %s202 = sphi 0, %s188
    %s206 = sphi 0, %s206
    %s208 = sphi 0, %s206
    %s209 = sphi 0, %s208
    %s223 = sphi 0, %s209
    %s227 = sphi 0, %s227
    %s229 = sphi 0, %s227
    %s230 = sphi 0, %s229
    %s244 = sphi 0, %s230
    %s248 = sphi 0, %s248
    %s250 = sphi 0, %s248
    %s251 = sphi 0, %s250
    %s265 = sphi 0, %s251
    %s269 = sphi 0, %s269
    %s271 = sphi 0, %s269
    %s272 = sphi 0, %s271
    %s286 = sphi 0, %s272
    %s290 = sphi 0, %s290
    %s292 = sphi 0, %s290
    %s293 = sphi 0, %s292
    %s307 = sphi 0, %s293
    %s311 = sphi 0, %s311
    %s313 = sphi 0, %s311
    %s314 = sphi 0, %s313
    %s328 = sphi 0, %s314
    %s334 = sphi 0, %s336
    %s337 = sphi 0, %s334
    %s338 = sphi 0, %s337
    %s354 = sphi 0, %s338
  $region4: #{tpu_custom_call.1} parent=0 // loop_header_branch
    %23 = sbr.rel (%p21) target = $region8
  $region5: #{tpu_custom_call.1} parent=0 // loop_body
    %s25 = ssub.s32 %s20, 1
    %s26 = ssub.s32 %s20, 2
    %s27 = sadd.s32 %s20, 1
    %s28 = ssub.s32 %s20, %s27
    %p29 = scmp.eq.s32.totalorder %s28, 0
    %s31 = sadd.s32 %s30, 1
    %s32 = scalar_select %p29, %s30, %s31
    %p35 = pneg %p29
    %p36 = scmp.eq.s32.totalorder %s20, 1
    %p37 = por %p35, %p36
    %p38 = scmp.ne.s32.totalorder %s30, %s33
    %p39 = scmp.eq.s32.totalorder %s20, 0
    %p40 = por %p38, %p39
    %p41 = scmp.ne.s32.totalorder %s30, %s33
    %p42 = scmp.eq.s32.totalorder %s25, 1
    %p43 = por %p41, %p42
    %p44 = scmp.ne.s32.totalorder %s33, %s34
    %p45 = scmp.eq.s32.totalorder %s25, 0
    %p46 = por %p44, %p45
    %p47 = scmp.ne.s32.totalorder %s33, %s34
    %p48 = scmp.eq.s32.totalorder %s26, 1
    %p49 = por %p47, %p48
    %p51 = scmp.ne.s32.totalorder %s34, %s50
    %p52 = scmp.eq.s32.totalorder %s26, 0
    %p53 = por %p51, %p52
    %s54 = ssub.s32 %s20, %s27
    %p55 = scmp.eq.s32.totalorder %s54, 0
    %s57 = sadd.s32 %s56, 1
    %s58 = scalar_select %p55, %s56, %s57
    %p61 = pneg %p55
    %p62 = scmp.eq.s32.totalorder %s20, 1
    %p63 = por %p61, %p62
    %p64 = scmp.ne.s32.totalorder %s56, %s59
    %p65 = scmp.eq.s32.totalorder %s20, 0
    %p66 = por %p64, %p65
    %p67 = scmp.ne.s32.totalorder %s56, %s59
    %p68 = scmp.eq.s32.totalorder %s25, 1
    %p69 = por %p67, %p68
    %p70 = scmp.ne.s32.totalorder %s59, %s60
    %p71 = scmp.eq.s32.totalorder %s25, 0
    %p72 = por %p70, %p71
    %p73 = scmp.ne.s32.totalorder %s59, %s60
    %p74 = scmp.eq.s32.totalorder %s26, 1
    %p75 = por %p73, %p74
    %p77 = scmp.ne.s32.totalorder %s60, %s76
    %p78 = scmp.eq.s32.totalorder %s26, 0
    %p79 = por %p77, %p78
    %s81 = sadd.s32 %s80, 1
    %p84 = scmp.eq.s32.totalorder %s20, 1
    %p85 = scmp.ne.s32.totalorder %s80, %s82
    %p86 = scmp.eq.s32.totalorder %s20, 0
    %p87 = por %p85, %p86
    %p88 = scmp.ne.s32.totalorder %s80, %s82
    %p89 = scmp.eq.s32.totalorder %s25, 1
    %p90 = por %p88, %p89
    %p91 = scmp.ne.s32.totalorder %s82, %s83
    %p92 = scmp.eq.s32.totalorder %s25, 0
    %p93 = por %p91, %p92
    %p94 = scmp.ne.s32.totalorder %s82, %s83
    %p95 = scmp.eq.s32.totalorder %s26, 1
    %p96 = por %p94, %p95
    %p98 = scmp.ne.s32.totalorder %s83, %s97
    %p99 = scmp.eq.s32.totalorder %s26, 0
    %p100 = por %p98, %p99
    %s102 = sadd.s32 %s101, 1
    %p105 = scmp.eq.s32.totalorder %s20, 1
    %p106 = scmp.ne.s32.totalorder %s101, %s103
    %p107 = scmp.eq.s32.totalorder %s20, 0
    %p108 = por %p106, %p107
    %p109 = scmp.ne.s32.totalorder %s101, %s103
    %p110 = scmp.eq.s32.totalorder %s25, 1
    %p111 = por %p109, %p110
    %p112 = scmp.ne.s32.totalorder %s103, %s104
    %p113 = scmp.eq.s32.totalorder %s25, 0
    %p114 = por %p112, %p113
    %p115 = scmp.ne.s32.totalorder %s103, %s104
    %p116 = scmp.eq.s32.totalorder %s26, 1
    %p117 = por %p115, %p116
    %p119 = scmp.ne.s32.totalorder %s104, %s118
    %p120 = scmp.eq.s32.totalorder %s26, 0
    %p121 = por %p119, %p120
    %s123 = sadd.s32 %s122, 1
    %p126 = scmp.eq.s32.totalorder %s20, 1
    %p127 = scmp.ne.s32.totalorder %s122, %s124
    %p128 = scmp.eq.s32.totalorder %s20, 0
    %p129 = por %p127, %p128
    %p130 = scmp.ne.s32.totalorder %s122, %s124
    %p131 = scmp.eq.s32.totalorder %s25, 1
    %p132 = por %p130, %p131
    %p133 = scmp.ne.s32.totalorder %s124, %s125
    %p134 = scmp.eq.s32.totalorder %s25, 0
    %p135 = por %p133, %p134
    %p136 = scmp.ne.s32.totalorder %s124, %s125
    %p137 = scmp.eq.s32.totalorder %s26, 1
    %p138 = por %p136, %p137
    %p140 = scmp.ne.s32.totalorder %s125, %s139
    %p141 = scmp.eq.s32.totalorder %s26, 0
    %p142 = por %p140, %p141
    %s144 = sadd.s32 %s143, 1
    %p147 = scmp.eq.s32.totalorder %s20, 1
    %p148 = scmp.ne.s32.totalorder %s143, %s145
    %p149 = scmp.eq.s32.totalorder %s20, 0
    %p150 = por %p148, %p149
    %p151 = scmp.ne.s32.totalorder %s143, %s145
    %p152 = scmp.eq.s32.totalorder %s25, 1
    %p153 = por %p151, %p152
    %p154 = scmp.ne.s32.totalorder %s145, %s146
    %p155 = scmp.eq.s32.totalorder %s25, 0
    %p156 = por %p154, %p155
    %p157 = scmp.ne.s32.totalorder %s145, %s146
    %p158 = scmp.eq.s32.totalorder %s26, 1
    %p159 = por %p157, %p158
    %p161 = scmp.ne.s32.totalorder %s146, %s160
    %p162 = scmp.eq.s32.totalorder %s26, 0
    %p163 = por %p161, %p162
    %s165 = sadd.s32 %s164, 1
    %p168 = scmp.eq.s32.totalorder %s20, 1
    %p169 = scmp.ne.s32.totalorder %s164, %s166
    %p170 = scmp.eq.s32.totalorder %s20, 0
    %p171 = por %p169, %p170
    %p172 = scmp.ne.s32.totalorder %s164, %s166
    %p173 = scmp.eq.s32.totalorder %s25, 1
    %p174 = por %p172, %p173
    %p175 = scmp.ne.s32.totalorder %s166, %s167
    %p176 = scmp.eq.s32.totalorder %s25, 0
    %p177 = por %p175, %p176
    %p178 = scmp.ne.s32.totalorder %s166, %s167
    %p179 = scmp.eq.s32.totalorder %s26, 1
    %p180 = por %p178, %p179
    %p182 = scmp.ne.s32.totalorder %s167, %s181
    %p183 = scmp.eq.s32.totalorder %s26, 0
    %p184 = por %p182, %p183
    %s186 = sadd.s32 %s185, 1
    %p189 = scmp.eq.s32.totalorder %s20, 1
    %p190 = scmp.ne.s32.totalorder %s185, %s187
    %p191 = scmp.eq.s32.totalorder %s20, 0
    %p192 = por %p190, %p191
    %p193 = scmp.ne.s32.totalorder %s185, %s187
    %p194 = scmp.eq.s32.totalorder %s25, 1
    %p195 = por %p193, %p194
    %p196 = scmp.ne.s32.totalorder %s187, %s188
    %p197 = scmp.eq.s32.totalorder %s25, 0
    %p198 = por %p196, %p197
    %p199 = scmp.ne.s32.totalorder %s187, %s188
    %p200 = scmp.eq.s32.totalorder %s26, 1
    %p201 = por %p199, %p200
    %p203 = scmp.ne.s32.totalorder %s188, %s202
    %p204 = scmp.eq.s32.totalorder %s26, 0
    %p205 = por %p203, %p204
    %s207 = sadd.s32 %s206, 1
    %p210 = scmp.eq.s32.totalorder %s20, 1
    %p211 = scmp.ne.s32.totalorder %s206, %s208
    %p212 = scmp.eq.s32.totalorder %s20, 0
    %p213 = por %p211, %p212
    %p214 = scmp.ne.s32.totalorder %s206, %s208
    %p215 = scmp.eq.s32.totalorder %s25, 1
    %p216 = por %p214, %p215
    %p217 = scmp.ne.s32.totalorder %s208, %s209
    %p218 = scmp.eq.s32.totalorder %s25, 0
    %p219 = por %p217, %p218
    %p220 = scmp.ne.s32.totalorder %s208, %s209
    %p221 = scmp.eq.s32.totalorder %s26, 1
    %p222 = por %p220, %p221
    %p224 = scmp.ne.s32.totalorder %s209, %s223
    %p225 = scmp.eq.s32.totalorder %s26, 0
    %p226 = por %p224, %p225
    %s228 = sadd.s32 %s227, 1
    %p231 = scmp.eq.s32.totalorder %s20, 1
    %p232 = scmp.ne.s32.totalorder %s227, %s229
    %p233 = scmp.eq.s32.totalorder %s20, 0
    %p234 = por %p232, %p233
    %p235 = scmp.ne.s32.totalorder %s227, %s229
    %p236 = scmp.eq.s32.totalorder %s25, 1
    %p237 = por %p235, %p236
    %p238 = scmp.ne.s32.totalorder %s229, %s230
    %p239 = scmp.eq.s32.totalorder %s25, 0
    %p240 = por %p238, %p239
    %p241 = scmp.ne.s32.totalorder %s229, %s230
    %p242 = scmp.eq.s32.totalorder %s26, 1
    %p243 = por %p241, %p242
    %p245 = scmp.ne.s32.totalorder %s230, %s244
    %p246 = scmp.eq.s32.totalorder %s26, 0
    %p247 = por %p245, %p246
    %s249 = sadd.s32 %s248, 1
    %p252 = scmp.eq.s32.totalorder %s20, 1
    %p253 = scmp.ne.s32.totalorder %s248, %s250
    %p254 = scmp.eq.s32.totalorder %s20, 0
    %p255 = por %p253, %p254
    %p256 = scmp.ne.s32.totalorder %s248, %s250
    %p257 = scmp.eq.s32.totalorder %s25, 1
    %p258 = por %p256, %p257
    %p259 = scmp.ne.s32.totalorder %s250, %s251
    %p260 = scmp.eq.s32.totalorder %s25, 0
    %p261 = por %p259, %p260
    %p262 = scmp.ne.s32.totalorder %s250, %s251
    %p263 = scmp.eq.s32.totalorder %s26, 1
    %p264 = por %p262, %p263
    %p266 = scmp.ne.s32.totalorder %s251, %s265
    %p267 = scmp.eq.s32.totalorder %s26, 0
    %p268 = por %p266, %p267
    %s270 = sadd.s32 %s269, 1
    %p273 = scmp.eq.s32.totalorder %s20, 1
    %p274 = scmp.ne.s32.totalorder %s269, %s271
    %p275 = scmp.eq.s32.totalorder %s20, 0
    %p276 = por %p274, %p275
    %p277 = scmp.ne.s32.totalorder %s269, %s271
    %p278 = scmp.eq.s32.totalorder %s25, 1
    %p279 = por %p277, %p278
    %p280 = scmp.ne.s32.totalorder %s271, %s272
    %p281 = scmp.eq.s32.totalorder %s25, 0
    %p282 = por %p280, %p281
    %p283 = scmp.ne.s32.totalorder %s271, %s272
    %p284 = scmp.eq.s32.totalorder %s26, 1
    %p285 = por %p283, %p284
    %p287 = scmp.ne.s32.totalorder %s272, %s286
    %p288 = scmp.eq.s32.totalorder %s26, 0
    %p289 = por %p287, %p288
    %s291 = sadd.s32 %s290, 1
    %p294 = scmp.eq.s32.totalorder %s20, 1
    %p295 = scmp.ne.s32.totalorder %s290, %s292
    %p296 = scmp.eq.s32.totalorder %s20, 0
    %p297 = por %p295, %p296
    %p298 = scmp.ne.s32.totalorder %s290, %s292
    %p299 = scmp.eq.s32.totalorder %s25, 1
    %p300 = por %p298, %p299
    %p301 = scmp.ne.s32.totalorder %s292, %s293
    %p302 = scmp.eq.s32.totalorder %s25, 0
    %p303 = por %p301, %p302
    %p304 = scmp.ne.s32.totalorder %s292, %s293
    %p305 = scmp.eq.s32.totalorder %s26, 1
    %p306 = por %p304, %p305
    %p308 = scmp.ne.s32.totalorder %s293, %s307
    %p309 = scmp.eq.s32.totalorder %s26, 0
    %p310 = por %p308, %p309
    %s312 = sadd.s32 %s311, 1
    %p315 = scmp.eq.s32.totalorder %s20, 1
    %p316 = scmp.ne.s32.totalorder %s311, %s313
    %p317 = scmp.eq.s32.totalorder %s20, 0
    %p318 = por %p316, %p317
    %p319 = scmp.ne.s32.totalorder %s311, %s313
    %p320 = scmp.eq.s32.totalorder %s25, 1
    %p321 = por %p319, %p320
    %p322 = scmp.ne.s32.totalorder %s313, %s314
    %p323 = scmp.eq.s32.totalorder %s25, 0
    %p324 = por %p322, %p323
    %p325 = scmp.ne.s32.totalorder %s313, %s314
    %p326 = scmp.eq.s32.totalorder %s26, 1
    %p327 = por %p325, %p326
    %p329 = scmp.ne.s32.totalorder %s314, %s328
    %p330 = scmp.eq.s32.totalorder %s26, 0
    %p331 = por %p329, %p330
    %s332 = ssub.s32 %s20, %s27
    %p333 = scmp.eq.s32.totalorder %s332, 0
    %s335 = sadd.s32 %s334, 1
    %s336 = scalar_select %p333, %s334, %s335
    %p339 = pneg %p333
    %p340 = scmp.eq.s32.totalorder %s20, 1
    %p341 = por %p339, %p340
    %p342 = scmp.ne.s32.totalorder %s334, %s337
    %p343 = scmp.eq.s32.totalorder %s20, 0
    %p344 = por %p342, %p343
    %p345 = scmp.ne.s32.totalorder %s334, %s337
    %p346 = scmp.eq.s32.totalorder %s25, 1
    %p347 = por %p345, %p346
    %p348 = scmp.ne.s32.totalorder %s337, %s338
    %p349 = scmp.eq.s32.totalorder %s25, 0
    %p350 = por %p348, %p349
    %p351 = scmp.ne.s32.totalorder %s337, %s338
    %p352 = scmp.eq.s32.totalorder %s26, 1
    %p353 = por %p351, %p352
    %p355 = scmp.ne.s32.totalorder %s338, %s354
    %p356 = scmp.eq.s32.totalorder %s26, 0
    %p357 = por %p355, %p356
    %p358 = scmp.le.s32.totalorder 1, %s20
    %p359 = scmp.lt.s32.totalorder %s20, 3
    %p360 = pnand %p358, %p359
    %p361 = pneg %p360
    // Predicated region
    $region9: #{tpu_custom_call.1} parent=5 // pred_check
      _
    $region10: #{tpu_custom_call.1} parent=5 // pred_check_branch
      %363 = sbr.rel (%p360) target = $region12
    $region11: #{tpu_custom_call.1} parent=5 // pred_region
      %s364 = ssub.s32 %s20, 1
      // Predicated region
      $region13: #{tpu_custom_call.1} parent=11 // pred_check
        %p365 = pneg %p93
      $region14: #{tpu_custom_call.1} parent=11 // pred_check_branch
        %367 = sbr.rel (%p365) target = $region16
      $region15: #{tpu_custom_call.1} parent=11 // pred_region
        _
      $region16: #{tpu_custom_call.1} parent=11 // pred_fallthru
        _
      // Predicated region
      $region17: #{tpu_custom_call.1} parent=11 // pred_check
        %p368 = pneg %p114
      $region18: #{tpu_custom_call.1} parent=11 // pred_check_branch
        %370 = sbr.rel (%p368) target = $region20
      $region19: #{tpu_custom_call.1} parent=11 // pred_region
        _
      $region20: #{tpu_custom_call.1} parent=11 // pred_fallthru
        _
      // Predicated region
      $region21: #{tpu_custom_call.1} parent=11 // pred_check
        %p371 = pneg %p135
      $region22: #{tpu_custom_call.1} parent=11 // pred_check_branch
        %373 = sbr.rel (%p371) target = $region24
      $region23: #{tpu_custom_call.1} parent=11 // pred_region
        _
      $region24: #{tpu_custom_call.1} parent=11 // pred_fallthru
        _
      // Predicated region
      $region25: #{tpu_custom_call.1} parent=11 // pred_check
        %p374 = pneg %p156
      $region26: #{tpu_custom_call.1} parent=11 // pred_check_branch
        %376 = sbr.rel (%p374) target = $region28
      $region27: #{tpu_custom_call.1} parent=11 // pred_region
        _
      $region28: #{tpu_custom_call.1} parent=11 // pred_fallthru
        _
      // Predicated region
      $region29: #{tpu_custom_call.1} parent=11 // pred_check
        %p377 = pneg %p177
      $region30: #{tpu_custom_call.1} parent=11 // pred_check_branch
        %379 = sbr.rel (%p377) target = $region32
      $region31: #{tpu_custom_call.1} parent=11 // pred_region
        _
      $region32: #{tpu_custom_call.1} parent=11 // pred_fallthru
        _
      // Predicated region
      $region33: #{tpu_custom_call.1} parent=11 // pred_check
        %p380 = pneg %p198
      $region34: #{tpu_custom_call.1} parent=11 // pred_check_branch
        %382 = sbr.rel (%p380) target = $region36
      $region35: #{tpu_custom_call.1} parent=11 // pred_region
        _
      $region36: #{tpu_custom_call.1} parent=11 // pred_fallthru
        _
      // Predicated region
      $region37: #{tpu_custom_call.1} parent=11 // pred_check
        %p383 = pneg %p219
      $region38: #{tpu_custom_call.1} parent=11 // pred_check_branch
        %385 = sbr.rel (%p383) target = $region40
      $region39: #{tpu_custom_call.1} parent=11 // pred_region
        _
      $region40: #{tpu_custom_call.1} parent=11 // pred_fallthru
        _
      // Predicated region
      $region41: #{tpu_custom_call.1} parent=11 // pred_check
        %p386 = pneg %p240
      $region42: #{tpu_custom_call.1} parent=11 // pred_check_branch
        %388 = sbr.rel (%p386) target = $region44
      $region43: #{tpu_custom_call.1} parent=11 // pred_region
        _
      $region44: #{tpu_custom_call.1} parent=11 // pred_fallthru
        _
      // Predicated region
      $region45: #{tpu_custom_call.1} parent=11 // pred_check
        %p389 = pneg %p261
      $region46: #{tpu_custom_call.1} parent=11 // pred_check_branch
        %391 = sbr.rel (%p389) target = $region48
      $region47: #{tpu_custom_call.1} parent=11 // pred_region
        _
      $region48: #{tpu_custom_call.1} parent=11 // pred_fallthru
        _
      // Predicated region
      $region49: #{tpu_custom_call.1} parent=11 // pred_check
        %p392 = pneg %p282
      $region50: #{tpu_custom_call.1} parent=11 // pred_check_branch
        %394 = sbr.rel (%p392) target = $region52
      $region51: #{tpu_custom_call.1} parent=11 // pred_region
        _
      $region52: #{tpu_custom_call.1} parent=11 // pred_fallthru
        _
      // Predicated region
      $region53: #{tpu_custom_call.1} parent=11 // pred_check
        %p395 = pneg %p303
      $region54: #{tpu_custom_call.1} parent=11 // pred_check_branch
        %397 = sbr.rel (%p395) target = $region56
      $region55: #{tpu_custom_call.1} parent=11 // pred_region
        _
      $region56: #{tpu_custom_call.1} parent=11 // pred_fallthru
        _
      // Predicated region
      $region57: #{tpu_custom_call.1} parent=11 // pred_check
        %p398 = pneg %p324
      $region58: #{tpu_custom_call.1} parent=11 // pred_check_branch
        %400 = sbr.rel (%p398) target = $region60
      $region59: #{tpu_custom_call.1} parent=11 // pred_region
        _
      $region60: #{tpu_custom_call.1} parent=11 // pred_fallthru
        _
    $region12: #{tpu_custom_call.1} parent=5 // pred_fallthru
      _
    %p401 = scmp.lt.s32.totalorder %s20, 2
    // Predicated region
    $region61: #{tpu_custom_call.1} parent=5 // pred_check
      %p402 = pneg %p401
    $region62: #{tpu_custom_call.1} parent=5 // pred_check_branch
      %404 = sbr.rel (%p402) target = $region64
    $region63: #{tpu_custom_call.1} parent=5 // pred_region
      // Predicated region
      $region65: #{tpu_custom_call.1} parent=63 // pred_check
        %p405 = pneg %p40
      $region66: #{tpu_custom_call.1} parent=63 // pred_check_branch
        %407 = sbr.rel (%p405) target = $region68
      $region67: #{tpu_custom_call.1} parent=63 // pred_region
        %s408 = smul.u32 16, %s20
        %p409 = scmp.lt.s32.totalorder %s408, 31
        %s410 = scalar_select %p409, %s408, 31
        %s411 = smul.addr %s410, 7
        %s412 = smul.addr %s411, 4
        %s413 = scalar_lea.vmem %s0, %s412
        %s414 = smul.u32 16, %s20
      $region68: #{tpu_custom_call.1} parent=63 // pred_fallthru
        _
      // Predicated region
      $region69: #{tpu_custom_call.1} parent=63 // pred_check
        %p415 = pneg %p66
      $region70: #{tpu_custom_call.1} parent=63 // pred_check_branch
        %417 = sbr.rel (%p415) target = $region72
      $region71: #{tpu_custom_call.1} parent=63 // pred_region
        %s418 = smul.u32 16, %s20
        %p419 = scmp.lt.s32.totalorder %s418, 31
        %s420 = scalar_select %p419, %s418, 31
        %s421 = smul.addr %s420, 8
        %s422 = scalar_lea.vmem %s1, %s421
        %s423 = smul.u32 16, %s20
      $region72: #{tpu_custom_call.1} parent=63 // pred_fallthru
        _
    $region64: #{tpu_custom_call.1} parent=5 // pred_fallthru
      _
    %p424 = scmp.le.s32.totalorder 1, %s20
    %p425 = scmp.lt.s32.totalorder %s20, 3
    %p426 = pnand %p424, %p425
    %p427 = pneg %p426
    // Predicated region
    $region73: #{tpu_custom_call.1} parent=5 // pred_check
      _
    $region74: #{tpu_custom_call.1} parent=5 // pred_check_branch
      %429 = sbr.rel (%p426) target = $region76
    $region75: #{tpu_custom_call.1} parent=5 // pred_region
      %s430 = ssub.s32 %s20, 1
      %s431 = smul.u32 16, %s25
      %p432 = scmp.lt.s32.totalorder %s431, 31
      %s433 = scalar_select %p432, %s431, 31
      %s434 = smul.addr %s433, 7
      %s435 = smul.addr %s434, 4
      %s436 = scalar_lea.vmem %s0, %s435
      %p437 = pneg %p46
      %p438 = pneg %p43
      %s439 = smul.u32 16, %s25
      %p440 = scmp.lt.s32.totalorder %s439, 31
      %s441 = scalar_select %p440, %s439, 31
      %s442 = smul.addr %s441, 8
      %s443 = scalar_lea.vmem %s1, %s442
      %p444 = pneg %p72
      %p445 = pneg %p69
      %p446 = pneg %p93
      %p447 = pneg %p90
      %p448 = pneg %p114
      %p449 = pneg %p111
      %p450 = pneg %p135
      %p451 = pneg %p132
      %p452 = pneg %p156
      %p453 = pneg %p153
      %p454 = pneg %p177
      %p455 = pneg %p174
      %p456 = pneg %p198
      %p457 = pneg %p195
      %p458 = pneg %p219
      %p459 = pneg %p216
      %p460 = pneg %p240
      %p461 = pneg %p237
      %p462 = pneg %p261
      %p463 = pneg %p258
      %p464 = pneg %p282
      %p465 = pneg %p279
      %p466 = pneg %p303
      %p467 = pneg %p300
      %p468 = pneg %p324
      %p469 = pneg %p321
      %p470 = pneg %p350
      %p471 = pneg %p347
      %s472 = smul.u32 16, %s25
      %p473 = scmp.lt.s32.totalorder %s472, 31
      %s474 = scalar_select %p473, %s472, 31
      %s475 = smul.addr %s474, 7
      %s476 = smul.addr %s475, 4
      %s477 = scalar_lea.vmem %s14, %s476
      %s478 = smul.u32 16, %s25
      %p479 = scmp.lt.s32.totalorder %s478, 31
      %s480 = scalar_select %p479, %s478, 31
      %s481 = smul.addr %s480, 7
      %s482 = smul.addr %s481, 4
      %s483 = scalar_lea.vmem %s0, %s482
      %s484 = smul.u32 16, %s25
      %s485 = smul.u32 16, %s25
      %p486 = scmp.lt.s32.totalorder %s485, 31
      %s487 = scalar_select %p486, %s485, 31
      %s488 = smul.addr %s487, 8
      %s489 = scalar_lea.vmem %s1, %s488
      %s490 = smul.u32 16, %s25
      %s491 = smul.u32 16, %s25
      %p492 = scmp.lt.s32.totalorder %s491, 31
      %s493 = scalar_select %p492, %s491, 31
      %s494 = smul.addr %s493, 7
      %s495 = smul.addr %s494, 4
      %s496 = scalar_lea.vmem %s14, %s495
      %s497 = smul.u32 16, %s25
      %v500 = vld [vmem:[%s483] sm:$0xff]
      %v501 = vld [vmem:[%s483 + $0x8] sm:$0xff]
      %v502 = vld [vmem:[%s483 + $0x10] sm:$0xff]
      %v503 = vld [vmem:[%s483 + $0x18] sm:$0xf]
      %v504 = vld [vmem:[%s483 + $0x1c] sm:$0xff]
      %v505 = vld [vmem:[%s483 + $0x24] sm:$0xff]
      %v506 = vld [vmem:[%s483 + $0x2c] sm:$0xff]
      %v507 = vld [vmem:[%s483 + $0x34] sm:$0xf]
      %v508 = vld [vmem:[%s483 + $0x38] sm:$0xff]
      %v509 = vld [vmem:[%s483 + $0x40] sm:$0xff]
      %v510 = vld [vmem:[%s483 + $0x48] sm:$0xff]
      %v511 = vld [vmem:[%s483 + $0x50] sm:$0xf]
      %v512 = vld [vmem:[%s483 + $0x54] sm:$0xff]
      %v513 = vld [vmem:[%s483 + $0x5c] sm:$0xff]
      %v514 = vld [vmem:[%s483 + $0x64] sm:$0xff]
      %v515 = vld [vmem:[%s483 + $0x6c] sm:$0xf]
      %v516 = vld [vmem:[%s483 + $0x70] sm:$0xff]
      %v517 = vld [vmem:[%s483 + $0x78] sm:$0xff]
      %v518 = vld [vmem:[%s483 + $0x80] sm:$0xff]
      %v519 = vld [vmem:[%s483 + $0x88] sm:$0xf]
      %v520 = vld [vmem:[%s483 + $0x8c] sm:$0xff]
      %v521 = vld [vmem:[%s483 + $0x94] sm:$0xff]
      %v522 = vld [vmem:[%s483 + $0x9c] sm:$0xff]
      %v523 = vld [vmem:[%s483 + $0xa4] sm:$0xf]
      %v524 = vld [vmem:[%s483 + $0xa8] sm:$0xff]
      %v525 = vld [vmem:[%s483 + $0xb0] sm:$0xff]
      %v526 = vld [vmem:[%s483 + $0xb8] sm:$0xff]
      %v527 = vld [vmem:[%s483 + $0xc0] sm:$0xf]
      %v528 = vld [vmem:[%s483 + $0xc4] sm:$0xff]
      %v529 = vld [vmem:[%s483 + $0xcc] sm:$0xff]
      %v530 = vld [vmem:[%s483 + $0xd4] sm:$0xff]
      %v531 = vld [vmem:[%s483 + $0xdc] sm:$0xf]
      %v532 = vld [vmem:[%s483 + $0xe0] sm:$0xff]
      %v533 = vld [vmem:[%s483 + $0xe8] sm:$0xff]
      %v534 = vld [vmem:[%s483 + $0xf0] sm:$0xff]
      %v535 = vld [vmem:[%s483 + $0xf8] sm:$0xf]
      %v536 = vld [vmem:[%s483 + $0xfc] sm:$0xff]
      %v537 = vld [vmem:[%s483 + $0x104] sm:$0xff]
      %v538 = vld [vmem:[%s483 + $0x10c] sm:$0xff]
      %v539 = vld [vmem:[%s483 + $0x114] sm:$0xf]
      %v540 = vld [vmem:[%s483 + $0x118] sm:$0xff]
      %v541 = vld [vmem:[%s483 + $0x120] sm:$0xff]
      %v542 = vld [vmem:[%s483 + $0x128] sm:$0xff]
      %v543 = vld [vmem:[%s483 + $0x130] sm:$0xf]
      %v544 = vld [vmem:[%s483 + $0x134] sm:$0xff]
      %v545 = vld [vmem:[%s483 + $0x13c] sm:$0xff]
      %v546 = vld [vmem:[%s483 + $0x144] sm:$0xff]
      %v547 = vld [vmem:[%s483 + $0x14c] sm:$0xf]
      %v548 = vld [vmem:[%s483 + $0x150] sm:$0xff]
      %v549 = vld [vmem:[%s483 + $0x158] sm:$0xff]
      %v550 = vld [vmem:[%s483 + $0x160] sm:$0xff]
      %v551 = vld [vmem:[%s483 + $0x168] sm:$0xf]
      %v552 = vld [vmem:[%s483 + $0x16c] sm:$0xff]
      %v553 = vld [vmem:[%s483 + $0x174] sm:$0xff]
      %v554 = vld [vmem:[%s483 + $0x17c] sm:$0xff]
      %v555 = vld [vmem:[%s483 + $0x184] sm:$0xf]
      %v556 = vld [vmem:[%s483 + $0x188] sm:$0xff]
      %v557 = vld [vmem:[%s483 + $0x190] sm:$0xff]
      %v558 = vld [vmem:[%s483 + $0x198] sm:$0xff]
      %v559 = vld [vmem:[%s483 + $0x1a0] sm:$0xf]
      %v560 = vld [vmem:[%s483 + $0x1a4] sm:$0xff]
      %v561 = vld [vmem:[%s483 + $0x1ac] sm:$0xff]
      %v562 = vld [vmem:[%s483 + $0x1b4] sm:$0xff]
      %v563 = vld [vmem:[%s483 + $0x1bc] sm:$0xf]
      %v564 = vld [vmem:[%s489] sm:$0xff]
      %v565 = vld [vmem:[%s489 + $0x8] sm:$0xff]
      %v566 = vld [vmem:[%s489 + $0x10] sm:$0xff]
      %v567 = vld [vmem:[%s489 + $0x18] sm:$0xff]
      %v568 = vld [vmem:[%s489 + $0x20] sm:$0xff]
      %v569 = vld [vmem:[%s489 + $0x28] sm:$0xff]
      %v570 = vld [vmem:[%s489 + $0x30] sm:$0xff]
      %v571 = vld [vmem:[%s489 + $0x38] sm:$0xff]
      %v572 = vld [vmem:[%s489 + $0x40] sm:$0xff]
      %v573 = vld [vmem:[%s489 + $0x48] sm:$0xff]
      %v574 = vld [vmem:[%s489 + $0x50] sm:$0xff]
      %v575 = vld [vmem:[%s489 + $0x58] sm:$0xff]
      %v576 = vld [vmem:[%s489 + $0x60] sm:$0xff]
      %v577 = vld [vmem:[%s489 + $0x68] sm:$0xff]
      %v578 = vld [vmem:[%s489 + $0x70] sm:$0xff]
      %v579 = vld [vmem:[%s489 + $0x78] sm:$0xff]
      %v580 = vld [vmem:[%s2] sm:$0xf]
      %v581 = vld [vmem:[%s2 + $0x4] sm:$0xf]
      %v582 = vld [vmem:[%s2 + $0x8] sm:$0xf]
      %v583 = vld [vmem:[%s2 + $0xc] sm:$0xf]
      %v584 = vld [vmem:[%s2 + $0x10] sm:$0xf]
      %v585 = vld [vmem:[%s2 + $0x14] sm:$0xf]
      %v586 = vld [vmem:[%s2 + $0x18] sm:$0xf]
      %v587 = vld [vmem:[%s2 + $0x1c] sm:$0xf]
      %v588 = vld [vmem:[%s2 + $0x20] sm:$0xf]
      %v589 = vld [vmem:[%s2 + $0x24] sm:$0xf]
      %v590 = vld [vmem:[%s2 + $0x28] sm:$0xf]
      %v591 = vld [vmem:[%s2 + $0x2c] sm:$0xf]
      %v592 = vld [vmem:[%s2 + $0x30] sm:$0xf]
      %v593 = vld [vmem:[%s2 + $0x34] sm:$0xf]
      %v594 = vld [vmem:[%s2 + $0x38] sm:$0xf]
      %v595 = vld [vmem:[%s2 + $0x3c] sm:$0xf]
      %v596 = vld [vmem:[%s2 + $0x40] sm:$0xf]
      %v597 = vld [vmem:[%s2 + $0x44] sm:$0xf]
      %v598 = vld [vmem:[%s2 + $0x48] sm:$0xf]
      %v599 = vld [vmem:[%s2 + $0x4c] sm:$0xf]
      %v600 = vld [vmem:[%s2 + $0x50] sm:$0xf]
      %v601 = vld [vmem:[%s2 + $0x54] sm:$0xf]
      %v602 = vld [vmem:[%s2 + $0x58] sm:$0xf]
      %v603 = vld [vmem:[%s2 + $0x5c] sm:$0xf]
      %v604 = vld [vmem:[%s2 + $0x60] sm:$0xf]
      %v605 = vld [vmem:[%s2 + $0x64] sm:$0xf]
      %v606 = vld [vmem:[%s2 + $0x68] sm:$0xf]
      %v607 = vld [vmem:[%s2 + $0x6c] sm:$0xf]
      %v608 = vld [vmem:[%s2 + $0x70] sm:$0xf]
      %v609 = vld [vmem:[%s2 + $0x74] sm:$0xf]
      %v610 = vld [vmem:[%s2 + $0x78] sm:$0xf]
      %v611 = vld [vmem:[%s2 + $0x7c] sm:$0xf]
      %v612 = vld [vmem:[%s2 + $0x80] sm:$0xf]
      %v613 = vld [vmem:[%s2 + $0x84] sm:$0xf]
      %v614 = vld [vmem:[%s2 + $0x88] sm:$0xf]
      %v615 = vld [vmem:[%s2 + $0x8c] sm:$0xf]
      %v616 = vld [vmem:[%s2 + $0x90] sm:$0xf]
      %v617 = vld [vmem:[%s2 + $0x94] sm:$0xf]
      %v618 = vld [vmem:[%s2 + $0x98] sm:$0xf]
      %v619 = vld [vmem:[%s2 + $0x9c] sm:$0xf]
      %v620 = vld [vmem:[%s2 + $0xa0] sm:$0xf]
      %v621 = vld [vmem:[%s2 + $0xa4] sm:$0xf]
      %v622 = vld [vmem:[%s2 + $0xa8] sm:$0xf]
      %v623 = vld [vmem:[%s2 + $0xac] sm:$0xf]
      %v624 = vld [vmem:[%s2 + $0xb0] sm:$0xf]
      %v625 = vld [vmem:[%s2 + $0xb4] sm:$0xf]
      %v626 = vld [vmem:[%s2 + $0xb8] sm:$0xf]
      %v627 = vld [vmem:[%s2 + $0xbc] sm:$0xf]
      %v628 = vld [vmem:[%s2 + $0xc0] sm:$0xf]
      %v629 = vld [vmem:[%s2 + $0xc4] sm:$0xf]
      %v630 = vld [vmem:[%s2 + $0xc8] sm:$0xf]
      %v631 = vld [vmem:[%s2 + $0xcc] sm:$0xf]
      %v632 = vld [vmem:[%s2 + $0xd0] sm:$0xf]
      %v633 = vld [vmem:[%s2 + $0xd4] sm:$0xf]
      %v634 = vld [vmem:[%s2 + $0xd8] sm:$0xf]
      %v635 = vld [vmem:[%s2 + $0xdc] sm:$0xf]
      %v636 = vld [vmem:[%s2 + $0xe0] sm:$0xf]
      %v637 = vld [vmem:[%s2 + $0xe4] sm:$0xf]
      %v638 = vld [vmem:[%s2 + $0xe8] sm:$0xf]
      %v639 = vld [vmem:[%s2 + $0xec] sm:$0xf]
      %v640 = vld [vmem:[%s2 + $0xf0] sm:$0xf]
      %v641 = vld [vmem:[%s2 + $0xf4] sm:$0xf]
      %v642 = vld [vmem:[%s2 + $0xf8] sm:$0xf]
      %v643 = vld [vmem:[%s2 + $0xfc] sm:$0xf]
      %v644 = vld [vmem:[%s2 + $0x100] sm:$0xf]
      %v645 = vld [vmem:[%s2 + $0x104] sm:$0xf]
      %v646 = vld [vmem:[%s2 + $0x108] sm:$0xf]
      %v647 = vld [vmem:[%s2 + $0x10c] sm:$0xf]
      %v648 = vld [vmem:[%s2 + $0x110] sm:$0xf]
      %v649 = vld [vmem:[%s2 + $0x114] sm:$0xf]
      %v650 = vld [vmem:[%s2 + $0x118] sm:$0xf]
      %v651 = vld [vmem:[%s2 + $0x11c] sm:$0xf]
      %v652 = vld [vmem:[%s2 + $0x120] sm:$0xf]
      %v653 = vld [vmem:[%s2 + $0x124] sm:$0xf]
      %v654 = vld [vmem:[%s2 + $0x128] sm:$0xf]
      %v655 = vld [vmem:[%s2 + $0x12c] sm:$0xf]
      %v656 = vld [vmem:[%s2 + $0x130] sm:$0xf]
      %v657 = vld [vmem:[%s2 + $0x134] sm:$0xf]
      %v658 = vld [vmem:[%s2 + $0x138] sm:$0xf]
      %v659 = vld [vmem:[%s2 + $0x13c] sm:$0xf]
      %v660 = vld [vmem:[%s2 + $0x140] sm:$0xf]
      %v661 = vld [vmem:[%s2 + $0x144] sm:$0xf]
      %v662 = vld [vmem:[%s2 + $0x148] sm:$0xf]
      %v663 = vld [vmem:[%s2 + $0x14c] sm:$0xf]
      %v664 = vld [vmem:[%s2 + $0x150] sm:$0xf]
      %v665 = vld [vmem:[%s2 + $0x154] sm:$0xf]
      %v666 = vld [vmem:[%s2 + $0x158] sm:$0xf]
      %v667 = vld [vmem:[%s2 + $0x15c] sm:$0xf]
      %v668 = vld [vmem:[%s2 + $0x160] sm:$0xf]
      %v669 = vld [vmem:[%s2 + $0x164] sm:$0xf]
      %v670 = vld [vmem:[%s2 + $0x168] sm:$0xf]
      %v671 = vld [vmem:[%s2 + $0x16c] sm:$0xf]
      %v672 = vld [vmem:[%s2 + $0x170] sm:$0xf]
      %v673 = vld [vmem:[%s2 + $0x174] sm:$0xf]
      %v674 = vld [vmem:[%s2 + $0x178] sm:$0xf]
      %v675 = vld [vmem:[%s2 + $0x17c] sm:$0xf]
      %v676 = vld [vmem:[%s2 + $0x180] sm:$0xf]
      %v677 = vld [vmem:[%s2 + $0x184] sm:$0xf]
      %v678 = vld [vmem:[%s3] sm:$0x1]
      %v680 = vlaneseq
      %v681 = vshrl.u32 %v680, 7
      %v682 = vsub.s32 0, %v681
      %v683 = vrot.slane %v678, %v682
      %v749 = vunpack.c.l.b16 %v500
      %v750 = vunpack.c.h.b16 %v500
      %v751 = vunpack.c.l.b16 %v501
      %v752 = vunpack.c.h.b16 %v501
      %v753 = vunpack.c.l.b16 %v502
      %v754 = vunpack.c.h.b16 %v502
      %v755 = vunpack.c.l.b16 %v503
      %v756 = vunpack.c.l.b16 %v504
      %v757 = vunpack.c.h.b16 %v504
      %v758 = vunpack.c.l.b16 %v505
      %v759 = vunpack.c.h.b16 %v505
      %v760 = vunpack.c.l.b16 %v506
      %v761 = vunpack.c.h.b16 %v506
      %v762 = vunpack.c.l.b16 %v507
      %v763 = vunpack.c.l.b16 %v508
      %v764 = vunpack.c.h.b16 %v508
      %v765 = vunpack.c.l.b16 %v509
      %v766 = vunpack.c.h.b16 %v509
      %v767 = vunpack.c.l.b16 %v510
      %v768 = vunpack.c.h.b16 %v510
      %v769 = vunpack.c.l.b16 %v511
      %v770 = vunpack.c.l.b16 %v512
      %v771 = vunpack.c.h.b16 %v512
      %v772 = vunpack.c.l.b16 %v513
      %v773 = vunpack.c.h.b16 %v513
      %v774 = vunpack.c.l.b16 %v514
      %v775 = vunpack.c.h.b16 %v514
      %v776 = vunpack.c.l.b16 %v515
      %v777 = vunpack.c.l.b16 %v516
      %v778 = vunpack.c.h.b16 %v516
      %v779 = vunpack.c.l.b16 %v517
      %v780 = vunpack.c.h.b16 %v517
      %v781 = vunpack.c.l.b16 %v518
      %v782 = vunpack.c.h.b16 %v518
      %v783 = vunpack.c.l.b16 %v519
      %v784 = vunpack.c.l.b16 %v520
      %v785 = vunpack.c.h.b16 %v520
      %v786 = vunpack.c.l.b16 %v521
      %v787 = vunpack.c.h.b16 %v521
      %v788 = vunpack.c.l.b16 %v522
      %v789 = vunpack.c.h.b16 %v522
      %v790 = vunpack.c.l.b16 %v523
      %v791 = vunpack.c.l.b16 %v524
      %v792 = vunpack.c.h.b16 %v524
      %v793 = vunpack.c.l.b16 %v525
      %v794 = vunpack.c.h.b16 %v525
      %v795 = vunpack.c.l.b16 %v526
      %v796 = vunpack.c.h.b16 %v526
      %v797 = vunpack.c.l.b16 %v527
      %v798 = vunpack.c.l.b16 %v528
      %v799 = vunpack.c.h.b16 %v528
      %v800 = vunpack.c.l.b16 %v529
      %v801 = vunpack.c.h.b16 %v529
      %v802 = vunpack.c.l.b16 %v530
      %v803 = vunpack.c.h.b16 %v530
      %v804 = vunpack.c.l.b16 %v531
      %v805 = vunpack.c.l.b16 %v532
      %v806 = vunpack.c.h.b16 %v532
      %v807 = vunpack.c.l.b16 %v533
      %v808 = vunpack.c.h.b16 %v533
      %v809 = vunpack.c.l.b16 %v534
      %v810 = vunpack.c.h.b16 %v534
      %v811 = vunpack.c.l.b16 %v535
      %v812 = vunpack.c.l.b16 %v536
      %v813 = vunpack.c.h.b16 %v536
      %v814 = vunpack.c.l.b16 %v537
      %v815 = vunpack.c.h.b16 %v537
      %v816 = vunpack.c.l.b16 %v538
      %v817 = vunpack.c.h.b16 %v538
      %v818 = vunpack.c.l.b16 %v539
      %v819 = vunpack.c.l.b16 %v540
      %v820 = vunpack.c.h.b16 %v540
      %v821 = vunpack.c.l.b16 %v541
      %v822 = vunpack.c.h.b16 %v541
      %v823 = vunpack.c.l.b16 %v542
      %v824 = vunpack.c.h.b16 %v542
      %v825 = vunpack.c.l.b16 %v543
      %v826 = vunpack.c.l.b16 %v544
      %v827 = vunpack.c.h.b16 %v544
      %v828 = vunpack.c.l.b16 %v545
      %v829 = vunpack.c.h.b16 %v545
      %v830 = vunpack.c.l.b16 %v546
      %v831 = vunpack.c.h.b16 %v546
      %v832 = vunpack.c.l.b16 %v547
      %v833 = vunpack.c.l.b16 %v548
      %v834 = vunpack.c.h.b16 %v548
      %v835 = vunpack.c.l.b16 %v549
      %v836 = vunpack.c.h.b16 %v549
      %v837 = vunpack.c.l.b16 %v550
      %v838 = vunpack.c.h.b16 %v550
      %v839 = vunpack.c.l.b16 %v551
      %v840 = vunpack.c.l.b16 %v552
      %v841 = vunpack.c.h.b16 %v552
      %v842 = vunpack.c.l.b16 %v553
      %v843 = vunpack.c.h.b16 %v553
      %v844 = vunpack.c.l.b16 %v554
      %v845 = vunpack.c.h.b16 %v554
      %v846 = vunpack.c.l.b16 %v555
      %v847 = vunpack.c.l.b16 %v556
      %v848 = vunpack.c.h.b16 %v556
      %v849 = vunpack.c.l.b16 %v557
      %v850 = vunpack.c.h.b16 %v557
      %v851 = vunpack.c.l.b16 %v558
      %v852 = vunpack.c.h.b16 %v558
      %v853 = vunpack.c.l.b16 %v559
      %v854 = vunpack.c.l.b16 %v560
      %v855 = vunpack.c.h.b16 %v560
      %v856 = vunpack.c.l.b16 %v561
      %v857 = vunpack.c.h.b16 %v561
      %v858 = vunpack.c.l.b16 %v562
      %v859 = vunpack.c.h.b16 %v562
      %v860 = vunpack.c.l.b16 %v563
      %v861 = vpack.c.b16 %v756, %v749
      %v862 = vpack.c.b16 %v757, %v750
      %v863 = vpack.c.b16 %v758, %v751
      %v864 = vpack.c.b16 %v759, %v752
      %v865 = vpack.c.b16 %v760, %v753
      %v866 = vpack.c.b16 %v761, %v754
      %v867 = vpack.c.b16 %v762, %v755
      %v868 = vpack.c.b16 %v770, %v763
      %v869 = vpack.c.b16 %v771, %v764
      %v870 = vpack.c.b16 %v772, %v765
      %v871 = vpack.c.b16 %v773, %v766
      %v872 = vpack.c.b16 %v774, %v767
      %v873 = vpack.c.b16 %v775, %v768
      %v874 = vpack.c.b16 %v776, %v769
      %v875 = vpack.c.b16 %v784, %v777
      %v876 = vpack.c.b16 %v785, %v778
      %v877 = vpack.c.b16 %v786, %v779
      %v878 = vpack.c.b16 %v787, %v780
      %v879 = vpack.c.b16 %v788, %v781
      %v880 = vpack.c.b16 %v789, %v782
      %v881 = vpack.c.b16 %v790, %v783
      %v882 = vpack.c.b16 %v798, %v791
      %v883 = vpack.c.b16 %v799, %v792
      %v884 = vpack.c.b16 %v800, %v793
      %v885 = vpack.c.b16 %v801, %v794
      %v886 = vpack.c.b16 %v802, %v795
      %v887 = vpack.c.b16 %v803, %v796
      %v888 = vpack.c.b16 %v804, %v797
      %v889 = vpack.c.b16 %v812, %v805
      %v890 = vpack.c.b16 %v813, %v806
      %v891 = vpack.c.b16 %v814, %v807
      %v892 = vpack.c.b16 %v815, %v808
      %v893 = vpack.c.b16 %v816, %v809
      %v894 = vpack.c.b16 %v817, %v810
      %v895 = vpack.c.b16 %v818, %v811
      %v896 = vpack.c.b16 %v826, %v819
      %v897 = vpack.c.b16 %v827, %v820
      %v898 = vpack.c.b16 %v828, %v821
      %v899 = vpack.c.b16 %v829, %v822
      %v900 = vpack.c.b16 %v830, %v823
      %v901 = vpack.c.b16 %v831, %v824
      %v902 = vpack.c.b16 %v832, %v825
      %v903 = vpack.c.b16 %v840, %v833
      %v904 = vpack.c.b16 %v841, %v834
      %v905 = vpack.c.b16 %v842, %v835
      %v906 = vpack.c.b16 %v843, %v836
      %v907 = vpack.c.b16 %v844, %v837
      %v908 = vpack.c.b16 %v845, %v838
      %v909 = vpack.c.b16 %v846, %v839
      %v910 = vpack.c.b16 %v854, %v847
      %v911 = vpack.c.b16 %v855, %v848
      %v912 = vpack.c.b16 %v856, %v849
      %v913 = vpack.c.b16 %v857, %v850
      %v914 = vpack.c.b16 %v858, %v851
      %v915 = vpack.c.b16 %v859, %v852
      %v916 = vpack.c.b16 %v860, %v853
      %v1063 = vunpack.c.l.b16 %v580
      %v1064 = vunpack.c.l.b16 %v581
      %v1065 = vunpack.c.l.b16 %v582
      %v1066 = vunpack.c.l.b16 %v583
      %v1067 = vunpack.c.l.b16 %v584
      %v1068 = vunpack.c.l.b16 %v585
      %v1069 = vunpack.c.l.b16 %v586
      %v1070 = vunpack.c.l.b16 %v587
      %v1071 = vunpack.c.l.b16 %v588
      %v1072 = vunpack.c.l.b16 %v589
      %v1073 = vunpack.c.l.b16 %v590
      %v1074 = vunpack.c.l.b16 %v591
      %v1075 = vunpack.c.l.b16 %v592
      %v1076 = vunpack.c.l.b16 %v593
      %v1077 = vunpack.c.l.b16 %v594
      %v1078 = vunpack.c.l.b16 %v595
      %v1079 = vunpack.c.l.b16 %v596
      %v1080 = vunpack.c.l.b16 %v597
      %v1081 = vunpack.c.l.b16 %v598
      %v1082 = vunpack.c.l.b16 %v599
      %v1083 = vunpack.c.l.b16 %v600
      %v1084 = vunpack.c.l.b16 %v601
      %v1085 = vunpack.c.l.b16 %v602
      %v1086 = vunpack.c.l.b16 %v603
      %v1087 = vunpack.c.l.b16 %v604
      %v1088 = vunpack.c.l.b16 %v605
      %v1089 = vunpack.c.l.b16 %v606
      %v1090 = vunpack.c.l.b16 %v607
      %v1091 = vunpack.c.l.b16 %v608
      %v1092 = vunpack.c.l.b16 %v609
      %v1093 = vunpack.c.l.b16 %v610
      %v1094 = vunpack.c.l.b16 %v611
      %v1095 = vunpack.c.l.b16 %v612
      %v1096 = vunpack.c.l.b16 %v613
      %v1097 = vunpack.c.l.b16 %v614
      %v1098 = vunpack.c.l.b16 %v615
      %v1099 = vunpack.c.l.b16 %v616
      %v1100 = vunpack.c.l.b16 %v617
      %v1101 = vunpack.c.l.b16 %v618
      %v1102 = vunpack.c.l.b16 %v619
      %v1103 = vunpack.c.l.b16 %v620
      %v1104 = vunpack.c.l.b16 %v621
      %v1105 = vunpack.c.l.b16 %v622
      %v1106 = vunpack.c.l.b16 %v623
      %v1107 = vunpack.c.l.b16 %v624
      %v1108 = vunpack.c.l.b16 %v625
      %v1109 = vunpack.c.l.b16 %v626
      %v1110 = vunpack.c.l.b16 %v627
      %v1111 = vunpack.c.l.b16 %v628
      %v1112 = vunpack.c.l.b16 %v629
      %v1113 = vunpack.c.l.b16 %v630
      %v1114 = vunpack.c.l.b16 %v631
      %v1115 = vunpack.c.l.b16 %v632
      %v1116 = vunpack.c.l.b16 %v633
      %v1117 = vunpack.c.l.b16 %v634
      %v1118 = vunpack.c.l.b16 %v635
      %v1119 = vunpack.c.l.b16 %v636
      %v1120 = vunpack.c.l.b16 %v637
      %v1121 = vunpack.c.l.b16 %v638
      %v1122 = vunpack.c.l.b16 %v639
      %v1123 = vunpack.c.l.b16 %v640
      %v1124 = vunpack.c.l.b16 %v641
      %v1125 = vunpack.c.l.b16 %v642
      %v1126 = vunpack.c.l.b16 %v643
      %v1127 = vunpack.c.l.b16 %v644
      %v1128 = vunpack.c.l.b16 %v645
      %v1129 = vunpack.c.l.b16 %v646
      %v1130 = vunpack.c.l.b16 %v647
      %v1131 = vunpack.c.l.b16 %v648
      %v1132 = vunpack.c.l.b16 %v649
      %v1133 = vunpack.c.l.b16 %v650
      %v1134 = vunpack.c.l.b16 %v651
      %v1135 = vunpack.c.l.b16 %v652
      %v1136 = vunpack.c.l.b16 %v653
      %v1137 = vunpack.c.l.b16 %v654
      %v1138 = vunpack.c.l.b16 %v655
      %v1139 = vunpack.c.l.b16 %v656
      %v1140 = vunpack.c.l.b16 %v657
      %v1141 = vunpack.c.l.b16 %v658
      %v1142 = vunpack.c.l.b16 %v659
      %v1143 = vunpack.c.l.b16 %v660
      %v1144 = vunpack.c.l.b16 %v661
      %v1145 = vunpack.c.l.b16 %v662
      %v1146 = vunpack.c.l.b16 %v663
      %v1147 = vunpack.c.l.b16 %v664
      %v1148 = vunpack.c.l.b16 %v665
      %v1149 = vunpack.c.l.b16 %v666
      %v1150 = vunpack.c.l.b16 %v667
      %v1151 = vunpack.c.l.b16 %v668
      %v1152 = vunpack.c.l.b16 %v669
      %v1153 = vunpack.c.l.b16 %v670
      %v1154 = vunpack.c.l.b16 %v671
      %v1155 = vunpack.c.l.b16 %v672
      %v1156 = vunpack.c.l.b16 %v673
      %v1157 = vunpack.c.l.b16 %v674
      %v1158 = vunpack.c.l.b16 %v675
      %v1159 = vunpack.c.l.b16 %v676
      %v1160 = vunpack.c.l.b16 %v677
      %v1161 = vpack.c.b16 %v1064, %v1063
      %v1162 = vpack.c.b16 %v1066, %v1065
      %v1163 = vpack.c.b16 %v1068, %v1067
      %v1164 = vpack.c.b16 %v1070, %v1069
      %v1165 = vpack.c.b16 %v1072, %v1071
      %v1166 = vpack.c.b16 %v1074, %v1073
      %v1167 = vpack.c.b16 %v1076, %v1075
      %v1168 = vpack.c.b16 %v1078, %v1077
      %v1169 = vpack.c.b16 %v1080, %v1079
      %v1170 = vpack.c.b16 %v1082, %v1081
      %v1171 = vpack.c.b16 %v1084, %v1083
      %v1172 = vpack.c.b16 %v1086, %v1085
      %v1173 = vpack.c.b16 %v1088, %v1087
      %v1174 = vpack.c.b16 %v1090, %v1089
      %v1175 = vpack.c.b16 %v1092, %v1091
      %v1176 = vpack.c.b16 %v1094, %v1093
      %v1177 = vpack.c.b16 %v1096, %v1095
      %v1178 = vpack.c.b16 %v1098, %v1097
      %v1179 = vpack.c.b16 %v1100, %v1099
      %v1180 = vpack.c.b16 %v1102, %v1101
      %v1181 = vpack.c.b16 %v1104, %v1103
      %v1182 = vpack.c.b16 %v1106, %v1105
      %v1183 = vpack.c.b16 %v1108, %v1107
      %v1184 = vpack.c.b16 %v1110, %v1109
      %v1185 = vpack.c.b16 %v1112, %v1111
      %v1186 = vpack.c.b16 %v1114, %v1113
      %v1187 = vpack.c.b16 %v1116, %v1115
      %v1188 = vpack.c.b16 %v1118, %v1117
      %v1189 = vpack.c.b16 %v1120, %v1119
      %v1190 = vpack.c.b16 %v1122, %v1121
      %v1191 = vpack.c.b16 %v1124, %v1123
      %v1192 = vpack.c.b16 %v1126, %v1125
      %v1193 = vpack.c.b16 %v1128, %v1127
      %v1194 = vpack.c.b16 %v1130, %v1129
      %v1195 = vpack.c.b16 %v1132, %v1131
      %v1196 = vpack.c.b16 %v1134, %v1133
      %v1197 = vpack.c.b16 %v1136, %v1135
      %v1198 = vpack.c.b16 %v1138, %v1137
      %v1199 = vpack.c.b16 %v1140, %v1139
      %v1200 = vpack.c.b16 %v1142, %v1141
      %v1201 = vpack.c.b16 %v1144, %v1143
      %v1202 = vpack.c.b16 %v1146, %v1145
      %v1203 = vpack.c.b16 %v1148, %v1147
      %v1204 = vpack.c.b16 %v1150, %v1149
      %v1205 = vpack.c.b16 %v1152, %v1151
      %v1206 = vpack.c.b16 %v1154, %v1153
      %v1207 = vpack.c.b16 %v1156, %v1155
      %v1208 = vpack.c.b16 %v1158, %v1157
      %v1209 = vpack.c.b16 %v1160, %v1159
      %vm1259 = vcmask 130048
      %v1261 = vsel %vm1259, %v867, 0
      %v1264 = vsel %vm1259, %v874, 0
      %v1267 = vsel %vm1259, %v881, 0
      %v1270 = vsel %vm1259, %v888, 0
      %v1273 = vsel %vm1259, %v895, 0
      %v1276 = vsel %vm1259, %v902, 0
      %v1279 = vsel %vm1259, %v909, 0
      %v1282 = vsel %vm1259, %v916, 0
      %1284 = vmatprep.subr.bf16.mxu0 0
      %1285 = vmatpush1.bf16.msra.mxu0 %v1161
      %1286 = vmatprep.subr.bf16.mxu0 0
      %1287 = vmatpush1.bf16.msra.mxu0 %v1162
      %1288 = vmatprep.subr.bf16.mxu0 0
      %1289 = vmatpush1.bf16.msra.mxu0 %v1163
      %1290 = vmatprep.subr.bf16.mxu0 0
      %1291 = vmatpush1.bf16.msra.mxu0 %v1164
      %1292 = vmatprep.subr.bf16.mxu0 0
      %1293 = vmatpush1.bf16.msra.mxu0 %v1165
      %1294 = vmatprep.subr.bf16.mxu0 0
      %1295 = vmatpush1.bf16.msra.mxu0 %v1166
      %1296 = vmatprep.subr.bf16.mxu0 0
      %1297 = vmatpush1.bf16.msra.mxu0 %v1167
      %1298 = vmatprep.subr.bf16.mxu0 0
      %1299 = vmatpush1.bf16.msra.mxu0 %v1168
      %1300 = vmatprep.subr.bf16.mxu0 0
      %1301 = vmatpush1.bf16.msra.mxu0 %v1169
      %1302 = vmatprep.subr.bf16.mxu0 0
      %1303 = vmatpush1.bf16.msra.mxu0 %v1170
      %1304 = vmatprep.subr.bf16.mxu0 0
      %1305 = vmatpush1.bf16.msra.mxu0 %v1171
      %1306 = vmatprep.subr.bf16.mxu0 0
      %1307 = vmatpush1.bf16.msra.mxu0 %v1172
      %1308 = vmatprep.subr.bf16.mxu0 0
      %1309 = vmatpush1.bf16.msra.mxu0 %v1173
      %1310 = vmatprep.subr.bf16.mxu0 0
      %1311 = vmatpush1.bf16.msra.mxu0 %v1174
      %1312 = vmatprep.subr.bf16.mxu0 0
      %1313 = vmatpush1.bf16.msra.mxu0 %v1175
      %1314 = vmatprep.subr.bf16.mxu0 0
      %1315 = vmatpush1.bf16.msra.mxu0 %v1176
      %1316 = vmatprep.mubr.bf16.mxu0 %v862
      %1317 = vmatmul.mubr.bf16.gmra.mrb[0].mxu0 %v861
      %v1318 = vpop.f32.mrb[0].mxu0
      %v1319 = vadd.f32 %v683, %v1318
      %v1320 = vpop.f32.mrb[0].mxu0
      %v1321 = vpop.f32.mrb[0].mxu0
      %v1322 = vadd.f32 %v683, %v1321
      %v1323 = vpop.f32.mrb[0].mxu0
      %1324 = vmatprep.mubr.bf16.mxu0 %v869
      %1325 = vmatmul.mubr.bf16.gmra.mrb[0].mxu0 %v868
      %v1326 = vpop.f32.mrb[0].mxu0
      %v1327 = vadd.f32 %v683, %v1326
      %v1328 = vpop.f32.mrb[0].mxu0
      %v1329 = vpop.f32.mrb[0].mxu0
      %v1330 = vadd.f32 %v683, %v1329
      %v1331 = vpop.f32.mrb[0].mxu0
      %1332 = vmatprep.mubr.bf16.mxu0 %v876
      %1333 = vmatmul.mubr.bf16.gmra.mrb[0].mxu0 %v875
      %v1334 = vpop.f32.mrb[0].mxu0
      %v1335 = vadd.f32 %v683, %v1334
      %v1336 = vpop.f32.mrb[0].mxu0
      %v1337 = vpop.f32.mrb[0].mxu0
      %v1338 = vadd.f32 %v683, %v1337
      %v1339 = vpop.f32.mrb[0].mxu0
      %1340 = vmatprep.mubr.bf16.mxu0 %v883
      %1341 = vmatmul.mubr.bf16.gmra.mrb[0].mxu0 %v882
      %v1342 = vpop.f32.mrb[0].mxu0
      %v1343 = vadd.f32 %v683, %v1342
      %v1344 = vpop.f32.mrb[0].mxu0
      %v1345 = vpop.f32.mrb[0].mxu0
      %v1346 = vadd.f32 %v683, %v1345
      %v1347 = vpop.f32.mrb[0].mxu0
      %1348 = vmatprep.mubr.bf16.mxu0 %v890
      %1349 = vmatmul.mubr.bf16.gmra.mrb[0].mxu0 %v889
      %v1350 = vpop.f32.mrb[0].mxu0
      %v1351 = vadd.f32 %v683, %v1350
      %v1352 = vpop.f32.mrb[0].mxu0
      %v1353 = vpop.f32.mrb[0].mxu0
      %v1354 = vadd.f32 %v683, %v1353
      %v1355 = vpop.f32.mrb[0].mxu0
      %1356 = vmatprep.mubr.bf16.mxu0 %v897
      %1357 = vmatmul.mubr.bf16.gmra.mrb[0].mxu0 %v896
      %v1358 = vpop.f32.mrb[0].mxu0
      %v1359 = vadd.f32 %v683, %v1358
      %v1360 = vpop.f32.mrb[0].mxu0
      %v1361 = vpop.f32.mrb[0].mxu0
      %v1362 = vadd.f32 %v683, %v1361
      %v1363 = vpop.f32.mrb[0].mxu0
      %1364 = vmatprep.mubr.bf16.mxu0 %v904
      %1365 = vmatmul.mubr.bf16.gmra.mrb[0].mxu0 %v903
      %v1366 = vpop.f32.mrb[0].mxu0
      %v1367 = vadd.f32 %v683, %v1366
      %v1368 = vpop.f32.mrb[0].mxu0
      %v1369 = vpop.f32.mrb[0].mxu0
      %v1370 = vadd.f32 %v683, %v1369
      %v1371 = vpop.f32.mrb[0].mxu0
      %1372 = vmatprep.mubr.bf16.mxu0 %v911
      %1373 = vmatmul.mubr.bf16.gmra.mrb[0].mxu0 %v910
      %v1374 = vpop.f32.mrb[0].mxu0
      %v1375 = vadd.f32 %v683, %v1374
      %v1376 = vpop.f32.mrb[0].mxu0
      %v1377 = vpop.f32.mrb[0].mxu0
      %v1378 = vadd.f32 %v683, %v1377
      %v1379 = vpop.f32.mrb[0].mxu0
      %1380 = vdwg.mxu0
      %1381 = vmatprep.subr.bf16.mxu0 0
      %1382 = vmatpush1.bf16.msra.mxu0 %v1177
      %1383 = vmatprep.subr.bf16.mxu0 0
      %1384 = vmatpush1.bf16.msra.mxu0 %v1178
      %1385 = vmatprep.subr.bf16.mxu0 0
      %1386 = vmatpush1.bf16.msra.mxu0 %v1179
      %1387 = vmatprep.subr.bf16.mxu0 0
      %1388 = vmatpush1.bf16.msra.mxu0 %v1180
      %1389 = vmatprep.subr.bf16.mxu0 0
      %1390 = vmatpush1.bf16.msra.mxu0 %v1181
      %1391 = vmatprep.subr.bf16.mxu0 0
      %1392 = vmatpush1.bf16.msra.mxu0 %v1182
      %1393 = vmatprep.subr.bf16.mxu0 0
      %1394 = vmatpush1.bf16.msra.mxu0 %v1183
      %1395 = vmatprep.subr.bf16.mxu0 0
      %1396 = vmatpush1.bf16.msra.mxu0 %v1184
      %1397 = vmatprep.subr.bf16.mxu0 0
      %1398 = vmatpush1.bf16.msra.mxu0 %v1185
      %1399 = vmatprep.subr.bf16.mxu0 0
      %1400 = vmatpush1.bf16.msra.mxu0 %v1186
      %1401 = vmatprep.subr.bf16.mxu0 0
      %1402 = vmatpush1.bf16.msra.mxu0 %v1187
      %1403 = vmatprep.subr.bf16.mxu0 0
      %1404 = vmatpush1.bf16.msra.mxu0 %v1188
      %1405 = vmatprep.subr.bf16.mxu0 0
      %1406 = vmatpush1.bf16.msra.mxu0 %v1189
      %1407 = vmatprep.subr.bf16.mxu0 0
      %1408 = vmatpush1.bf16.msra.mxu0 %v1190
      %1409 = vmatprep.subr.bf16.mxu0 0
      %1410 = vmatpush1.bf16.msra.mxu0 %v1191
      %1411 = vmatprep.subr.bf16.mxu0 0
      %1412 = vmatpush1.bf16.msra.mxu0 %v1192
      %1413 = vmatprep.mubr.bf16.mxu0 %v864
      %1414 = vmatmul.mubr.bf16.gmra.mrb[0].mxu0 %v863
      %v1415 = vpop.f32.mrb[0].mxu0
      %v1416 = vadd.f32 %v1319, %v1415
      %v1417 = vpop.f32.mrb[0].mxu0
      %v1418 = vpop.f32.mrb[0].mxu0
      %v1419 = vadd.f32 %v1322, %v1418
      %v1420 = vpop.f32.mrb[0].mxu0
      %1421 = vmatprep.mubr.bf16.mxu0 %v871
      %1422 = vmatmul.mubr.bf16.gmra.mrb[0].mxu0 %v870
      %v1423 = vpop.f32.mrb[0].mxu0
      %v1424 = vadd.f32 %v1327, %v1423
      %v1425 = vpop.f32.mrb[0].mxu0
      %v1426 = vpop.f32.mrb[0].mxu0
      %v1427 = vadd.f32 %v1330, %v1426
      %v1428 = vpop.f32.mrb[0].mxu0
      %1429 = vmatprep.mubr.bf16.mxu0 %v878
      %1430 = vmatmul.mubr.bf16.gmra.mrb[0].mxu0 %v877
      %v1431 = vpop.f32.mrb[0].mxu0
      %v1432 = vadd.f32 %v1335, %v1431
      %v1433 = vpop.f32.mrb[0].mxu0
      %v1434 = vpop.f32.mrb[0].mxu0
      %v1435 = vadd.f32 %v1338, %v1434
      %v1436 = vpop.f32.mrb[0].mxu0
      %1437 = vmatprep.mubr.bf16.mxu0 %v885
      %1438 = vmatmul.mubr.bf16.gmra.mrb[0].mxu0 %v884
      %v1439 = vpop.f32.mrb[0].mxu0
      %v1440 = vadd.f32 %v1343, %v1439
      %v1441 = vpop.f32.mrb[0].mxu0
      %v1442 = vpop.f32.mrb[0].mxu0
      %v1443 = vadd.f32 %v1346, %v1442
      %v1444 = vpop.f32.mrb[0].mxu0
      %1445 = vmatprep.mubr.bf16.mxu0 %v892
      %1446 = vmatmul.mubr.bf16.gmra.mrb[0].mxu0 %v891
      %v1447 = vpop.f32.mrb[0].mxu0
      %v1448 = vadd.f32 %v1351, %v1447
      %v1449 = vpop.f32.mrb[0].mxu0
      %v1450 = vpop.f32.mrb[0].mxu0
      %v1451 = vadd.f32 %v1354, %v1450
      %v1452 = vpop.f32.mrb[0].mxu0
      %1453 = vmatprep.mubr.bf16.mxu0 %v899
      %1454 = vmatmul.mubr.bf16.gmra.mrb[0].mxu0 %v898
      %v1455 = vpop.f32.mrb[0].mxu0
      %v1456 = vadd.f32 %v1359, %v1455
      %v1457 = vpop.f32.mrb[0].mxu0
      %v1458 = vpop.f32.mrb[0].mxu0
      %v1459 = vadd.f32 %v1362, %v1458
      %v1460 = vpop.f32.mrb[0].mxu0
      %1461 = vmatprep.mubr.bf16.mxu0 %v906
      %1462 = vmatmul.mubr.bf16.gmra.mrb[0].mxu0 %v905
      %v1463 = vpop.f32.mrb[0].mxu0
      %v1464 = vadd.f32 %v1367, %v1463
      %v1465 = vpop.f32.mrb[0].mxu0
      %v1466 = vpop.f32.mrb[0].mxu0
      %v1467 = vadd.f32 %v1370, %v1466
      %v1468 = vpop.f32.mrb[0].mxu0
      %1469 = vmatprep.mubr.bf16.mxu0 %v913
      %1470 = vmatmul.mubr.bf16.gmra.mrb[0].mxu0 %v912
      %v1471 = vpop.f32.mrb[0].mxu0
      %v1472 = vadd.f32 %v1375, %v1471
      %v1473 = vpop.f32.mrb[0].mxu0
      %v1474 = vpop.f32.mrb[0].mxu0
      %v1475 = vadd.f32 %v1378, %v1474
      %v1476 = vpop.f32.mrb[0].mxu0
      %1477 = vdwg.mxu0
      %1478 = vmatprep.subr.bf16.mxu0 0
      %1479 = vmatpush1.bf16.msra.mxu0 %v1193
      %1480 = vmatprep.subr.bf16.mxu0 0
      %1481 = vmatpush1.bf16.msra.mxu0 %v1194
      %1482 = vmatprep.subr.bf16.mxu0 0
      %1483 = vmatpush1.bf16.msra.mxu0 %v1195
      %1484 = vmatprep.subr.bf16.mxu0 0
      %1485 = vmatpush1.bf16.msra.mxu0 %v1196
      %1486 = vmatprep.subr.bf16.mxu0 0
      %1487 = vmatpush1.bf16.msra.mxu0 %v1197
      %1488 = vmatprep.subr.bf16.mxu0 0
      %1489 = vmatpush1.bf16.msra.mxu0 %v1198
      %1490 = vmatprep.subr.bf16.mxu0 0
      %1491 = vmatpush1.bf16.msra.mxu0 %v1199
      %1492 = vmatprep.subr.bf16.mxu0 0
      %1493 = vmatpush1.bf16.msra.mxu0 %v1200
      %1494 = vmatprep.subr.bf16.mxu0 0
      %1495 = vmatpush1.bf16.msra.mxu0 %v1201
      %1496 = vmatprep.subr.bf16.mxu0 0
      %1497 = vmatpush1.bf16.msra.mxu0 %v1202
      %1498 = vmatprep.subr.bf16.mxu0 0
      %1499 = vmatpush1.bf16.msra.mxu0 %v1203
      %1500 = vmatprep.subr.bf16.mxu0 0
      %1501 = vmatpush1.bf16.msra.mxu0 %v1204
      %1502 = vmatprep.subr.bf16.mxu0 0
      %1503 = vmatpush1.bf16.msra.mxu0 %v1205
      %1504 = vmatprep.subr.bf16.mxu0 0
      %1505 = vmatpush1.bf16.msra.mxu0 %v1206
      %1506 = vmatprep.subr.bf16.mxu0 0
      %1507 = vmatpush1.bf16.msra.mxu0 %v1207
      %1508 = vmatprep.subr.bf16.mxu0 0
      %1509 = vmatpush1.bf16.msra.mxu0 %v1208
      %1510 = vmatprep.mubr.bf16.mxu0 %v866
      %1511 = vmatmul.mubr.bf16.gmra.mrb[0].mxu0 %v865
      %v1512 = vpop.f32.mrb[0].mxu0
      %v1513 = vadd.f32 %v1416, %v1512
      %v1514 = vpop.f32.mrb[0].mxu0
      %v1515 = vpop.f32.mrb[0].mxu0
      %v1516 = vadd.f32 %v1419, %v1515
      %v1517 = vpop.f32.mrb[0].mxu0
      %1518 = vmatprep.mubr.bf16.mxu0 %v873
      %1519 = vmatmul.mubr.bf16.gmra.mrb[0].mxu0 %v872
      %v1520 = vpop.f32.mrb[0].mxu0
      %v1521 = vadd.f32 %v1424, %v1520
      %v1522 = vpop.f32.mrb[0].mxu0
      %v1523 = vpop.f32.mrb[0].mxu0
      %v1524 = vadd.f32 %v1427, %v1523
      %v1525 = vpop.f32.mrb[0].mxu0
      %1526 = vmatprep.mubr.bf16.mxu0 %v880
      %1527 = vmatmul.mubr.bf16.gmra.mrb[0].mxu0 %v879
      %v1528 = vpop.f32.mrb[0].mxu0
      %v1529 = vadd.f32 %v1432, %v1528
      %v1530 = vpop.f32.mrb[0].mxu0
      %v1531 = vpop.f32.mrb[0].mxu0
      %v1532 = vadd.f32 %v1435, %v1531
      %v1533 = vpop.f32.mrb[0].mxu0
      %1534 = vmatprep.mubr.bf16.mxu0 %v887
      %1535 = vmatmul.mubr.bf16.gmra.mrb[0].mxu0 %v886
      %v1536 = vpop.f32.mrb[0].mxu0
      %v1537 = vadd.f32 %v1440, %v1536
      %v1538 = vpop.f32.mrb[0].mxu0
      %v1539 = vpop.f32.mrb[0].mxu0
      %v1540 = vadd.f32 %v1443, %v1539
      %v1541 = vpop.f32.mrb[0].mxu0
      %1542 = vmatprep.mubr.bf16.mxu0 %v894
      %1543 = vmatmul.mubr.bf16.gmra.mrb[0].mxu0 %v893
      %v1544 = vpop.f32.mrb[0].mxu0
      %v1545 = vadd.f32 %v1448, %v1544
      %v1546 = vpop.f32.mrb[0].mxu0
      %v1547 = vpop.f32.mrb[0].mxu0
      %v1548 = vadd.f32 %v1451, %v1547
      %v1549 = vpop.f32.mrb[0].mxu0
      %1550 = vmatprep.mubr.bf16.mxu0 %v901
      %1551 = vmatmul.mubr.bf16.gmra.mrb[0].mxu0 %v900
      %v1552 = vpop.f32.mrb[0].mxu0
      %v1553 = vadd.f32 %v1456, %v1552
      %v1554 = vpop.f32.mrb[0].mxu0
      %v1555 = vpop.f32.mrb[0].mxu0
      %v1556 = vadd.f32 %v1459, %v1555
      %v1557 = vpop.f32.mrb[0].mxu0
      %1558 = vmatprep.mubr.bf16.mxu0 %v908
      %1559 = vmatmul.mubr.bf16.gmra.mrb[0].mxu0 %v907
      %v1560 = vpop.f32.mrb[0].mxu0
      %v1561 = vadd.f32 %v1464, %v1560
      %v1562 = vpop.f32.mrb[0].mxu0
      %v1563 = vpop.f32.mrb[0].mxu0
      %v1564 = vadd.f32 %v1467, %v1563
      %v1565 = vpop.f32.mrb[0].mxu0
      %1566 = vmatprep.mubr.bf16.mxu0 %v915
      %1567 = vmatmul.mubr.bf16.gmra.mrb[0].mxu0 %v914
      %v1568 = vpop.f32.mrb[0].mxu0
      %v1569 = vadd.f32 %v1472, %v1568
      %v1570 = vpop.f32.mrb[0].mxu0
      %v1571 = vpop.f32.mrb[0].mxu0
      %v1572 = vadd.f32 %v1475, %v1571
      %v1573 = vpop.f32.mrb[0].mxu0
      %1574 = vdwg.mxu0
      %1575 = vmatprep.subr.bf16.mxu0 0
      %1576 = vmatpush1.bf16.msra.mxu0 %v1209
      %1577 = vmatprep.subr.bf16.mxu0 0
      %1578 = vmatpush1.bf16.msra.mxu0 0
      %1579 = vmatprep.subr.bf16.mxu0 0
      %1580 = vmatpush1.bf16.msra.mxu0 0
      %1581 = vmatprep.subr.bf16.mxu0 0
      %1582 = vmatpush1.bf16.msra.mxu0 0
      %1583 = vmatprep.subr.bf16.mxu0 0
      %1584 = vmatpush1.bf16.msra.mxu0 0
      %1585 = vmatprep.subr.bf16.mxu0 0
      %1586 = vmatpush1.bf16.msra.mxu0 0
      %1587 = vmatprep.subr.bf16.mxu0 0
      %1588 = vmatpush1.bf16.msra.mxu0 0
      %1589 = vmatprep.subr.bf16.mxu0 0
      %1590 = vmatpush1.bf16.msra.mxu0 0
      %1591 = vmatprep.subr.bf16.mxu0 0
      %1592 = vmatpush1.bf16.msra.mxu0 0
      %1593 = vmatprep.subr.bf16.mxu0 0
      %1594 = vmatpush1.bf16.msra.mxu0 0
      %1595 = vmatprep.subr.bf16.mxu0 0
      %1596 = vmatpush1.bf16.msra.mxu0 0
      %1597 = vmatprep.subr.bf16.mxu0 0
      %1598 = vmatpush1.bf16.msra.mxu0 0
      %1599 = vmatprep.subr.bf16.mxu0 0
      %1600 = vmatpush1.bf16.msra.mxu0 0
      %1601 = vmatprep.subr.bf16.mxu0 0
      %1602 = vmatpush1.bf16.msra.mxu0 0
      %1603 = vmatprep.subr.bf16.mxu0 0
      %1604 = vmatpush1.bf16.msra.mxu0 0
      %1605 = vmatprep.subr.bf16.mxu0 0
      %1606 = vmatpush1.bf16.msra.mxu0 0
      %1607 = vmatprep.mubr.bf16.mxu0 0
      %1608 = vmatmul.mubr.bf16.gmra.mrb[0].mxu0 %v1261
      %v1609 = vpop.f32.mrb[0].mxu0
      %v1610 = vadd.f32 %v1513, %v1609
      %v1611 = vpop.f32.mrb[0].mxu0
      %v1612 = vpop.f32.mrb[0].mxu0
      %v1613 = vadd.f32 %v1516, %v1612
      %v1614 = vpop.f32.mrb[0].mxu0
      %1615 = vmatprep.mubr.bf16.mxu0 0
      %1616 = vmatmul.mubr.bf16.gmra.mrb[0].mxu0 %v1264
      %v1617 = vpop.f32.mrb[0].mxu0
      %v1618 = vadd.f32 %v1521, %v1617
      %v1619 = vpop.f32.mrb[0].mxu0
      %v1620 = vpop.f32.mrb[0].mxu0
      %v1621 = vadd.f32 %v1524, %v1620
      %v1622 = vpop.f32.mrb[0].mxu0
      %1623 = vmatprep.mubr.bf16.mxu0 0
      %1624 = vmatmul.mubr.bf16.gmra.mrb[0].mxu0 %v1267
      %v1625 = vpop.f32.mrb[0].mxu0
      %v1626 = vadd.f32 %v1529, %v1625
      %v1627 = vpop.f32.mrb[0].mxu0
      %v1628 = vpop.f32.mrb[0].mxu0
      %v1629 = vadd.f32 %v1532, %v1628
      %v1630 = vpop.f32.mrb[0].mxu0
      %1631 = vmatprep.mubr.bf16.mxu0 0
      %1632 = vmatmul.mubr.bf16.gmra.mrb[0].mxu0 %v1270
      %v1633 = vpop.f32.mrb[0].mxu0
      %v1634 = vadd.f32 %v1537, %v1633
      %v1635 = vpop.f32.mrb[0].mxu0
      %v1636 = vpop.f32.mrb[0].mxu0
      %v1637 = vadd.f32 %v1540, %v1636
      %v1638 = vpop.f32.mrb[0].mxu0
      %1639 = vmatprep.mubr.bf16.mxu0 0
      %1640 = vmatmul.mubr.bf16.gmra.mrb[0].mxu0 %v1273
      %v1641 = vpop.f32.mrb[0].mxu0
      %v1642 = vadd.f32 %v1545, %v1641
      %v1643 = vpop.f32.mrb[0].mxu0
      %v1644 = vpop.f32.mrb[0].mxu0
      %v1645 = vadd.f32 %v1548, %v1644
      %v1646 = vpop.f32.mrb[0].mxu0
      %1647 = vmatprep.mubr.bf16.mxu0 0
      %1648 = vmatmul.mubr.bf16.gmra.mrb[0].mxu0 %v1276
      %v1649 = vpop.f32.mrb[0].mxu0
      %v1650 = vadd.f32 %v1553, %v1649
      %v1651 = vpop.f32.mrb[0].mxu0
      %v1652 = vpop.f32.mrb[0].mxu0
      %v1653 = vadd.f32 %v1556, %v1652
      %v1654 = vpop.f32.mrb[0].mxu0
      %1655 = vmatprep.mubr.bf16.mxu0 0
      %1656 = vmatmul.mubr.bf16.gmra.mrb[0].mxu0 %v1279
      %v1657 = vpop.f32.mrb[0].mxu0
      %v1658 = vadd.f32 %v1561, %v1657
      %v1659 = vpop.f32.mrb[0].mxu0
      %v1660 = vpop.f32.mrb[0].mxu0
      %v1661 = vadd.f32 %v1564, %v1660
      %v1662 = vpop.f32.mrb[0].mxu0
      %1663 = vmatprep.mubr.bf16.mxu0 0
      %1664 = vmatmul.mubr.bf16.gmra.mrb[0].mxu0 %v1282
      %v1665 = vpop.f32.mrb[0].mxu0
      %v1666 = vadd.f32 %v1569, %v1665
      %v1667 = vpop.f32.mrb[0].mxu0
      %v1668 = vpop.f32.mrb[0].mxu0
      %v1669 = vadd.f32 %v1572, %v1668
      %v1670 = vpop.f32.mrb[0].mxu0
      %1671 = vdwg.mxu0
      %v1672 = vmax.f32 %v1610, 0.0
      %v1673 = vmax.f32 %v1613, 0.0
      %v1674 = vmax.f32 %v1618, 0.0
      %v1675 = vmax.f32 %v1621, 0.0
      %v1676 = vmax.f32 %v1626, 0.0
      %v1677 = vmax.f32 %v1629, 0.0
      %v1678 = vmax.f32 %v1634, 0.0
      %v1679 = vmax.f32 %v1637, 0.0
      %v1680 = vmax.f32 %v1642, 0.0
      %v1681 = vmax.f32 %v1645, 0.0
      %v1682 = vmax.f32 %v1650, 0.0
      %v1683 = vmax.f32 %v1653, 0.0
      %v1684 = vmax.f32 %v1658, 0.0
      %v1685 = vmax.f32 %v1661, 0.0
      %v1686 = vmax.f32 %v1666, 0.0
      %v1687 = vmax.f32 %v1669, 0.0
      %v1688 = vpack.c.bf16 %v1673, %v1672
      %v1689 = vpack.c.bf16 %v1675, %v1674
      %v1690 = vpack.c.bf16 %v1677, %v1676
      %v1691 = vpack.c.bf16 %v1679, %v1678
      %v1692 = vpack.c.bf16 %v1681, %v1680
      %v1693 = vpack.c.bf16 %v1683, %v1682
      %v1694 = vpack.c.bf16 %v1685, %v1684
      %v1695 = vpack.c.bf16 %v1687, %v1686
      %v1696 = vld [vmem:[%s4] sm:$0xf]
      %v1697 = vld [vmem:[%s4 + $0x4] sm:$0xf]
      %v1698 = vld [vmem:[%s4 + $0x8] sm:$0xf]
      %v1699 = vld [vmem:[%s4 + $0xc] sm:$0xf]
      %v1700 = vld [vmem:[%s4 + $0x10] sm:$0xf]
      %v1701 = vld [vmem:[%s4 + $0x14] sm:$0xf]
      %v1702 = vld [vmem:[%s4 + $0x18] sm:$0xf]
      %v1703 = vld [vmem:[%s4 + $0x1c] sm:$0xf]
      %v1704 = vld [vmem:[%s4 + $0x20] sm:$0xf]
      %v1705 = vld [vmem:[%s4 + $0x24] sm:$0xf]
      %v1706 = vld [vmem:[%s4 + $0x28] sm:$0xf]
      %v1707 = vld [vmem:[%s4 + $0x2c] sm:$0xf]
      %v1708 = vld [vmem:[%s4 + $0x30] sm:$0xf]
      %v1709 = vld [vmem:[%s4 + $0x34] sm:$0xf]
      %v1710 = vld [vmem:[%s4 + $0x38] sm:$0xf]
      %v1711 = vld [vmem:[%s4 + $0x3c] sm:$0xf]
      %v1712 = vld [vmem:[%s5] sm:$0x1]
      %v1714 = vlaneseq
      %v1715 = vshrl.u32 %v1714, 7
      %v1716 = vsub.s32 0, %v1715
      %v1717 = vrot.slane %v1712, %v1716
      %v1735 = vunpack.c.l.b16 %v1696
      %v1736 = vunpack.c.l.b16 %v1697
      %v1737 = vunpack.c.l.b16 %v1698
      %v1738 = vunpack.c.l.b16 %v1699
      %v1739 = vunpack.c.l.b16 %v1700
      %v1740 = vunpack.c.l.b16 %v1701
      %v1741 = vunpack.c.l.b16 %v1702
      %v1742 = vunpack.c.l.b16 %v1703
      %v1743 = vunpack.c.l.b16 %v1704
      %v1744 = vunpack.c.l.b16 %v1705
      %v1745 = vunpack.c.l.b16 %v1706
      %v1746 = vunpack.c.l.b16 %v1707
      %v1747 = vunpack.c.l.b16 %v1708
      %v1748 = vunpack.c.l.b16 %v1709
      %v1749 = vunpack.c.l.b16 %v1710
      %v1750 = vunpack.c.l.b16 %v1711
      %v1751 = vpack.c.b16 %v1736, %v1735
      %v1752 = vpack.c.b16 %v1738, %v1737
      %v1753 = vpack.c.b16 %v1740, %v1739
      %v1754 = vpack.c.b16 %v1742, %v1741
      %v1755 = vpack.c.b16 %v1744, %v1743
      %v1756 = vpack.c.b16 %v1746, %v1745
      %v1757 = vpack.c.b16 %v1748, %v1747
      %v1758 = vpack.c.b16 %v1750, %v1749
      %1767 = vmatprep.subr.bf16.mxu0 0
      %1768 = vmatpush1.bf16.msra.mxu0 %v1751
      %1769 = vmatprep.subr.bf16.mxu0 0
      %1770 = vmatpush1.bf16.msra.mxu0 %v1752
      %1771 = vmatprep.subr.bf16.mxu0 0
      %1772 = vmatpush1.bf16.msra.mxu0 %v1753
      %1773 = vmatprep.subr.bf16.mxu0 0
      %1774 = vmatpush1.bf16.msra.mxu0 %v1754
      %1775 = vmatprep.subr.bf16.mxu0 0
      %1776 = vmatpush1.bf16.msra.mxu0 %v1755
      %1777 = vmatprep.subr.bf16.mxu0 0
      %1778 = vmatpush1.bf16.msra.mxu0 %v1756
      %1779 = vmatprep.subr.bf16.mxu0 0
      %1780 = vmatpush1.bf16.msra.mxu0 %v1757
      %1781 = vmatprep.subr.bf16.mxu0 0
      %1782 = vmatpush1.bf16.msra.mxu0 %v1758
      %1783 = vmatprep.subr.bf16.mxu0 0
      %1784 = vmatpush1.bf16.msra.mxu0 0
      %1785 = vmatprep.subr.bf16.mxu0 0
      %1786 = vmatpush1.bf16.msra.mxu0 0
      %1787 = vmatprep.subr.bf16.mxu0 0
      %1788 = vmatpush1.bf16.msra.mxu0 0
      %1789 = vmatprep.subr.bf16.mxu0 0
      %1790 = vmatpush1.bf16.msra.mxu0 0
      %1791 = vmatprep.subr.bf16.mxu0 0
      %1792 = vmatpush1.bf16.msra.mxu0 0
      %1793 = vmatprep.subr.bf16.mxu0 0
      %1794 = vmatpush1.bf16.msra.mxu0 0
      %1795 = vmatprep.subr.bf16.mxu0 0
      %1796 = vmatpush1.bf16.msra.mxu0 0
      %1797 = vmatprep.subr.bf16.mxu0 0
      %1798 = vmatpush1.bf16.msra.mxu0 0
      %1799 = vmatprep.mubr.bf16.mxu0 0
      %1800 = vmatmul.mubr.bf16.gmra.mrb[0].mxu0 %v1688
      %v1801 = vpop.f32.mrb[0].mxu0
      %v1802 = vadd.f32 %v1717, %v1801
      %v1803 = vpop.f32.mrb[0].mxu0
      %v1804 = vpop.f32.mrb[0].mxu0
      %v1805 = vadd.f32 %v1717, %v1804
      %v1806 = vpop.f32.mrb[0].mxu0
      %1807 = vmatprep.mubr.bf16.mxu0 0
      %1808 = vmatmul.mubr.bf16.gmra.mrb[0].mxu0 %v1689
      %v1809 = vpop.f32.mrb[0].mxu0
      %v1810 = vadd.f32 %v1717, %v1809
      %v1811 = vpop.f32.mrb[0].mxu0
      %v1812 = vpop.f32.mrb[0].mxu0
      %v1813 = vadd.f32 %v1717, %v1812
      %v1814 = vpop.f32.mrb[0].mxu0
      %1815 = vmatprep.mubr.bf16.mxu0 0
      %1816 = vmatmul.mubr.bf16.gmra.mrb[0].mxu0 %v1690
      %v1817 = vpop.f32.mrb[0].mxu0
      %v1818 = vadd.f32 %v1717, %v1817
      %v1819 = vpop.f32.mrb[0].mxu0
      %v1820 = vpop.f32.mrb[0].mxu0
      %v1821 = vadd.f32 %v1717, %v1820
      %v1822 = vpop.f32.mrb[0].mxu0
      %1823 = vmatprep.mubr.bf16.mxu0 0
      %1824 = vmatmul.mubr.bf16.gmra.mrb[0].mxu0 %v1691
      %v1825 = vpop.f32.mrb[0].mxu0
      %v1826 = vadd.f32 %v1717, %v1825
      %v1827 = vpop.f32.mrb[0].mxu0
      %v1828 = vpop.f32.mrb[0].mxu0
      %v1829 = vadd.f32 %v1717, %v1828
      %v1830 = vpop.f32.mrb[0].mxu0
      %1831 = vmatprep.mubr.bf16.mxu0 0
      %1832 = vmatmul.mubr.bf16.gmra.mrb[0].mxu0 %v1692
      %v1833 = vpop.f32.mrb[0].mxu0
      %v1834 = vadd.f32 %v1717, %v1833
      %v1835 = vpop.f32.mrb[0].mxu0
      %v1836 = vpop.f32.mrb[0].mxu0
      %v1837 = vadd.f32 %v1717, %v1836
      %v1838 = vpop.f32.mrb[0].mxu0
      %1839 = vmatprep.mubr.bf16.mxu0 0
      %1840 = vmatmul.mubr.bf16.gmra.mrb[0].mxu0 %v1693
      %v1841 = vpop.f32.mrb[0].mxu0
      %v1842 = vadd.f32 %v1717, %v1841
      %v1843 = vpop.f32.mrb[0].mxu0
      %v1844 = vpop.f32.mrb[0].mxu0
      %v1845 = vadd.f32 %v1717, %v1844
      %v1846 = vpop.f32.mrb[0].mxu0
      %1847 = vmatprep.mubr.bf16.mxu0 0
      %1848 = vmatmul.mubr.bf16.gmra.mrb[0].mxu0 %v1694
      %v1849 = vpop.f32.mrb[0].mxu0
      %v1850 = vadd.f32 %v1717, %v1849
      %v1851 = vpop.f32.mrb[0].mxu0
      %v1852 = vpop.f32.mrb[0].mxu0
      %v1853 = vadd.f32 %v1717, %v1852
      %v1854 = vpop.f32.mrb[0].mxu0
      %1855 = vmatprep.mubr.bf16.mxu0 0
      %1856 = vmatmul.mubr.bf16.gmra.mrb[0].mxu0 %v1695
      %v1857 = vpop.f32.mrb[0].mxu0
      %v1858 = vadd.f32 %v1717, %v1857
      %v1859 = vpop.f32.mrb[0].mxu0
      %v1860 = vpop.f32.mrb[0].mxu0
      %v1861 = vadd.f32 %v1717, %v1860
      %v1862 = vpop.f32.mrb[0].mxu0
      %1863 = vdwg.mxu0
      %v1864 = vmax.f32 %v1802, 0.0
      %v1865 = vmax.f32 %v1805, 0.0
      %v1866 = vmax.f32 %v1810, 0.0
      %v1867 = vmax.f32 %v1813, 0.0
      %v1868 = vmax.f32 %v1818, 0.0
      %v1869 = vmax.f32 %v1821, 0.0
      %v1870 = vmax.f32 %v1826, 0.0
      %v1871 = vmax.f32 %v1829, 0.0
      %v1872 = vmax.f32 %v1834, 0.0
      %v1873 = vmax.f32 %v1837, 0.0
      %v1874 = vmax.f32 %v1842, 0.0
      %v1875 = vmax.f32 %v1845, 0.0
      %v1876 = vmax.f32 %v1850, 0.0
      %v1877 = vmax.f32 %v1853, 0.0
      %v1878 = vmax.f32 %v1858, 0.0
      %v1879 = vmax.f32 %v1861, 0.0
      %v1880 = vpack.c.bf16 %v1865, %v1864
      %v1881 = vpack.c.bf16 %v1867, %v1866
      %v1882 = vpack.c.bf16 %v1869, %v1868
      %v1883 = vpack.c.bf16 %v1871, %v1870
      %v1884 = vpack.c.bf16 %v1873, %v1872
      %v1885 = vpack.c.bf16 %v1875, %v1874
      %v1886 = vpack.c.bf16 %v1877, %v1876
      %v1887 = vpack.c.bf16 %v1879, %v1878
      %v1888 = vld [vmem:[%s6] sm:$0xf]
      %v1889 = vld [vmem:[%s6 + $0x4] sm:$0xf]
      %v1890 = vld [vmem:[%s6 + $0x8] sm:$0xf]
      %v1891 = vld [vmem:[%s6 + $0xc] sm:$0xf]
      %v1892 = vld [vmem:[%s6 + $0x10] sm:$0xf]
      %v1893 = vld [vmem:[%s6 + $0x14] sm:$0xf]
      %v1894 = vld [vmem:[%s6 + $0x18] sm:$0xf]
      %v1895 = vld [vmem:[%s6 + $0x1c] sm:$0xf]
      %v1896 = vld [vmem:[%s7] sm:$0x1]
      %v1898 = vlaneseq
      %v1899 = vshrl.u32 %v1898, 7
      %v1900 = vsub.s32 0, %v1899
      %v1901 = vrot.slane %v1896, %v1900
      %v1911 = vunpack.c.l.b16 %v1888
      %v1912 = vunpack.c.l.b16 %v1889
      %v1913 = vunpack.c.l.b16 %v1890
      %v1914 = vunpack.c.l.b16 %v1891
      %v1915 = vunpack.c.l.b16 %v1892
      %v1916 = vunpack.c.l.b16 %v1893
      %v1917 = vunpack.c.l.b16 %v1894
      %v1918 = vunpack.c.l.b16 %v1895
      %v1919 = vpack.c.b16 %v1912, %v1911
      %v1920 = vpack.c.b16 %v1914, %v1913
      %v1921 = vpack.c.b16 %v1916, %v1915
      %v1922 = vpack.c.b16 %v1918, %v1917
      %vm1927 = vcmask 523264
      %v1929 = vsel %vm1927, %v1880, 0
      %v1932 = vsel %vm1927, %v1881, 0
      %v1935 = vsel %vm1927, %v1882, 0
      %v1938 = vsel %vm1927, %v1883, 0
      %v1941 = vsel %vm1927, %v1884, 0
      %v1944 = vsel %vm1927, %v1885, 0
      %v1947 = vsel %vm1927, %v1886, 0
      %v1950 = vsel %vm1927, %v1887, 0
      %1952 = vmatprep.subr.bf16.mxu0 0
      %1953 = vmatpush1.bf16.msra.mxu0 %v1919
      %1954 = vmatprep.subr.bf16.mxu0 0
      %1955 = vmatpush1.bf16.msra.mxu0 %v1920
      %1956 = vmatprep.subr.bf16.mxu0 0
      %1957 = vmatpush1.bf16.msra.mxu0 %v1921
      %1958 = vmatprep.subr.bf16.mxu0 0
      %1959 = vmatpush1.bf16.msra.mxu0 %v1922
      %1960 = vmatprep.subr.bf16.mxu0 0
      %1961 = vmatpush1.bf16.msra.mxu0 0
      %1962 = vmatprep.subr.bf16.mxu0 0
      %1963 = vmatpush1.bf16.msra.mxu0 0
      %1964 = vmatprep.subr.bf16.mxu0 0
      %1965 = vmatpush1.bf16.msra.mxu0 0
      %1966 = vmatprep.subr.bf16.mxu0 0
      %1967 = vmatpush1.bf16.msra.mxu0 0
      %1968 = vmatprep.subr.bf16.mxu0 0
      %1969 = vmatpush1.bf16.msra.mxu0 0
      %1970 = vmatprep.subr.bf16.mxu0 0
      %1971 = vmatpush1.bf16.msra.mxu0 0
      %1972 = vmatprep.subr.bf16.mxu0 0
      %1973 = vmatpush1.bf16.msra.mxu0 0
      %1974 = vmatprep.subr.bf16.mxu0 0
      %1975 = vmatpush1.bf16.msra.mxu0 0
      %1976 = vmatprep.subr.bf16.mxu0 0
      %1977 = vmatpush1.bf16.msra.mxu0 0
      %1978 = vmatprep.subr.bf16.mxu0 0
      %1979 = vmatpush1.bf16.msra.mxu0 0
      %1980 = vmatprep.subr.bf16.mxu0 0
      %1981 = vmatpush1.bf16.msra.mxu0 0
      %1982 = vmatprep.subr.bf16.mxu0 0
      %1983 = vmatpush1.bf16.msra.mxu0 0
      %1984 = vmatprep.mubr.bf16.mxu0 0
      %1985 = vmatmul.mubr.bf16.gmra.mrb[0].mxu0 %v1929
      %v1986 = vpop.f32.mrb[0].mxu0
      %v1987 = vadd.f32 %v1901, %v1986
      %v1988 = vpop.f32.mrb[0].mxu0
      %v1989 = vpop.f32.mrb[0].mxu0
      %v1990 = vadd.f32 %v1901, %v1989
      %v1991 = vpop.f32.mrb[0].mxu0
      %1992 = vmatprep.mubr.bf16.mxu0 0
      %1993 = vmatmul.mubr.bf16.gmra.mrb[0].mxu0 %v1932
      %v1994 = vpop.f32.mrb[0].mxu0
      %v1995 = vadd.f32 %v1901, %v1994
      %v1996 = vpop.f32.mrb[0].mxu0
      %v1997 = vpop.f32.mrb[0].mxu0
      %v1998 = vadd.f32 %v1901, %v1997
      %v1999 = vpop.f32.mrb[0].mxu0
      %2000 = vmatprep.mubr.bf16.mxu0 0
      %2001 = vmatmul.mubr.bf16.gmra.mrb[0].mxu0 %v1935
      %v2002 = vpop.f32.mrb[0].mxu0
      %v2003 = vadd.f32 %v1901, %v2002
      %v2004 = vpop.f32.mrb[0].mxu0
      %v2005 = vpop.f32.mrb[0].mxu0
      %v2006 = vadd.f32 %v1901, %v2005
      %v2007 = vpop.f32.mrb[0].mxu0
      %2008 = vmatprep.mubr.bf16.mxu0 0
      %2009 = vmatmul.mubr.bf16.gmra.mrb[0].mxu0 %v1938
      %v2010 = vpop.f32.mrb[0].mxu0
      %v2011 = vadd.f32 %v1901, %v2010
      %v2012 = vpop.f32.mrb[0].mxu0
      %v2013 = vpop.f32.mrb[0].mxu0
      %v2014 = vadd.f32 %v1901, %v2013
      %v2015 = vpop.f32.mrb[0].mxu0
      %2016 = vmatprep.mubr.bf16.mxu0 0
      %2017 = vmatmul.mubr.bf16.gmra.mrb[0].mxu0 %v1941
      %v2018 = vpop.f32.mrb[0].mxu0
      %v2019 = vadd.f32 %v1901, %v2018
      %v2020 = vpop.f32.mrb[0].mxu0
      %v2021 = vpop.f32.mrb[0].mxu0
      %v2022 = vadd.f32 %v1901, %v2021
      %v2023 = vpop.f32.mrb[0].mxu0
      %2024 = vmatprep.mubr.bf16.mxu0 0
      %2025 = vmatmul.mubr.bf16.gmra.mrb[0].mxu0 %v1944
      %v2026 = vpop.f32.mrb[0].mxu0
      %v2027 = vadd.f32 %v1901, %v2026
      %v2028 = vpop.f32.mrb[0].mxu0
      %v2029 = vpop.f32.mrb[0].mxu0
      %v2030 = vadd.f32 %v1901, %v2029
      %v2031 = vpop.f32.mrb[0].mxu0
      %2032 = vmatprep.mubr.bf16.mxu0 0
      %2033 = vmatmul.mubr.bf16.gmra.mrb[0].mxu0 %v1947
      %v2034 = vpop.f32.mrb[0].mxu0
      %v2035 = vadd.f32 %v1901, %v2034
      %v2036 = vpop.f32.mrb[0].mxu0
      %v2037 = vpop.f32.mrb[0].mxu0
      %v2038 = vadd.f32 %v1901, %v2037
      %v2039 = vpop.f32.mrb[0].mxu0
      %2040 = vmatprep.mubr.bf16.mxu0 0
      %2041 = vmatmul.mubr.bf16.gmra.mrb[0].mxu0 %v1950
      %v2042 = vpop.f32.mrb[0].mxu0
      %v2043 = vadd.f32 %v1901, %v2042
      %v2044 = vpop.f32.mrb[0].mxu0
      %v2045 = vpop.f32.mrb[0].mxu0
      %v2046 = vadd.f32 %v1901, %v2045
      %v2047 = vpop.f32.mrb[0].mxu0
      %2048 = vdwg.mxu0
      %v2049 = vmul.f32 %v1987, 0.5
      %v2050 = vmul.f32 %v1990, 0.5
      %v2051 = vmul.f32 %v1995, 0.5
      %v2052 = vmul.f32 %v1998, 0.5
      %v2053 = vmul.f32 %v2003, 0.5
      %v2054 = vmul.f32 %v2006, 0.5
      %v2055 = vmul.f32 %v2011, 0.5
      %v2056 = vmul.f32 %v2014, 0.5
      %v2057 = vmul.f32 %v2019, 0.5
      %v2058 = vmul.f32 %v2022, 0.5
      %v2059 = vmul.f32 %v2027, 0.5
      %v2060 = vmul.f32 %v2030, 0.5
      %v2061 = vmul.f32 %v2035, 0.5
      %v2062 = vmul.f32 %v2038, 0.5
      %v2063 = vmul.f32 %v2043, 0.5
      %v2064 = vmul.f32 %v2046, 0.5
      %v2065 = vmul.f32 %v2049, 1.442695
      %v2066 = vpow.pop %v2065
      %v2067 = vmul.f32 %v2050, 1.442695
      %v2068 = vpow.pop %v2067
      %v2069 = vmul.f32 %v2051, 1.442695
      %v2070 = vpow.pop %v2069
      %v2071 = vmul.f32 %v2052, 1.442695
      %v2072 = vpow.pop %v2071
      %v2073 = vmul.f32 %v2053, 1.442695
      %v2074 = vpow.pop %v2073
      %v2075 = vmul.f32 %v2054, 1.442695
      %v2076 = vpow.pop %v2075
      %v2077 = vmul.f32 %v2055, 1.442695
      %v2078 = vpow.pop %v2077
      %v2079 = vmul.f32 %v2056, 1.442695
      %v2080 = vpow.pop %v2079
      %v2081 = vmul.f32 %v2057, 1.442695
      %v2082 = vpow.pop %v2081
      %v2083 = vmul.f32 %v2058, 1.442695
      %v2084 = vpow.pop %v2083
      %v2085 = vmul.f32 %v2059, 1.442695
      %v2086 = vpow.pop %v2085
      %v2087 = vmul.f32 %v2060, 1.442695
      %v2088 = vpow.pop %v2087
      %v2089 = vmul.f32 %v2061, 1.442695
      %v2090 = vpow.pop %v2089
      %v2091 = vmul.f32 %v2062, 1.442695
      %v2092 = vpow.pop %v2091
      %v2093 = vmul.f32 %v2063, 1.442695
      %v2094 = vpow.pop %v2093
      %v2095 = vmul.f32 %v2064, 1.442695
      %v2096 = vpow.pop %v2095
      %2113 = vrot.lane.b32.xlu0 %v564, 32
      %v2114 = vpop.permute.xlu0 %2113
      %2115 = vrot.lane.b32.xlu0 %v565, 32
      %v2116 = vpop.permute.xlu0 %2115
      %2117 = vrot.lane.b32.xlu0 %v566, 32
      %v2118 = vpop.permute.xlu0 %2117
      %2119 = vrot.lane.b32.xlu0 %v567, 32
      %v2120 = vpop.permute.xlu0 %2119
      %2121 = vrot.lane.b32.xlu0 %v568, 32
      %v2122 = vpop.permute.xlu0 %2121
      %2123 = vrot.lane.b32.xlu0 %v569, 32
      %v2124 = vpop.permute.xlu0 %2123
      %2125 = vrot.lane.b32.xlu0 %v570, 32
      %v2126 = vpop.permute.xlu0 %2125
      %2127 = vrot.lane.b32.xlu0 %v571, 32
      %v2128 = vpop.permute.xlu0 %2127
      %2129 = vrot.lane.b32.xlu0 %v572, 32
      %v2130 = vpop.permute.xlu0 %2129
      %2131 = vrot.lane.b32.xlu0 %v573, 32
      %v2132 = vpop.permute.xlu0 %2131
      %2133 = vrot.lane.b32.xlu0 %v574, 32
      %v2134 = vpop.permute.xlu0 %2133
      %2135 = vrot.lane.b32.xlu0 %v575, 32
      %v2136 = vpop.permute.xlu0 %2135
      %2137 = vrot.lane.b32.xlu0 %v576, 32
      %v2138 = vpop.permute.xlu0 %2137
      %2139 = vrot.lane.b32.xlu0 %v577, 32
      %v2140 = vpop.permute.xlu0 %2139
      %2141 = vrot.lane.b32.xlu0 %v578, 32
      %v2142 = vpop.permute.xlu0 %2141
      %2143 = vrot.lane.b32.xlu0 %v579, 32
      %v2144 = vpop.permute.xlu0 %2143
      %v2161 = vmul.f32 %v2066, %v2114
      %v2162 = vmul.f32 %v2068, %v2116
      %v2163 = vmul.f32 %v2070, %v2118
      %v2164 = vmul.f32 %v2072, %v2120
      %v2165 = vmul.f32 %v2074, %v2122
      %v2166 = vmul.f32 %v2076, %v2124
      %v2167 = vmul.f32 %v2078, %v2126
      %v2168 = vmul.f32 %v2080, %v2128
      %v2169 = vmul.f32 %v2082, %v2130
      %v2170 = vmul.f32 %v2084, %v2132
      %v2171 = vmul.f32 %v2086, %v2134
      %v2172 = vmul.f32 %v2088, %v2136
      %v2173 = vmul.f32 %v2090, %v2138
      %v2174 = vmul.f32 %v2092, %v2140
      %v2175 = vmul.f32 %v2094, %v2142
      %v2176 = vmul.f32 %v2096, %v2144
      %2193 = vrot.lane.b32.xlu0 %v2161, 96
      %v2194 = vpop.permute.xlu0 %2193
      %2195 = vrot.lane.b32.xlu0 %v2162, 96
      %v2196 = vpop.permute.xlu0 %2195
      %2197 = vrot.lane.b32.xlu0 %v2163, 96
      %v2198 = vpop.permute.xlu0 %2197
      %2199 = vrot.lane.b32.xlu0 %v2164, 96
      %v2200 = vpop.permute.xlu0 %2199
      %2201 = vrot.lane.b32.xlu0 %v2165, 96
      %v2202 = vpop.permute.xlu0 %2201
      %2203 = vrot.lane.b32.xlu0 %v2166, 96
      %v2204 = vpop.permute.xlu0 %2203
      %2205 = vrot.lane.b32.xlu0 %v2167, 96
      %v2206 = vpop.permute.xlu0 %2205
      %2207 = vrot.lane.b32.xlu0 %v2168, 96
      %v2208 = vpop.permute.xlu0 %2207
      %2209 = vrot.lane.b32.xlu0 %v2169, 96
      %v2210 = vpop.permute.xlu0 %2209
      %2211 = vrot.lane.b32.xlu0 %v2170, 96
      %v2212 = vpop.permute.xlu0 %2211
      %2213 = vrot.lane.b32.xlu0 %v2171, 96
      %v2214 = vpop.permute.xlu0 %2213
      %2215 = vrot.lane.b32.xlu0 %v2172, 96
      %v2216 = vpop.permute.xlu0 %2215
      %2217 = vrot.lane.b32.xlu0 %v2173, 96
      %v2218 = vpop.permute.xlu0 %2217
      %2219 = vrot.lane.b32.xlu0 %v2174, 96
      %v2220 = vpop.permute.xlu0 %2219
      %2221 = vrot.lane.b32.xlu0 %v2175, 96
      %v2222 = vpop.permute.xlu0 %2221
      %2223 = vrot.lane.b32.xlu0 %v2176, 96
      %v2224 = vpop.permute.xlu0 %2223
      %v2241 = vadd.f32 %v1987, %v2194
      %v2242 = vadd.f32 %v1990, %v2196
      %v2243 = vadd.f32 %v1995, %v2198
      %v2244 = vadd.f32 %v1998, %v2200
      %v2245 = vadd.f32 %v2003, %v2202
      %v2246 = vadd.f32 %v2006, %v2204
      %v2247 = vadd.f32 %v2011, %v2206
      %v2248 = vadd.f32 %v2014, %v2208
      %v2249 = vadd.f32 %v2019, %v2210
      %v2250 = vadd.f32 %v2022, %v2212
      %v2251 = vadd.f32 %v2027, %v2214
      %v2252 = vadd.f32 %v2030, %v2216
      %v2253 = vadd.f32 %v2035, %v2218
      %v2254 = vadd.f32 %v2038, %v2220
      %v2255 = vadd.f32 %v2043, %v2222
      %v2256 = vadd.f32 %v2046, %v2224
      %v2257 = vpack.c.bf16 %v2242, %v2241
      %v2258 = vpack.c.bf16 %v2244, %v2243
      %v2259 = vpack.c.bf16 %v2246, %v2245
      %v2260 = vpack.c.bf16 %v2248, %v2247
      %v2261 = vpack.c.bf16 %v2250, %v2249
      %v2262 = vpack.c.bf16 %v2252, %v2251
      %v2263 = vpack.c.bf16 %v2254, %v2253
      %v2264 = vpack.c.bf16 %v2256, %v2255
      %v2265 = vld [vmem:[%s8] sm:$0xf]
      %v2266 = vld [vmem:[%s8 + $0x4] sm:$0xf]
      %v2267 = vld [vmem:[%s8 + $0x8] sm:$0xf]
      %v2268 = vld [vmem:[%s8 + $0xc] sm:$0xf]
      %v2269 = vld [vmem:[%s9] sm:$0x1]
      %v2271 = vlaneseq
      %v2272 = vshrl.u32 %v2271, 7
      %v2273 = vsub.s32 0, %v2272
      %v2274 = vrot.slane %v2269, %v2273
      %v2280 = vunpack.c.l.b16 %v2265
      %v2281 = vunpack.c.l.b16 %v2266
      %v2282 = vunpack.c.l.b16 %v2267
      %v2283 = vunpack.c.l.b16 %v2268
      %v2284 = vpack.c.b16 %v2281, %v2280
      %v2285 = vpack.c.b16 %v2283, %v2282
      %vm2288 = vcmask 261120
      %v2290 = vsel %vm2288, %v2257, 0
      %v2293 = vsel %vm2288, %v2258, 0
      %v2296 = vsel %vm2288, %v2259, 0
      %v2299 = vsel %vm2288, %v2260, 0
      %v2302 = vsel %vm2288, %v2261, 0
      %v2305 = vsel %vm2288, %v2262, 0
      %v2308 = vsel %vm2288, %v2263, 0
      %v2311 = vsel %vm2288, %v2264, 0
      %2313 = vmatprep.subr.bf16.mxu0 0
      %2314 = vmatpush1.bf16.msra.mxu0 %v2284
      %2315 = vmatprep.subr.bf16.mxu0 0
      %2316 = vmatpush1.bf16.msra.mxu0 %v2285
      %2317 = vmatprep.subr.bf16.mxu0 0
      %2318 = vmatpush1.bf16.msra.mxu0 0
      %2319 = vmatprep.subr.bf16.mxu0 0
      %2320 = vmatpush1.bf16.msra.mxu0 0
      %2321 = vmatprep.subr.bf16.mxu0 0
      %2322 = vmatpush1.bf16.msra.mxu0 0
      %2323 = vmatprep.subr.bf16.mxu0 0
      %2324 = vmatpush1.bf16.msra.mxu0 0
      %2325 = vmatprep.subr.bf16.mxu0 0
      %2326 = vmatpush1.bf16.msra.mxu0 0
      %2327 = vmatprep.subr.bf16.mxu0 0
      %2328 = vmatpush1.bf16.msra.mxu0 0
      %2329 = vmatprep.subr.bf16.mxu0 0
      %2330 = vmatpush1.bf16.msra.mxu0 0
      %2331 = vmatprep.subr.bf16.mxu0 0
      %2332 = vmatpush1.bf16.msra.mxu0 0
      %2333 = vmatprep.subr.bf16.mxu0 0
      %2334 = vmatpush1.bf16.msra.mxu0 0
      %2335 = vmatprep.subr.bf16.mxu0 0
      %2336 = vmatpush1.bf16.msra.mxu0 0
      %2337 = vmatprep.subr.bf16.mxu0 0
      %2338 = vmatpush1.bf16.msra.mxu0 0
      %2339 = vmatprep.subr.bf16.mxu0 0
      %2340 = vmatpush1.bf16.msra.mxu0 0
      %2341 = vmatprep.subr.bf16.mxu0 0
      %2342 = vmatpush1.bf16.msra.mxu0 0
      %2343 = vmatprep.subr.bf16.mxu0 0
      %2344 = vmatpush1.bf16.msra.mxu0 0
      %2345 = vmatprep.mubr.bf16.mxu0 0
      %2346 = vmatmul.mubr.bf16.gmra.mrb[0].mxu0 %v2290
      %v2347 = vpop.f32.mrb[0].mxu0
      %v2348 = vadd.f32 %v2274, %v2347
      %v2349 = vpop.f32.mrb[0].mxu0
      %v2350 = vpop.f32.mrb[0].mxu0
      %v2351 = vadd.f32 %v2274, %v2350
      %v2352 = vpop.f32.mrb[0].mxu0
      %2353 = vmatprep.mubr.bf16.mxu0 0
      %2354 = vmatmul.mubr.bf16.gmra.mrb[0].mxu0 %v2293
      %v2355 = vpop.f32.mrb[0].mxu0
      %v2356 = vadd.f32 %v2274, %v2355
      %v2357 = vpop.f32.mrb[0].mxu0
      %v2358 = vpop.f32.mrb[0].mxu0
      %v2359 = vadd.f32 %v2274, %v2358
      %v2360 = vpop.f32.mrb[0].mxu0
      %2361 = vmatprep.mubr.bf16.mxu0 0
      %2362 = vmatmul.mubr.bf16.gmra.mrb[0].mxu0 %v2296
      %v2363 = vpop.f32.mrb[0].mxu0
      %v2364 = vadd.f32 %v2274, %v2363
      %v2365 = vpop.f32.mrb[0].mxu0
      %v2366 = vpop.f32.mrb[0].mxu0
      %v2367 = vadd.f32 %v2274, %v2366
      %v2368 = vpop.f32.mrb[0].mxu0
      %2369 = vmatprep.mubr.bf16.mxu0 0
      %2370 = vmatmul.mubr.bf16.gmra.mrb[0].mxu0 %v2299
      %v2371 = vpop.f32.mrb[0].mxu0
      %v2372 = vadd.f32 %v2274, %v2371
      %v2373 = vpop.f32.mrb[0].mxu0
      %v2374 = vpop.f32.mrb[0].mxu0
      %v2375 = vadd.f32 %v2274, %v2374
      %v2376 = vpop.f32.mrb[0].mxu0
      %2377 = vmatprep.mubr.bf16.mxu0 0
      %2378 = vmatmul.mubr.bf16.gmra.mrb[0].mxu0 %v2302
      %v2379 = vpop.f32.mrb[0].mxu0
      %v2380 = vadd.f32 %v2274, %v2379
      %v2381 = vpop.f32.mrb[0].mxu0
      %v2382 = vpop.f32.mrb[0].mxu0
      %v2383 = vadd.f32 %v2274, %v2382
      %v2384 = vpop.f32.mrb[0].mxu0
      %2385 = vmatprep.mubr.bf16.mxu0 0
      %2386 = vmatmul.mubr.bf16.gmra.mrb[0].mxu0 %v2305
      %v2387 = vpop.f32.mrb[0].mxu0
      %v2388 = vadd.f32 %v2274, %v2387
      %v2389 = vpop.f32.mrb[0].mxu0
      %v2390 = vpop.f32.mrb[0].mxu0
      %v2391 = vadd.f32 %v2274, %v2390
      %v2392 = vpop.f32.mrb[0].mxu0
      %2393 = vmatprep.mubr.bf16.mxu0 0
      %2394 = vmatmul.mubr.bf16.gmra.mrb[0].mxu0 %v2308
      %v2395 = vpop.f32.mrb[0].mxu0
      %v2396 = vadd.f32 %v2274, %v2395
      %v2397 = vpop.f32.mrb[0].mxu0
      %v2398 = vpop.f32.mrb[0].mxu0
      %v2399 = vadd.f32 %v2274, %v2398
      %v2400 = vpop.f32.mrb[0].mxu0
      %2401 = vmatprep.mubr.bf16.mxu0 0
      %2402 = vmatmul.mubr.bf16.gmra.mrb[0].mxu0 %v2311
      %v2403 = vpop.f32.mrb[0].mxu0
      %v2404 = vadd.f32 %v2274, %v2403
      %v2405 = vpop.f32.mrb[0].mxu0
      %v2406 = vpop.f32.mrb[0].mxu0
      %v2407 = vadd.f32 %v2274, %v2406
      %v2408 = vpop.f32.mrb[0].mxu0
      %2409 = vdwg.mxu0
      %v2410 = vmax.f32 %v2348, 0.0
      %v2411 = vmax.f32 %v2351, 0.0
      %v2412 = vmax.f32 %v2356, 0.0
      %v2413 = vmax.f32 %v2359, 0.0
      %v2414 = vmax.f32 %v2364, 0.0
      %v2415 = vmax.f32 %v2367, 0.0
      %v2416 = vmax.f32 %v2372, 0.0
      %v2417 = vmax.f32 %v2375, 0.0
      %v2418 = vmax.f32 %v2380, 0.0
      %v2419 = vmax.f32 %v2383, 0.0
      %v2420 = vmax.f32 %v2388, 0.0
      %v2421 = vmax.f32 %v2391, 0.0
      %v2422 = vmax.f32 %v2396, 0.0
      %v2423 = vmax.f32 %v2399, 0.0
      %v2424 = vmax.f32 %v2404, 0.0
      %v2425 = vmax.f32 %v2407, 0.0
      %v2426 = vpack.c.bf16 %v2411, %v2410
      %v2427 = vpack.c.bf16 %v2413, %v2412
      %v2428 = vpack.c.bf16 %v2415, %v2414
      %v2429 = vpack.c.bf16 %v2417, %v2416
      %v2430 = vpack.c.bf16 %v2419, %v2418
      %v2431 = vpack.c.bf16 %v2421, %v2420
      %v2432 = vpack.c.bf16 %v2423, %v2422
      %v2433 = vpack.c.bf16 %v2425, %v2424
      %v2434 = vld [vmem:[%s10] sm:$0xf]
      %v2435 = vld [vmem:[%s10 + $0x4] sm:$0xf]
      %v2436 = vld [vmem:[%s10 + $0x8] sm:$0xf]
      %v2437 = vld [vmem:[%s10 + $0xc] sm:$0xf]
      %v2438 = vld [vmem:[%s10 + $0x10] sm:$0xf]
      %v2439 = vld [vmem:[%s10 + $0x14] sm:$0xf]
      %v2440 = vld [vmem:[%s10 + $0x18] sm:$0xf]
      %v2441 = vld [vmem:[%s10 + $0x1c] sm:$0xf]
      %v2442 = vld [vmem:[%s11] sm:$0x1]
      %v2444 = vlaneseq
      %v2445 = vshrl.u32 %v2444, 7
      %v2446 = vsub.s32 0, %v2445
      %v2447 = vrot.slane %v2442, %v2446
      %v2457 = vunpack.c.l.b16 %v2434
      %v2458 = vunpack.c.l.b16 %v2435
      %v2459 = vunpack.c.l.b16 %v2436
      %v2460 = vunpack.c.l.b16 %v2437
      %v2461 = vunpack.c.l.b16 %v2438
      %v2462 = vunpack.c.l.b16 %v2439
      %v2463 = vunpack.c.l.b16 %v2440
      %v2464 = vunpack.c.l.b16 %v2441
      %v2465 = vpack.c.b16 %v2458, %v2457
      %v2466 = vpack.c.b16 %v2460, %v2459
      %v2467 = vpack.c.b16 %v2462, %v2461
      %v2468 = vpack.c.b16 %v2464, %v2463
      %v2474 = vsel %vm1927, %v2426, 0
      %v2477 = vsel %vm1927, %v2427, 0
      %v2480 = vsel %vm1927, %v2428, 0
      %v2483 = vsel %vm1927, %v2429, 0
      %v2486 = vsel %vm1927, %v2430, 0
      %v2489 = vsel %vm1927, %v2431, 0
      %v2492 = vsel %vm1927, %v2432, 0
      %v2495 = vsel %vm1927, %v2433, 0
      %2497 = vmatprep.subr.bf16.mxu0 0
      %2498 = vmatpush1.bf16.msra.mxu0 %v2465
      %2499 = vmatprep.subr.bf16.mxu0 0
      %2500 = vmatpush1.bf16.msra.mxu0 %v2466
      %2501 = vmatprep.subr.bf16.mxu0 0
      %2502 = vmatpush1.bf16.msra.mxu0 %v2467
      %2503 = vmatprep.subr.bf16.mxu0 0
      %2504 = vmatpush1.bf16.msra.mxu0 %v2468
      %2505 = vmatprep.subr.bf16.mxu0 0
      %2506 = vmatpush1.bf16.msra.mxu0 0
      %2507 = vmatprep.subr.bf16.mxu0 0
      %2508 = vmatpush1.bf16.msra.mxu0 0
      %2509 = vmatprep.subr.bf16.mxu0 0
      %2510 = vmatpush1.bf16.msra.mxu0 0
      %2511 = vmatprep.subr.bf16.mxu0 0
      %2512 = vmatpush1.bf16.msra.mxu0 0
      %2513 = vmatprep.subr.bf16.mxu0 0
      %2514 = vmatpush1.bf16.msra.mxu0 0
      %2515 = vmatprep.subr.bf16.mxu0 0
      %2516 = vmatpush1.bf16.msra.mxu0 0
      %2517 = vmatprep.subr.bf16.mxu0 0
      %2518 = vmatpush1.bf16.msra.mxu0 0
      %2519 = vmatprep.subr.bf16.mxu0 0
      %2520 = vmatpush1.bf16.msra.mxu0 0
      %2521 = vmatprep.subr.bf16.mxu0 0
      %2522 = vmatpush1.bf16.msra.mxu0 0
      %2523 = vmatprep.subr.bf16.mxu0 0
      %2524 = vmatpush1.bf16.msra.mxu0 0
      %2525 = vmatprep.subr.bf16.mxu0 0
      %2526 = vmatpush1.bf16.msra.mxu0 0
      %2527 = vmatprep.subr.bf16.mxu0 0
      %2528 = vmatpush1.bf16.msra.mxu0 0
      %2529 = vmatprep.mubr.bf16.mxu0 0
      %2530 = vmatmul.mubr.bf16.gmra.mrb[0].mxu0 %v2474
      %v2531 = vpop.f32.mrb[0].mxu0
      %v2532 = vadd.f32 %v2447, %v2531
      %v2533 = vpop.f32.mrb[0].mxu0
      %v2534 = vpop.f32.mrb[0].mxu0
      %v2535 = vadd.f32 %v2447, %v2534
      %v2536 = vpop.f32.mrb[0].mxu0
      %2537 = vmatprep.mubr.bf16.mxu0 0
      %2538 = vmatmul.mubr.bf16.gmra.mrb[0].mxu0 %v2477
      %v2539 = vpop.f32.mrb[0].mxu0
      %v2540 = vadd.f32 %v2447, %v2539
      %v2541 = vpop.f32.mrb[0].mxu0
      %v2542 = vpop.f32.mrb[0].mxu0
      %v2543 = vadd.f32 %v2447, %v2542
      %v2544 = vpop.f32.mrb[0].mxu0
      %2545 = vmatprep.mubr.bf16.mxu0 0
      %2546 = vmatmul.mubr.bf16.gmra.mrb[0].mxu0 %v2480
      %v2547 = vpop.f32.mrb[0].mxu0
      %v2548 = vadd.f32 %v2447, %v2547
      %v2549 = vpop.f32.mrb[0].mxu0
      %v2550 = vpop.f32.mrb[0].mxu0
      %v2551 = vadd.f32 %v2447, %v2550
      %v2552 = vpop.f32.mrb[0].mxu0
      %2553 = vmatprep.mubr.bf16.mxu0 0
      %2554 = vmatmul.mubr.bf16.gmra.mrb[0].mxu0 %v2483
      %v2555 = vpop.f32.mrb[0].mxu0
      %v2556 = vadd.f32 %v2447, %v2555
      %v2557 = vpop.f32.mrb[0].mxu0
      %v2558 = vpop.f32.mrb[0].mxu0
      %v2559 = vadd.f32 %v2447, %v2558
      %v2560 = vpop.f32.mrb[0].mxu0
      %2561 = vmatprep.mubr.bf16.mxu0 0
      %2562 = vmatmul.mubr.bf16.gmra.mrb[0].mxu0 %v2486
      %v2563 = vpop.f32.mrb[0].mxu0
      %v2564 = vadd.f32 %v2447, %v2563
      %v2565 = vpop.f32.mrb[0].mxu0
      %v2566 = vpop.f32.mrb[0].mxu0
      %v2567 = vadd.f32 %v2447, %v2566
      %v2568 = vpop.f32.mrb[0].mxu0
      %2569 = vmatprep.mubr.bf16.mxu0 0
      %2570 = vmatmul.mubr.bf16.gmra.mrb[0].mxu0 %v2489
      %v2571 = vpop.f32.mrb[0].mxu0
      %v2572 = vadd.f32 %v2447, %v2571
      %v2573 = vpop.f32.mrb[0].mxu0
      %v2574 = vpop.f32.mrb[0].mxu0
      %v2575 = vadd.f32 %v2447, %v2574
      %v2576 = vpop.f32.mrb[0].mxu0
      %2577 = vmatprep.mubr.bf16.mxu0 0
      %2578 = vmatmul.mubr.bf16.gmra.mrb[0].mxu0 %v2492
      %v2579 = vpop.f32.mrb[0].mxu0
      %v2580 = vadd.f32 %v2447, %v2579
      %v2581 = vpop.f32.mrb[0].mxu0
      %v2582 = vpop.f32.mrb[0].mxu0
      %v2583 = vadd.f32 %v2447, %v2582
      %v2584 = vpop.f32.mrb[0].mxu0
      %2585 = vmatprep.mubr.bf16.mxu0 0
      %2586 = vmatmul.mubr.bf16.gmra.mrb[0].mxu0 %v2495
      %v2587 = vpop.f32.mrb[0].mxu0
      %v2588 = vadd.f32 %v2447, %v2587
      %v2589 = vpop.f32.mrb[0].mxu0
      %v2590 = vpop.f32.mrb[0].mxu0
      %v2591 = vadd.f32 %v2447, %v2590
      %v2592 = vpop.f32.mrb[0].mxu0
      %2593 = vdwg.mxu0
      %v2594 = vmax.f32 %v2532, 0.0
      %v2595 = vmax.f32 %v2535, 0.0
      %v2596 = vmax.f32 %v2540, 0.0
      %v2597 = vmax.f32 %v2543, 0.0
      %v2598 = vmax.f32 %v2548, 0.0
      %v2599 = vmax.f32 %v2551, 0.0
      %v2600 = vmax.f32 %v2556, 0.0
      %v2601 = vmax.f32 %v2559, 0.0
      %v2602 = vmax.f32 %v2564, 0.0
      %v2603 = vmax.f32 %v2567, 0.0
      %v2604 = vmax.f32 %v2572, 0.0
      %v2605 = vmax.f32 %v2575, 0.0
      %v2606 = vmax.f32 %v2580, 0.0
      %v2607 = vmax.f32 %v2583, 0.0
      %v2608 = vmax.f32 %v2588, 0.0
      %v2609 = vmax.f32 %v2591, 0.0
      %v2610 = vpack.c.bf16 %v2595, %v2594
      %v2611 = vpack.c.bf16 %v2597, %v2596
      %v2612 = vpack.c.bf16 %v2599, %v2598
      %v2613 = vpack.c.bf16 %v2601, %v2600
      %v2614 = vpack.c.bf16 %v2603, %v2602
      %v2615 = vpack.c.bf16 %v2605, %v2604
      %v2616 = vpack.c.bf16 %v2607, %v2606
      %v2617 = vpack.c.bf16 %v2609, %v2608
      %v2618 = vld [vmem:[%s12] sm:$0xff]
      %v2619 = vld [vmem:[%s12 + $0x8] sm:$0xff]
      %v2620 = vld [vmem:[%s12 + $0x10] sm:$0xff]
      %v2621 = vld [vmem:[%s12 + $0x18] sm:$0xf]
      %v2622 = vld [vmem:[%s12 + $0x1c] sm:$0xff]
      %v2623 = vld [vmem:[%s12 + $0x24] sm:$0xff]
      %v2624 = vld [vmem:[%s12 + $0x2c] sm:$0xff]
      %v2625 = vld [vmem:[%s12 + $0x34] sm:$0xf]
      %v2626 = vld [vmem:[%s12 + $0x38] sm:$0xff]
      %v2627 = vld [vmem:[%s12 + $0x40] sm:$0xff]
      %v2628 = vld [vmem:[%s12 + $0x48] sm:$0xff]
      %v2629 = vld [vmem:[%s12 + $0x50] sm:$0xf]
      %v2630 = vld [vmem:[%s12 + $0x54] sm:$0xff]
      %v2631 = vld [vmem:[%s12 + $0x5c] sm:$0xff]
      %v2632 = vld [vmem:[%s12 + $0x64] sm:$0xff]
      %v2633 = vld [vmem:[%s12 + $0x6c] sm:$0xf]
      %v2634 = vld [vmem:[%s12 + $0x70] sm:$0xff]
      %v2635 = vld [vmem:[%s12 + $0x78] sm:$0xff]
      %v2636 = vld [vmem:[%s12 + $0x80] sm:$0xff]
      %v2637 = vld [vmem:[%s12 + $0x88] sm:$0xf]
      %v2638 = vld [vmem:[%s12 + $0x8c] sm:$0xff]
      %v2639 = vld [vmem:[%s12 + $0x94] sm:$0xff]
      %v2640 = vld [vmem:[%s12 + $0x9c] sm:$0xff]
      %v2641 = vld [vmem:[%s12 + $0xa4] sm:$0xf]
      %v2642 = vld [vmem:[%s12 + $0xa8] sm:$0xff]
      %v2643 = vld [vmem:[%s12 + $0xb0] sm:$0xff]
      %v2644 = vld [vmem:[%s12 + $0xb8] sm:$0xff]
      %v2645 = vld [vmem:[%s12 + $0xc0] sm:$0xf]
      %v2646 = vld [vmem:[%s12 + $0xc4] sm:$0xff]
      %v2647 = vld [vmem:[%s12 + $0xcc] sm:$0xff]
      %v2648 = vld [vmem:[%s12 + $0xd4] sm:$0xff]
      %v2649 = vld [vmem:[%s12 + $0xdc] sm:$0xf]
      %v2650 = vld [vmem:[%s12 + $0xe0] sm:$0xff]
      %v2651 = vld [vmem:[%s12 + $0xe8] sm:$0xff]
      %v2652 = vld [vmem:[%s12 + $0xf0] sm:$0xff]
      %v2653 = vld [vmem:[%s12 + $0xf8] sm:$0xf]
      %v2654 = vld [vmem:[%s12 + $0xfc] sm:$0xff]
      %v2655 = vld [vmem:[%s12 + $0x104] sm:$0xff]
      %v2656 = vld [vmem:[%s12 + $0x10c] sm:$0xff]
      %v2657 = vld [vmem:[%s12 + $0x114] sm:$0xf]
      %v2658 = vld [vmem:[%s12 + $0x118] sm:$0xff]
      %v2659 = vld [vmem:[%s12 + $0x120] sm:$0xff]
      %v2660 = vld [vmem:[%s12 + $0x128] sm:$0xff]
      %v2661 = vld [vmem:[%s12 + $0x130] sm:$0xf]
      %v2662 = vld [vmem:[%s12 + $0x134] sm:$0xff]
      %v2663 = vld [vmem:[%s12 + $0x13c] sm:$0xff]
      %v2664 = vld [vmem:[%s12 + $0x144] sm:$0xff]
      %v2665 = vld [vmem:[%s12 + $0x14c] sm:$0xf]
      %v2666 = vld [vmem:[%s12 + $0x150] sm:$0xff]
      %v2667 = vld [vmem:[%s12 + $0x158] sm:$0xff]
      %v2668 = vld [vmem:[%s12 + $0x160] sm:$0xff]
      %v2669 = vld [vmem:[%s12 + $0x168] sm:$0xf]
      %v2670 = vld [vmem:[%s12 + $0x16c] sm:$0xff]
      %v2671 = vld [vmem:[%s12 + $0x174] sm:$0xff]
      %v2672 = vld [vmem:[%s12 + $0x17c] sm:$0xff]
      %v2673 = vld [vmem:[%s12 + $0x184] sm:$0xf]
      %v2674 = vld [vmem:[%s12 + $0x188] sm:$0xff]
      %v2675 = vld [vmem:[%s12 + $0x190] sm:$0xff]
      %v2676 = vld [vmem:[%s12 + $0x198] sm:$0xff]
      %v2677 = vld [vmem:[%s12 + $0x1a0] sm:$0xf]
      %v2678 = vld [vmem:[%s12 + $0x1a4] sm:$0xff]
      %v2679 = vld [vmem:[%s12 + $0x1ac] sm:$0xff]
      %v2680 = vld [vmem:[%s12 + $0x1b4] sm:$0xff]
      %v2681 = vld [vmem:[%s12 + $0x1bc] sm:$0xf]
      %v2682 = vld [vmem:[%s13] sm:$0x7f]
      %v2684 = vlaneseq
      %v2685 = vshrl.u32 %v2684, 7
      %v2686 = vsub.s32 0, %v2685
      %v2687 = vrot.slane %v2682, %v2686
      %v2688 = vlaneseq
      %v2689 = vshrl.u32 %v2688, 7
      %v2690 = vsub.s32 1, %v2689
      %v2691 = vrot.slane %v2682, %v2690
      %v2692 = vlaneseq
      %v2693 = vshrl.u32 %v2692, 7
      %v2694 = vsub.s32 2, %v2693
      %v2695 = vrot.slane %v2682, %v2694
      %v2696 = vlaneseq
      %v2697 = vshrl.u32 %v2696, 7
      %v2698 = vsub.s32 3, %v2697
      %v2699 = vrot.slane %v2682, %v2698
      %v2700 = vlaneseq
      %v2701 = vshrl.u32 %v2700, 7
      %v2702 = vsub.s32 4, %v2701
      %v2703 = vrot.slane %v2682, %v2702
      %v2704 = vlaneseq
      %v2705 = vshrl.u32 %v2704, 7
      %v2706 = vsub.s32 5, %v2705
      %v2707 = vrot.slane %v2682, %v2706
      %v2708 = vlaneseq
      %v2709 = vshrl.u32 %v2708, 7
      %v2710 = vsub.s32 6, %v2709
      %v2711 = vrot.slane %v2682, %v2710
      %v2783 = vunpack.c.l.b16 %v2618
      %v2784 = vunpack.c.h.b16 %v2618
      %v2785 = vunpack.c.l.b16 %v2619
      %v2786 = vunpack.c.h.b16 %v2619
      %v2787 = vunpack.c.l.b16 %v2620
      %v2788 = vunpack.c.h.b16 %v2620
      %v2789 = vunpack.c.l.b16 %v2621
      %v2790 = vunpack.c.l.b16 %v2622
      %v2791 = vunpack.c.h.b16 %v2622
      %v2792 = vunpack.c.l.b16 %v2623
      %v2793 = vunpack.c.h.b16 %v2623
      %v2794 = vunpack.c.l.b16 %v2624
      %v2795 = vunpack.c.h.b16 %v2624
      %v2796 = vunpack.c.l.b16 %v2625
      %v2797 = vunpack.c.l.b16 %v2626
      %v2798 = vunpack.c.h.b16 %v2626
      %v2799 = vunpack.c.l.b16 %v2627
      %v2800 = vunpack.c.h.b16 %v2627
      %v2801 = vunpack.c.l.b16 %v2628
      %v2802 = vunpack.c.h.b16 %v2628
      %v2803 = vunpack.c.l.b16 %v2629
      %v2804 = vunpack.c.l.b16 %v2630
      %v2805 = vunpack.c.h.b16 %v2630
      %v2806 = vunpack.c.l.b16 %v2631
      %v2807 = vunpack.c.h.b16 %v2631
      %v2808 = vunpack.c.l.b16 %v2632
      %v2809 = vunpack.c.h.b16 %v2632
      %v2810 = vunpack.c.l.b16 %v2633
      %v2811 = vunpack.c.l.b16 %v2634
      %v2812 = vunpack.c.h.b16 %v2634
      %v2813 = vunpack.c.l.b16 %v2635
      %v2814 = vunpack.c.h.b16 %v2635
      %v2815 = vunpack.c.l.b16 %v2636
      %v2816 = vunpack.c.h.b16 %v2636
      %v2817 = vunpack.c.l.b16 %v2637
      %v2818 = vunpack.c.l.b16 %v2638
      %v2819 = vunpack.c.h.b16 %v2638
      %v2820 = vunpack.c.l.b16 %v2639
      %v2821 = vunpack.c.h.b16 %v2639
      %v2822 = vunpack.c.l.b16 %v2640
      %v2823 = vunpack.c.h.b16 %v2640
      %v2824 = vunpack.c.l.b16 %v2641
      %v2825 = vunpack.c.l.b16 %v2642
      %v2826 = vunpack.c.h.b16 %v2642
      %v2827 = vunpack.c.l.b16 %v2643
      %v2828 = vunpack.c.h.b16 %v2643
      %v2829 = vunpack.c.l.b16 %v2644
      %v2830 = vunpack.c.h.b16 %v2644
      %v2831 = vunpack.c.l.b16 %v2645
      %v2832 = vunpack.c.l.b16 %v2646
      %v2833 = vunpack.c.h.b16 %v2646
      %v2834 = vunpack.c.l.b16 %v2647
      %v2835 = vunpack.c.h.b16 %v2647
      %v2836 = vunpack.c.l.b16 %v2648
      %v2837 = vunpack.c.h.b16 %v2648
      %v2838 = vunpack.c.l.b16 %v2649
      %v2839 = vunpack.c.l.b16 %v2650
      %v2840 = vunpack.c.h.b16 %v2650
      %v2841 = vunpack.c.l.b16 %v2651
      %v2842 = vunpack.c.h.b16 %v2651
      %v2843 = vunpack.c.l.b16 %v2652
      %v2844 = vunpack.c.h.b16 %v2652
      %v2845 = vunpack.c.l.b16 %v2653
      %v2846 = vunpack.c.l.b16 %v2654
      %v2847 = vunpack.c.h.b16 %v2654
      %v2848 = vunpack.c.l.b16 %v2655
      %v2849 = vunpack.c.h.b16 %v2655
      %v2850 = vunpack.c.l.b16 %v2656
      %v2851 = vunpack.c.h.b16 %v2656
      %v2852 = vunpack.c.l.b16 %v2657
      %v2853 = vunpack.c.l.b16 %v2658
      %v2854 = vunpack.c.h.b16 %v2658
      %v2855 = vunpack.c.l.b16 %v2659
      %v2856 = vunpack.c.h.b16 %v2659
      %v2857 = vunpack.c.l.b16 %v2660
      %v2858 = vunpack.c.h.b16 %v2660
      %v2859 = vunpack.c.l.b16 %v2661
      %v2860 = vunpack.c.l.b16 %v2662
      %v2861 = vunpack.c.h.b16 %v2662
      %v2862 = vunpack.c.l.b16 %v2663
      %v2863 = vunpack.c.h.b16 %v2663
      %v2864 = vunpack.c.l.b16 %v2664
      %v2865 = vunpack.c.h.b16 %v2664
      %v2866 = vunpack.c.l.b16 %v2665
      %v2867 = vunpack.c.l.b16 %v2666
      %v2868 = vunpack.c.h.b16 %v2666
      %v2869 = vunpack.c.l.b16 %v2667
      %v2870 = vunpack.c.h.b16 %v2667
      %v2871 = vunpack.c.l.b16 %v2668
      %v2872 = vunpack.c.h.b16 %v2668
      %v2873 = vunpack.c.l.b16 %v2669
      %v2874 = vunpack.c.l.b16 %v2670
      %v2875 = vunpack.c.h.b16 %v2670
      %v2876 = vunpack.c.l.b16 %v2671
      %v2877 = vunpack.c.h.b16 %v2671
      %v2878 = vunpack.c.l.b16 %v2672
      %v2879 = vunpack.c.h.b16 %v2672
      %v2880 = vunpack.c.l.b16 %v2673
      %v2881 = vunpack.c.l.b16 %v2674
      %v2882 = vunpack.c.h.b16 %v2674
      %v2883 = vunpack.c.l.b16 %v2675
      %v2884 = vunpack.c.h.b16 %v2675
      %v2885 = vunpack.c.l.b16 %v2676
      %v2886 = vunpack.c.h.b16 %v2676
      %v2887 = vunpack.c.l.b16 %v2677
      %v2888 = vunpack.c.l.b16 %v2678
      %v2889 = vunpack.c.h.b16 %v2678
      %v2890 = vunpack.c.l.b16 %v2679
      %v2891 = vunpack.c.h.b16 %v2679
      %v2892 = vunpack.c.l.b16 %v2680
      %v2893 = vunpack.c.h.b16 %v2680
      %v2894 = vunpack.c.l.b16 %v2681
      %v2895 = vpack.c.b16 %v2790, %v2783
      %v2896 = vpack.c.b16 %v2791, %v2784
      %v2897 = vpack.c.b16 %v2792, %v2785
      %v2898 = vpack.c.b16 %v2793, %v2786
      %v2899 = vpack.c.b16 %v2794, %v2787
      %v2900 = vpack.c.b16 %v2795, %v2788
      %v2901 = vpack.c.b16 %v2796, %v2789
      %v2902 = vpack.c.b16 %v2804, %v2797
      %v2903 = vpack.c.b16 %v2805, %v2798
      %v2904 = vpack.c.b16 %v2806, %v2799
      %v2905 = vpack.c.b16 %v2807, %v2800
      %v2906 = vpack.c.b16 %v2808, %v2801
      %v2907 = vpack.c.b16 %v2809, %v2802
      %v2908 = vpack.c.b16 %v2810, %v2803
      %v2909 = vpack.c.b16 %v2818, %v2811
      %v2910 = vpack.c.b16 %v2819, %v2812
      %v2911 = vpack.c.b16 %v2820, %v2813
      %v2912 = vpack.c.b16 %v2821, %v2814
      %v2913 = vpack.c.b16 %v2822, %v2815
      %v2914 = vpack.c.b16 %v2823, %v2816
      %v2915 = vpack.c.b16 %v2824, %v2817
      %v2916 = vpack.c.b16 %v2832, %v2825
      %v2917 = vpack.c.b16 %v2833, %v2826
      %v2918 = vpack.c.b16 %v2834, %v2827
      %v2919 = vpack.c.b16 %v2835, %v2828
      %v2920 = vpack.c.b16 %v2836, %v2829
      %v2921 = vpack.c.b16 %v2837, %v2830
      %v2922 = vpack.c.b16 %v2838, %v2831
      %v2923 = vpack.c.b16 %v2846, %v2839
      %v2924 = vpack.c.b16 %v2847, %v2840
      %v2925 = vpack.c.b16 %v2848, %v2841
      %v2926 = vpack.c.b16 %v2849, %v2842
      %v2927 = vpack.c.b16 %v2850, %v2843
      %v2928 = vpack.c.b16 %v2851, %v2844
      %v2929 = vpack.c.b16 %v2852, %v2845
      %v2930 = vpack.c.b16 %v2860, %v2853
      %v2931 = vpack.c.b16 %v2861, %v2854
      %v2932 = vpack.c.b16 %v2862, %v2855
      %v2933 = vpack.c.b16 %v2863, %v2856
      %v2934 = vpack.c.b16 %v2864, %v2857
      %v2935 = vpack.c.b16 %v2865, %v2858
      %v2936 = vpack.c.b16 %v2866, %v2859
      %v2937 = vpack.c.b16 %v2874, %v2867
      %v2938 = vpack.c.b16 %v2875, %v2868
      %v2939 = vpack.c.b16 %v2876, %v2869
      %v2940 = vpack.c.b16 %v2877, %v2870
      %v2941 = vpack.c.b16 %v2878, %v2871
      %v2942 = vpack.c.b16 %v2879, %v2872
      %v2943 = vpack.c.b16 %v2880, %v2873
      %v2944 = vpack.c.b16 %v2888, %v2881
      %v2945 = vpack.c.b16 %v2889, %v2882
      %v2946 = vpack.c.b16 %v2890, %v2883
      %v2947 = vpack.c.b16 %v2891, %v2884
      %v2948 = vpack.c.b16 %v2892, %v2885
      %v2949 = vpack.c.b16 %v2893, %v2886
      %v2950 = vpack.c.b16 %v2894, %v2887
      %3007 = vmatprep.subr.bf16.mxu0 %v2896
      %3008 = vmatpush1.bf16.msra.mxu0 %v2895
      %3009 = vmatprep.subr.bf16.mxu0 %v2903
      %3010 = vmatpush1.bf16.msra.mxu0 %v2902
      %3011 = vmatprep.subr.bf16.mxu0 %v2910
      %3012 = vmatpush1.bf16.msra.mxu0 %v2909
      %3013 = vmatprep.subr.bf16.mxu0 %v2917
      %3014 = vmatpush1.bf16.msra.mxu0 %v2916
      %3015 = vmatprep.subr.bf16.mxu0 %v2924
      %3016 = vmatpush1.bf16.msra.mxu0 %v2923
      %3017 = vmatprep.subr.bf16.mxu0 %v2931
      %3018 = vmatpush1.bf16.msra.mxu0 %v2930
      %3019 = vmatprep.subr.bf16.mxu0 %v2938
      %3020 = vmatpush1.bf16.msra.mxu0 %v2937
      %3021 = vmatprep.subr.bf16.mxu0 %v2945
      %3022 = vmatpush1.bf16.msra.mxu0 %v2944
      %3023 = vmatprep.subr.bf16.mxu0 0
      %3024 = vmatpush1.bf16.msra.mxu0 0
      %3025 = vmatprep.subr.bf16.mxu0 0
      %3026 = vmatpush1.bf16.msra.mxu0 0
      %3027 = vmatprep.subr.bf16.mxu0 0
      %3028 = vmatpush1.bf16.msra.mxu0 0
      %3029 = vmatprep.subr.bf16.mxu0 0
      %3030 = vmatpush1.bf16.msra.mxu0 0
      %3031 = vmatprep.subr.bf16.mxu0 0
      %3032 = vmatpush1.bf16.msra.mxu0 0
      %3033 = vmatprep.subr.bf16.mxu0 0
      %3034 = vmatpush1.bf16.msra.mxu0 0
      %3035 = vmatprep.subr.bf16.mxu0 0
      %3036 = vmatpush1.bf16.msra.mxu0 0
      %3037 = vmatprep.subr.bf16.mxu0 0
      %3038 = vmatpush1.bf16.msra.mxu0 0
      %3039 = vmatprep.mubr.bf16.mxu0 0
      %3040 = vmatmul.mubr.bf16.gmra.mrb[0].mxu0 %v2610
      %v3041 = vpop.f32.mrb[0].mxu0
      %v3042 = vadd.f32 %v2687, %v3041
      %v3043 = vpop.f32.mrb[0].mxu0
      %v3044 = vadd.f32 %v2691, %v3043
      %v3045 = vpop.f32.mrb[0].mxu0
      %v3046 = vadd.f32 %v2687, %v3045
      %v3047 = vpop.f32.mrb[0].mxu0
      %v3048 = vadd.f32 %v2691, %v3047
      %3049 = vmatprep.mubr.bf16.mxu0 0
      %3050 = vmatmul.mubr.bf16.gmra.mrb[0].mxu0 %v2611
      %v3051 = vpop.f32.mrb[0].mxu0
      %v3052 = vadd.f32 %v2687, %v3051
      %v3053 = vpop.f32.mrb[0].mxu0
      %v3054 = vadd.f32 %v2691, %v3053
      %v3055 = vpop.f32.mrb[0].mxu0
      %v3056 = vadd.f32 %v2687, %v3055
      %v3057 = vpop.f32.mrb[0].mxu0
      %v3058 = vadd.f32 %v2691, %v3057
      %3059 = vmatprep.mubr.bf16.mxu0 0
      %3060 = vmatmul.mubr.bf16.gmra.mrb[0].mxu0 %v2612
      %v3061 = vpop.f32.mrb[0].mxu0
      %v3062 = vadd.f32 %v2687, %v3061
      %v3063 = vpop.f32.mrb[0].mxu0
      %v3064 = vadd.f32 %v2691, %v3063
      %v3065 = vpop.f32.mrb[0].mxu0
      %v3066 = vadd.f32 %v2687, %v3065
      %v3067 = vpop.f32.mrb[0].mxu0
      %v3068 = vadd.f32 %v2691, %v3067
      %3069 = vmatprep.mubr.bf16.mxu0 0
      %3070 = vmatmul.mubr.bf16.gmra.mrb[0].mxu0 %v2613
      %v3071 = vpop.f32.mrb[0].mxu0
      %v3072 = vadd.f32 %v2687, %v3071
      %v3073 = vpop.f32.mrb[0].mxu0
      %v3074 = vadd.f32 %v2691, %v3073
      %v3075 = vpop.f32.mrb[0].mxu0
      %v3076 = vadd.f32 %v2687, %v3075
      %v3077 = vpop.f32.mrb[0].mxu0
      %v3078 = vadd.f32 %v2691, %v3077
      %3079 = vmatprep.mubr.bf16.mxu0 0
      %3080 = vmatmul.mubr.bf16.gmra.mrb[0].mxu0 %v2614
      %v3081 = vpop.f32.mrb[0].mxu0
      %v3082 = vadd.f32 %v2687, %v3081
      %v3083 = vpop.f32.mrb[0].mxu0
      %v3084 = vadd.f32 %v2691, %v3083
      %v3085 = vpop.f32.mrb[0].mxu0
      %v3086 = vadd.f32 %v2687, %v3085
      %v3087 = vpop.f32.mrb[0].mxu0
      %v3088 = vadd.f32 %v2691, %v3087
      %3089 = vmatprep.mubr.bf16.mxu0 0
      %3090 = vmatmul.mubr.bf16.gmra.mrb[0].mxu0 %v2615
      %v3091 = vpop.f32.mrb[0].mxu0
      %v3092 = vadd.f32 %v2687, %v3091
      %v3093 = vpop.f32.mrb[0].mxu0
      %v3094 = vadd.f32 %v2691, %v3093
      %v3095 = vpop.f32.mrb[0].mxu0
      %v3096 = vadd.f32 %v2687, %v3095
      %v3097 = vpop.f32.mrb[0].mxu0
      %v3098 = vadd.f32 %v2691, %v3097
      %3099 = vmatprep.mubr.bf16.mxu0 0
      %3100 = vmatmul.mubr.bf16.gmra.mrb[0].mxu0 %v2616
      %v3101 = vpop.f32.mrb[0].mxu0
      %v3102 = vadd.f32 %v2687, %v3101
      %v3103 = vpop.f32.mrb[0].mxu0
      %v3104 = vadd.f32 %v2691, %v3103
      %v3105 = vpop.f32.mrb[0].mxu0
      %v3106 = vadd.f32 %v2687, %v3105
      %v3107 = vpop.f32.mrb[0].mxu0
      %v3108 = vadd.f32 %v2691, %v3107
      %3109 = vmatprep.mubr.bf16.mxu0 0
      %3110 = vmatmul.mubr.bf16.gmra.mrb[0].mxu0 %v2617
      %v3111 = vpop.f32.mrb[0].mxu0
      %v3112 = vadd.f32 %v2687, %v3111
      %v3113 = vpop.f32.mrb[0].mxu0
      %v3114 = vadd.f32 %v2691, %v3113
      %v3115 = vpop.f32.mrb[0].mxu0
      %v3116 = vadd.f32 %v2687, %v3115
      %v3117 = vpop.f32.mrb[0].mxu0
      %v3118 = vadd.f32 %v2691, %v3117
      %3119 = vdwg.mxu0
      %3120 = vmatprep.subr.bf16.mxu0 %v2898
      %3121 = vmatpush1.bf16.msra.mxu0 %v2897
      %3122 = vmatprep.subr.bf16.mxu0 %v2905
      %3123 = vmatpush1.bf16.msra.mxu0 %v2904
      %3124 = vmatprep.subr.bf16.mxu0 %v2912
      %3125 = vmatpush1.bf16.msra.mxu0 %v2911
      %3126 = vmatprep.subr.bf16.mxu0 %v2919
      %3127 = vmatpush1.bf16.msra.mxu0 %v2918
      %3128 = vmatprep.subr.bf16.mxu0 %v2926
      %3129 = vmatpush1.bf16.msra.mxu0 %v2925
      %3130 = vmatprep.subr.bf16.mxu0 %v2933
      %3131 = vmatpush1.bf16.msra.mxu0 %v2932
      %3132 = vmatprep.subr.bf16.mxu0 %v2940
      %3133 = vmatpush1.bf16.msra.mxu0 %v2939
      %3134 = vmatprep.subr.bf16.mxu0 %v2947
      %3135 = vmatpush1.bf16.msra.mxu0 %v2946
      %3136 = vmatprep.subr.bf16.mxu0 0
      %3137 = vmatpush1.bf16.msra.mxu0 0
      %3138 = vmatprep.subr.bf16.mxu0 0
      %3139 = vmatpush1.bf16.msra.mxu0 0
      %3140 = vmatprep.subr.bf16.mxu0 0
      %3141 = vmatpush1.bf16.msra.mxu0 0
      %3142 = vmatprep.subr.bf16.mxu0 0
      %3143 = vmatpush1.bf16.msra.mxu0 0
      %3144 = vmatprep.subr.bf16.mxu0 0
      %3145 = vmatpush1.bf16.msra.mxu0 0
      %3146 = vmatprep.subr.bf16.mxu0 0
      %3147 = vmatpush1.bf16.msra.mxu0 0
      %3148 = vmatprep.subr.bf16.mxu0 0
      %3149 = vmatpush1.bf16.msra.mxu0 0
      %3150 = vmatprep.subr.bf16.mxu0 0
      %3151 = vmatpush1.bf16.msra.mxu0 0
      %3152 = vmatprep.mubr.bf16.mxu0 0
      %3153 = vmatmul.mubr.bf16.gmra.mrb[0].mxu0 %v2610
      %v3154 = vpop.f32.mrb[0].mxu0
      %v3155 = vadd.f32 %v2695, %v3154
      %v3156 = vpop.f32.mrb[0].mxu0
      %v3157 = vadd.f32 %v2699, %v3156
      %v3158 = vpop.f32.mrb[0].mxu0
      %v3159 = vadd.f32 %v2695, %v3158
      %v3160 = vpop.f32.mrb[0].mxu0
      %v3161 = vadd.f32 %v2699, %v3160
      %3162 = vmatprep.mubr.bf16.mxu0 0
      %3163 = vmatmul.mubr.bf16.gmra.mrb[0].mxu0 %v2611
      %v3164 = vpop.f32.mrb[0].mxu0
      %v3165 = vadd.f32 %v2695, %v3164
      %v3166 = vpop.f32.mrb[0].mxu0
      %v3167 = vadd.f32 %v2699, %v3166
      %v3168 = vpop.f32.mrb[0].mxu0
      %v3169 = vadd.f32 %v2695, %v3168
      %v3170 = vpop.f32.mrb[0].mxu0
      %v3171 = vadd.f32 %v2699, %v3170
      %3172 = vmatprep.mubr.bf16.mxu0 0
      %3173 = vmatmul.mubr.bf16.gmra.mrb[0].mxu0 %v2612
      %v3174 = vpop.f32.mrb[0].mxu0
      %v3175 = vadd.f32 %v2695, %v3174
      %v3176 = vpop.f32.mrb[0].mxu0
      %v3177 = vadd.f32 %v2699, %v3176
      %v3178 = vpop.f32.mrb[0].mxu0
      %v3179 = vadd.f32 %v2695, %v3178
      %v3180 = vpop.f32.mrb[0].mxu0
      %v3181 = vadd.f32 %v2699, %v3180
      %3182 = vmatprep.mubr.bf16.mxu0 0
      %3183 = vmatmul.mubr.bf16.gmra.mrb[0].mxu0 %v2613
      %v3184 = vpop.f32.mrb[0].mxu0
      %v3185 = vadd.f32 %v2695, %v3184
      %v3186 = vpop.f32.mrb[0].mxu0
      %v3187 = vadd.f32 %v2699, %v3186
      %v3188 = vpop.f32.mrb[0].mxu0
      %v3189 = vadd.f32 %v2695, %v3188
      %v3190 = vpop.f32.mrb[0].mxu0
      %v3191 = vadd.f32 %v2699, %v3190
      %3192 = vmatprep.mubr.bf16.mxu0 0
      %3193 = vmatmul.mubr.bf16.gmra.mrb[0].mxu0 %v2614
      %v3194 = vpop.f32.mrb[0].mxu0
      %v3195 = vadd.f32 %v2695, %v3194
      %v3196 = vpop.f32.mrb[0].mxu0
      %v3197 = vadd.f32 %v2699, %v3196
      %v3198 = vpop.f32.mrb[0].mxu0
      %v3199 = vadd.f32 %v2695, %v3198
      %v3200 = vpop.f32.mrb[0].mxu0
      %v3201 = vadd.f32 %v2699, %v3200
      %3202 = vmatprep.mubr.bf16.mxu0 0
      %3203 = vmatmul.mubr.bf16.gmra.mrb[0].mxu0 %v2615
      %v3204 = vpop.f32.mrb[0].mxu0
      %v3205 = vadd.f32 %v2695, %v3204
      %v3206 = vpop.f32.mrb[0].mxu0
      %v3207 = vadd.f32 %v2699, %v3206
      %v3208 = vpop.f32.mrb[0].mxu0
      %v3209 = vadd.f32 %v2695, %v3208
      %v3210 = vpop.f32.mrb[0].mxu0
      %v3211 = vadd.f32 %v2699, %v3210
      %3212 = vmatprep.mubr.bf16.mxu0 0
      %3213 = vmatmul.mubr.bf16.gmra.mrb[0].mxu0 %v2616
      %v3214 = vpop.f32.mrb[0].mxu0
      %v3215 = vadd.f32 %v2695, %v3214
      %v3216 = vpop.f32.mrb[0].mxu0
      %v3217 = vadd.f32 %v2699, %v3216
      %v3218 = vpop.f32.mrb[0].mxu0
      %v3219 = vadd.f32 %v2695, %v3218
      %v3220 = vpop.f32.mrb[0].mxu0
      %v3221 = vadd.f32 %v2699, %v3220
      %3222 = vmatprep.mubr.bf16.mxu0 0
      %3223 = vmatmul.mubr.bf16.gmra.mrb[0].mxu0 %v2617
      %v3224 = vpop.f32.mrb[0].mxu0
      %v3225 = vadd.f32 %v2695, %v3224
      %v3226 = vpop.f32.mrb[0].mxu0
      %v3227 = vadd.f32 %v2699, %v3226
      %v3228 = vpop.f32.mrb[0].mxu0
      %v3229 = vadd.f32 %v2695, %v3228
      %v3230 = vpop.f32.mrb[0].mxu0
      %v3231 = vadd.f32 %v2699, %v3230
      %3232 = vdwg.mxu0
      %3233 = vmatprep.subr.bf16.mxu0 %v2900
      %3234 = vmatpush1.bf16.msra.mxu0 %v2899
      %3235 = vmatprep.subr.bf16.mxu0 %v2907
      %3236 = vmatpush1.bf16.msra.mxu0 %v2906
      %3237 = vmatprep.subr.bf16.mxu0 %v2914
      %3238 = vmatpush1.bf16.msra.mxu0 %v2913
      %3239 = vmatprep.subr.bf16.mxu0 %v2921
      %3240 = vmatpush1.bf16.msra.mxu0 %v2920
      %3241 = vmatprep.subr.bf16.mxu0 %v2928
      %3242 = vmatpush1.bf16.msra.mxu0 %v2927
      %3243 = vmatprep.subr.bf16.mxu0 %v2935
      %3244 = vmatpush1.bf16.msra.mxu0 %v2934
      %3245 = vmatprep.subr.bf16.mxu0 %v2942
      %3246 = vmatpush1.bf16.msra.mxu0 %v2941
      %3247 = vmatprep.subr.bf16.mxu0 %v2949
      %3248 = vmatpush1.bf16.msra.mxu0 %v2948
      %3249 = vmatprep.subr.bf16.mxu0 0
      %3250 = vmatpush1.bf16.msra.mxu0 0
      %3251 = vmatprep.subr.bf16.mxu0 0
      %3252 = vmatpush1.bf16.msra.mxu0 0
      %3253 = vmatprep.subr.bf16.mxu0 0
      %3254 = vmatpush1.bf16.msra.mxu0 0
      %3255 = vmatprep.subr.bf16.mxu0 0
      %3256 = vmatpush1.bf16.msra.mxu0 0
      %3257 = vmatprep.subr.bf16.mxu0 0
      %3258 = vmatpush1.bf16.msra.mxu0 0
      %3259 = vmatprep.subr.bf16.mxu0 0
      %3260 = vmatpush1.bf16.msra.mxu0 0
      %3261 = vmatprep.subr.bf16.mxu0 0
      %3262 = vmatpush1.bf16.msra.mxu0 0
      %3263 = vmatprep.subr.bf16.mxu0 0
      %3264 = vmatpush1.bf16.msra.mxu0 0
      %3265 = vmatprep.mubr.bf16.mxu0 0
      %3266 = vmatmul.mubr.bf16.gmra.mrb[0].mxu0 %v2610
      %v3267 = vpop.f32.mrb[0].mxu0
      %v3268 = vadd.f32 %v2703, %v3267
      %v3269 = vpop.f32.mrb[0].mxu0
      %v3270 = vadd.f32 %v2707, %v3269
      %v3271 = vpop.f32.mrb[0].mxu0
      %v3272 = vadd.f32 %v2703, %v3271
      %v3273 = vpop.f32.mrb[0].mxu0
      %v3274 = vadd.f32 %v2707, %v3273
      %3275 = vmatprep.mubr.bf16.mxu0 0
      %3276 = vmatmul.mubr.bf16.gmra.mrb[0].mxu0 %v2611
      %v3277 = vpop.f32.mrb[0].mxu0
      %v3278 = vadd.f32 %v2703, %v3277
      %v3279 = vpop.f32.mrb[0].mxu0
      %v3280 = vadd.f32 %v2707, %v3279
      %v3281 = vpop.f32.mrb[0].mxu0
      %v3282 = vadd.f32 %v2703, %v3281
      %v3283 = vpop.f32.mrb[0].mxu0
      %v3284 = vadd.f32 %v2707, %v3283
      %3285 = vmatprep.mubr.bf16.mxu0 0
      %3286 = vmatmul.mubr.bf16.gmra.mrb[0].mxu0 %v2612
      %v3287 = vpop.f32.mrb[0].mxu0
      %v3288 = vadd.f32 %v2703, %v3287
      %v3289 = vpop.f32.mrb[0].mxu0
      %v3290 = vadd.f32 %v2707, %v3289
      %v3291 = vpop.f32.mrb[0].mxu0
      %v3292 = vadd.f32 %v2703, %v3291
      %v3293 = vpop.f32.mrb[0].mxu0
      %v3294 = vadd.f32 %v2707, %v3293
      %3295 = vmatprep.mubr.bf16.mxu0 0
      %3296 = vmatmul.mubr.bf16.gmra.mrb[0].mxu0 %v2613
      %v3297 = vpop.f32.mrb[0].mxu0
      %v3298 = vadd.f32 %v2703, %v3297
      %v3299 = vpop.f32.mrb[0].mxu0
      %v3300 = vadd.f32 %v2707, %v3299
      %v3301 = vpop.f32.mrb[0].mxu0
      %v3302 = vadd.f32 %v2703, %v3301
      %v3303 = vpop.f32.mrb[0].mxu0
      %v3304 = vadd.f32 %v2707, %v3303
      %3305 = vmatprep.mubr.bf16.mxu0 0
      %3306 = vmatmul.mubr.bf16.gmra.mrb[0].mxu0 %v2614
      %v3307 = vpop.f32.mrb[0].mxu0
      %v3308 = vadd.f32 %v2703, %v3307
      %v3309 = vpop.f32.mrb[0].mxu0
      %v3310 = vadd.f32 %v2707, %v3309
      %v3311 = vpop.f32.mrb[0].mxu0
      %v3312 = vadd.f32 %v2703, %v3311
      %v3313 = vpop.f32.mrb[0].mxu0
      %v3314 = vadd.f32 %v2707, %v3313
      %3315 = vmatprep.mubr.bf16.mxu0 0
      %3316 = vmatmul.mubr.bf16.gmra.mrb[0].mxu0 %v2615
      %v3317 = vpop.f32.mrb[0].mxu0
      %v3318 = vadd.f32 %v2703, %v3317
      %v3319 = vpop.f32.mrb[0].mxu0
      %v3320 = vadd.f32 %v2707, %v3319
      %v3321 = vpop.f32.mrb[0].mxu0
      %v3322 = vadd.f32 %v2703, %v3321
      %v3323 = vpop.f32.mrb[0].mxu0
      %v3324 = vadd.f32 %v2707, %v3323
      %3325 = vmatprep.mubr.bf16.mxu0 0
      %3326 = vmatmul.mubr.bf16.gmra.mrb[0].mxu0 %v2616
      %v3327 = vpop.f32.mrb[0].mxu0
      %v3328 = vadd.f32 %v2703, %v3327
      %v3329 = vpop.f32.mrb[0].mxu0
      %v3330 = vadd.f32 %v2707, %v3329
      %v3331 = vpop.f32.mrb[0].mxu0
      %v3332 = vadd.f32 %v2703, %v3331
      %v3333 = vpop.f32.mrb[0].mxu0
      %v3334 = vadd.f32 %v2707, %v3333
      %3335 = vmatprep.mubr.bf16.mxu0 0
      %3336 = vmatmul.mubr.bf16.gmra.mrb[0].mxu0 %v2617
      %v3337 = vpop.f32.mrb[0].mxu0
      %v3338 = vadd.f32 %v2703, %v3337
      %v3339 = vpop.f32.mrb[0].mxu0
      %v3340 = vadd.f32 %v2707, %v3339
      %v3341 = vpop.f32.mrb[0].mxu0
      %v3342 = vadd.f32 %v2703, %v3341
      %v3343 = vpop.f32.mrb[0].mxu0
      %v3344 = vadd.f32 %v2707, %v3343
      %3345 = vdwg.mxu0
      %3346 = vmatprep.subr.bf16.mxu0 0
      %3347 = vmatpush1.bf16.msra.mxu0 %v2901
      %3348 = vmatprep.subr.bf16.mxu0 0
      %3349 = vmatpush1.bf16.msra.mxu0 %v2908
      %3350 = vmatprep.subr.bf16.mxu0 0
      %3351 = vmatpush1.bf16.msra.mxu0 %v2915
      %3352 = vmatprep.subr.bf16.mxu0 0
      %3353 = vmatpush1.bf16.msra.mxu0 %v2922
      %3354 = vmatprep.subr.bf16.mxu0 0
      %3355 = vmatpush1.bf16.msra.mxu0 %v2929
      %3356 = vmatprep.subr.bf16.mxu0 0
      %3357 = vmatpush1.bf16.msra.mxu0 %v2936
      %3358 = vmatprep.subr.bf16.mxu0 0
      %3359 = vmatpush1.bf16.msra.mxu0 %v2943
      %3360 = vmatprep.subr.bf16.mxu0 0
      %3361 = vmatpush1.bf16.msra.mxu0 %v2950
      %3362 = vmatprep.subr.bf16.mxu0 0
      %3363 = vmatpush1.bf16.msra.mxu0 0
      %3364 = vmatprep.subr.bf16.mxu0 0
      %3365 = vmatpush1.bf16.msra.mxu0 0
      %3366 = vmatprep.subr.bf16.mxu0 0
      %3367 = vmatpush1.bf16.msra.mxu0 0
      %3368 = vmatprep.subr.bf16.mxu0 0
      %3369 = vmatpush1.bf16.msra.mxu0 0
      %3370 = vmatprep.subr.bf16.mxu0 0
      %3371 = vmatpush1.bf16.msra.mxu0 0
      %3372 = vmatprep.subr.bf16.mxu0 0
      %3373 = vmatpush1.bf16.msra.mxu0 0
      %3374 = vmatprep.subr.bf16.mxu0 0
      %3375 = vmatpush1.bf16.msra.mxu0 0
      %3376 = vmatprep.subr.bf16.mxu0 0
      %3377 = vmatpush1.bf16.msra.mxu0 0
      %3378 = vmatprep.mubr.bf16.mxu0 0
      %3379 = vmatmul.mubr.bf16.gmra.mrb[0].mxu0 %v2610
      %v3380 = vpop.f32.mrb[0].mxu0
      %v3381 = vadd.f32 %v2711, %v3380
      %v3382 = vpop.f32.mrb[0].mxu0
      %v3383 = vpop.f32.mrb[0].mxu0
      %v3384 = vadd.f32 %v2711, %v3383
      %v3385 = vpop.f32.mrb[0].mxu0
      %3386 = vmatprep.mubr.bf16.mxu0 0
      %3387 = vmatmul.mubr.bf16.gmra.mrb[0].mxu0 %v2611
      %v3388 = vpop.f32.mrb[0].mxu0
      %v3389 = vadd.f32 %v2711, %v3388
      %v3390 = vpop.f32.mrb[0].mxu0
      %v3391 = vpop.f32.mrb[0].mxu0
      %v3392 = vadd.f32 %v2711, %v3391
      %v3393 = vpop.f32.mrb[0].mxu0
      %3394 = vmatprep.mubr.bf16.mxu0 0
      %3395 = vmatmul.mubr.bf16.gmra.mrb[0].mxu0 %v2612
      %v3396 = vpop.f32.mrb[0].mxu0
      %v3397 = vadd.f32 %v2711, %v3396
      %v3398 = vpop.f32.mrb[0].mxu0
      %v3399 = vpop.f32.mrb[0].mxu0
      %v3400 = vadd.f32 %v2711, %v3399
      %v3401 = vpop.f32.mrb[0].mxu0
      %3402 = vmatprep.mubr.bf16.mxu0 0
      %3403 = vmatmul.mubr.bf16.gmra.mrb[0].mxu0 %v2613
      %v3404 = vpop.f32.mrb[0].mxu0
      %v3405 = vadd.f32 %v2711, %v3404
      %v3406 = vpop.f32.mrb[0].mxu0
      %v3407 = vpop.f32.mrb[0].mxu0
      %v3408 = vadd.f32 %v2711, %v3407
      %v3409 = vpop.f32.mrb[0].mxu0
      %3410 = vmatprep.mubr.bf16.mxu0 0
      %3411 = vmatmul.mubr.bf16.gmra.mrb[0].mxu0 %v2614
      %v3412 = vpop.f32.mrb[0].mxu0
      %v3413 = vadd.f32 %v2711, %v3412
      %v3414 = vpop.f32.mrb[0].mxu0
      %v3415 = vpop.f32.mrb[0].mxu0
      %v3416 = vadd.f32 %v2711, %v3415
      %v3417 = vpop.f32.mrb[0].mxu0
      %3418 = vmatprep.mubr.bf16.mxu0 0
      %3419 = vmatmul.mubr.bf16.gmra.mrb[0].mxu0 %v2615
      %v3420 = vpop.f32.mrb[0].mxu0
      %v3421 = vadd.f32 %v2711, %v3420
      %v3422 = vpop.f32.mrb[0].mxu0
      %v3423 = vpop.f32.mrb[0].mxu0
      %v3424 = vadd.f32 %v2711, %v3423
      %v3425 = vpop.f32.mrb[0].mxu0
      %3426 = vmatprep.mubr.bf16.mxu0 0
      %3427 = vmatmul.mubr.bf16.gmra.mrb[0].mxu0 %v2616
      %v3428 = vpop.f32.mrb[0].mxu0
      %v3429 = vadd.f32 %v2711, %v3428
      %v3430 = vpop.f32.mrb[0].mxu0
      %v3431 = vpop.f32.mrb[0].mxu0
      %v3432 = vadd.f32 %v2711, %v3431
      %v3433 = vpop.f32.mrb[0].mxu0
      %3434 = vmatprep.mubr.bf16.mxu0 0
      %3435 = vmatmul.mubr.bf16.gmra.mrb[0].mxu0 %v2617
      %v3436 = vpop.f32.mrb[0].mxu0
      %v3437 = vadd.f32 %v2711, %v3436
      %v3438 = vpop.f32.mrb[0].mxu0
      %v3439 = vpop.f32.mrb[0].mxu0
      %v3440 = vadd.f32 %v2711, %v3439
      %v3441 = vpop.f32.mrb[0].mxu0
      %3442 = vdwg.mxu0
      %v3443 = vpack.c.bf16 %v3046, %v3042
      %v3444 = vpack.c.bf16 %v3048, %v3044
      %v3445 = vpack.c.bf16 %v3159, %v3155
      %v3446 = vpack.c.bf16 %v3161, %v3157
      %v3447 = vpack.c.bf16 %v3272, %v3268
      %v3448 = vpack.c.bf16 %v3274, %v3270
      %v3449 = vpack.c.bf16 %v3384, %v3381
      %v3450 = vpack.c.bf16 %v3056, %v3052
      %v3451 = vpack.c.bf16 %v3058, %v3054
      %v3452 = vpack.c.bf16 %v3169, %v3165
      %v3453 = vpack.c.bf16 %v3171, %v3167
      %v3454 = vpack.c.bf16 %v3282, %v3278
      %v3455 = vpack.c.bf16 %v3284, %v3280
      %v3456 = vpack.c.bf16 %v3392, %v3389
      %v3457 = vpack.c.bf16 %v3066, %v3062
      %v3458 = vpack.c.bf16 %v3068, %v3064
      %v3459 = vpack.c.bf16 %v3179, %v3175
      %v3460 = vpack.c.bf16 %v3181, %v3177
      %v3461 = vpack.c.bf16 %v3292, %v3288
      %v3462 = vpack.c.bf16 %v3294, %v3290
      %v3463 = vpack.c.bf16 %v3400, %v3397
      %v3464 = vpack.c.bf16 %v3076, %v3072
      %v3465 = vpack.c.bf16 %v3078, %v3074
      %v3466 = vpack.c.bf16 %v3189, %v3185
      %v3467 = vpack.c.bf16 %v3191, %v3187
      %v3468 = vpack.c.bf16 %v3302, %v3298
      %v3469 = vpack.c.bf16 %v3304, %v3300
      %v3470 = vpack.c.bf16 %v3408, %v3405
      %v3471 = vpack.c.bf16 %v3086, %v3082
      %v3472 = vpack.c.bf16 %v3088, %v3084
      %v3473 = vpack.c.bf16 %v3199, %v3195
      %v3474 = vpack.c.bf16 %v3201, %v3197
      %v3475 = vpack.c.bf16 %v3312, %v3308
      %v3476 = vpack.c.bf16 %v3314, %v3310
      %v3477 = vpack.c.bf16 %v3416, %v3413
      %v3478 = vpack.c.bf16 %v3096, %v3092
      %v3479 = vpack.c.bf16 %v3098, %v3094
      %v3480 = vpack.c.bf16 %v3209, %v3205
      %v3481 = vpack.c.bf16 %v3211, %v3207
      %v3482 = vpack.c.bf16 %v3322, %v3318
      %v3483 = vpack.c.bf16 %v3324, %v3320
      %v3484 = vpack.c.bf16 %v3424, %v3421
      %v3485 = vpack.c.bf16 %v3106, %v3102
      %v3486 = vpack.c.bf16 %v3108, %v3104
      %v3487 = vpack.c.bf16 %v3219, %v3215
      %v3488 = vpack.c.bf16 %v3221, %v3217
      %v3489 = vpack.c.bf16 %v3332, %v3328
      %v3490 = vpack.c.bf16 %v3334, %v3330
      %v3491 = vpack.c.bf16 %v3432, %v3429
      %v3492 = vpack.c.bf16 %v3116, %v3112
      %v3493 = vpack.c.bf16 %v3118, %v3114
      %v3494 = vpack.c.bf16 %v3229, %v3225
      %v3495 = vpack.c.bf16 %v3231, %v3227
      %v3496 = vpack.c.bf16 %v3342, %v3338
      %v3497 = vpack.c.bf16 %v3344, %v3340
      %v3498 = vpack.c.bf16 %v3440, %v3437
      %v3499 = vxor.u32 %v3443, 2147516416
      %v3500 = vxor.u32 %v3444, 2147516416
      %v3501 = vxor.u32 %v3445, 2147516416
      %v3502 = vxor.u32 %v3446, 2147516416
      %v3503 = vxor.u32 %v3447, 2147516416
      %v3504 = vxor.u32 %v3448, 2147516416
      %v3505 = vxor.u32 %v3449, 2147516416
      %v3506 = vxor.u32 %v3450, 2147516416
      %v3507 = vxor.u32 %v3451, 2147516416
      %v3508 = vxor.u32 %v3452, 2147516416
      %v3509 = vxor.u32 %v3453, 2147516416
      %v3510 = vxor.u32 %v3454, 2147516416
      %v3511 = vxor.u32 %v3455, 2147516416
      %v3512 = vxor.u32 %v3456, 2147516416
      %v3513 = vxor.u32 %v3457, 2147516416
      %v3514 = vxor.u32 %v3458, 2147516416
      %v3515 = vxor.u32 %v3459, 2147516416
      %v3516 = vxor.u32 %v3460, 2147516416
      %v3517 = vxor.u32 %v3461, 2147516416
      %v3518 = vxor.u32 %v3462, 2147516416
      %v3519 = vxor.u32 %v3463, 2147516416
      %v3520 = vxor.u32 %v3464, 2147516416
      %v3521 = vxor.u32 %v3465, 2147516416
      %v3522 = vxor.u32 %v3466, 2147516416
      %v3523 = vxor.u32 %v3467, 2147516416
      %v3524 = vxor.u32 %v3468, 2147516416
      %v3525 = vxor.u32 %v3469, 2147516416
      %v3526 = vxor.u32 %v3470, 2147516416
      %v3527 = vxor.u32 %v3471, 2147516416
      %v3528 = vxor.u32 %v3472, 2147516416
      %v3529 = vxor.u32 %v3473, 2147516416
      %v3530 = vxor.u32 %v3474, 2147516416
      %v3531 = vxor.u32 %v3475, 2147516416
      %v3532 = vxor.u32 %v3476, 2147516416
      %v3533 = vxor.u32 %v3477, 2147516416
      %v3534 = vxor.u32 %v3478, 2147516416
      %v3535 = vxor.u32 %v3479, 2147516416
      %v3536 = vxor.u32 %v3480, 2147516416
      %v3537 = vxor.u32 %v3481, 2147516416
      %v3538 = vxor.u32 %v3482, 2147516416
      %v3539 = vxor.u32 %v3483, 2147516416
      %v3540 = vxor.u32 %v3484, 2147516416
      %v3541 = vxor.u32 %v3485, 2147516416
      %v3542 = vxor.u32 %v3486, 2147516416
      %v3543 = vxor.u32 %v3487, 2147516416
      %v3544 = vxor.u32 %v3488, 2147516416
      %v3545 = vxor.u32 %v3489, 2147516416
      %v3546 = vxor.u32 %v3490, 2147516416
      %v3547 = vxor.u32 %v3491, 2147516416
      %v3548 = vxor.u32 %v3492, 2147516416
      %v3549 = vxor.u32 %v3493, 2147516416
      %v3550 = vxor.u32 %v3494, 2147516416
      %v3551 = vxor.u32 %v3495, 2147516416
      %v3552 = vxor.u32 %v3496, 2147516416
      %v3553 = vxor.u32 %v3497, 2147516416
      %v3554 = vxor.u32 %v3498, 2147516416
      %v3556 = vmul.bf16 %v3499, 1069105081
      %v3557 = vpow.bf16.pop %v3556
      %v3559 = vmul.bf16 %v3500, 1069105081
      %v3560 = vpow.bf16.pop %v3559
      %v3562 = vmul.bf16 %v3501, 1069105081
      %v3563 = vpow.bf16.pop %v3562
      %v3565 = vmul.bf16 %v3502, 1069105081
      %v3566 = vpow.bf16.pop %v3565
      %v3568 = vmul.bf16 %v3503, 1069105081
      %v3569 = vpow.bf16.pop %v3568
      %v3571 = vmul.bf16 %v3504, 1069105081
      %v3572 = vpow.bf16.pop %v3571
      %v3574 = vmul.bf16 %v3505, 1069105081
      %v3575 = vpow.bf16.pop %v3574
      %v3577 = vmul.bf16 %v3506, 1069105081
      %v3578 = vpow.bf16.pop %v3577
      %v3580 = vmul.bf16 %v3507, 1069105081
      %v3581 = vpow.bf16.pop %v3580
      %v3583 = vmul.bf16 %v3508, 1069105081
      %v3584 = vpow.bf16.pop %v3583
      %v3586 = vmul.bf16 %v3509, 1069105081
      %v3587 = vpow.bf16.pop %v3586
      %v3589 = vmul.bf16 %v3510, 1069105081
      %v3590 = vpow.bf16.pop %v3589
      %v3592 = vmul.bf16 %v3511, 1069105081
      %v3593 = vpow.bf16.pop %v3592
      %v3595 = vmul.bf16 %v3512, 1069105081
      %v3596 = vpow.bf16.pop %v3595
      %v3598 = vmul.bf16 %v3513, 1069105081
      %v3599 = vpow.bf16.pop %v3598
      %v3601 = vmul.bf16 %v3514, 1069105081
      %v3602 = vpow.bf16.pop %v3601
      %v3604 = vmul.bf16 %v3515, 1069105081
      %v3605 = vpow.bf16.pop %v3604
      %v3607 = vmul.bf16 %v3516, 1069105081
      %v3608 = vpow.bf16.pop %v3607
      %v3610 = vmul.bf16 %v3517, 1069105081
      %v3611 = vpow.bf16.pop %v3610
      %v3613 = vmul.bf16 %v3518, 1069105081
      %v3614 = vpow.bf16.pop %v3613
      %v3616 = vmul.bf16 %v3519, 1069105081
      %v3617 = vpow.bf16.pop %v3616
      %v3619 = vmul.bf16 %v3520, 1069105081
      %v3620 = vpow.bf16.pop %v3619
      %v3622 = vmul.bf16 %v3521, 1069105081
      %v3623 = vpow.bf16.pop %v3622
      %v3625 = vmul.bf16 %v3522, 1069105081
      %v3626 = vpow.bf16.pop %v3625
      %v3628 = vmul.bf16 %v3523, 1069105081
      %v3629 = vpow.bf16.pop %v3628
      %v3631 = vmul.bf16 %v3524, 1069105081
      %v3632 = vpow.bf16.pop %v3631
      %v3634 = vmul.bf16 %v3525, 1069105081
      %v3635 = vpow.bf16.pop %v3634
      %v3637 = vmul.bf16 %v3526, 1069105081
      %v3638 = vpow.bf16.pop %v3637
      %v3640 = vmul.bf16 %v3527, 1069105081
      %v3641 = vpow.bf16.pop %v3640
      %v3643 = vmul.bf16 %v3528, 1069105081
      %v3644 = vpow.bf16.pop %v3643
      %v3646 = vmul.bf16 %v3529, 1069105081
      %v3647 = vpow.bf16.pop %v3646
      %v3649 = vmul.bf16 %v3530, 1069105081
      %v3650 = vpow.bf16.pop %v3649
      %v3652 = vmul.bf16 %v3531, 1069105081
      %v3653 = vpow.bf16.pop %v3652
      %v3655 = vmul.bf16 %v3532, 1069105081
      %v3656 = vpow.bf16.pop %v3655
      %v3658 = vmul.bf16 %v3533, 1069105081
      %v3659 = vpow.bf16.pop %v3658
      %v3661 = vmul.bf16 %v3534, 1069105081
      %v3662 = vpow.bf16.pop %v3661
      %v3664 = vmul.bf16 %v3535, 1069105081
      %v3665 = vpow.bf16.pop %v3664
      %v3667 = vmul.bf16 %v3536, 1069105081
      %v3668 = vpow.bf16.pop %v3667
      %v3670 = vmul.bf16 %v3537, 1069105081
      %v3671 = vpow.bf16.pop %v3670
      %v3673 = vmul.bf16 %v3538, 1069105081
      %v3674 = vpow.bf16.pop %v3673
      %v3676 = vmul.bf16 %v3539, 1069105081
      %v3677 = vpow.bf16.pop %v3676
      %v3679 = vmul.bf16 %v3540, 1069105081
      %v3680 = vpow.bf16.pop %v3679
      %v3682 = vmul.bf16 %v3541, 1069105081
      %v3683 = vpow.bf16.pop %v3682
      %v3685 = vmul.bf16 %v3542, 1069105081
      %v3686 = vpow.bf16.pop %v3685
      %v3688 = vmul.bf16 %v3543, 1069105081
      %v3689 = vpow.bf16.pop %v3688
      %v3691 = vmul.bf16 %v3544, 1069105081
      %v3692 = vpow.bf16.pop %v3691
      %v3694 = vmul.bf16 %v3545, 1069105081
      %v3695 = vpow.bf16.pop %v3694
      %v3697 = vmul.bf16 %v3546, 1069105081
      %v3698 = vpow.bf16.pop %v3697
      %v3700 = vmul.bf16 %v3547, 1069105081
      %v3701 = vpow.bf16.pop %v3700
      %v3703 = vmul.bf16 %v3548, 1069105081
      %v3704 = vpow.bf16.pop %v3703
      %v3706 = vmul.bf16 %v3549, 1069105081
      %v3707 = vpow.bf16.pop %v3706
      %v3709 = vmul.bf16 %v3550, 1069105081
      %v3710 = vpow.bf16.pop %v3709
      %v3712 = vmul.bf16 %v3551, 1069105081
      %v3713 = vpow.bf16.pop %v3712
      %v3715 = vmul.bf16 %v3552, 1069105081
      %v3716 = vpow.bf16.pop %v3715
      %v3718 = vmul.bf16 %v3553, 1069105081
      %v3719 = vpow.bf16.pop %v3718
      %v3721 = vmul.bf16 %v3554, 1069105081
      %v3722 = vpow.bf16.pop %v3721
      %v3723 = vadd.bf16 %v3557, 1065369472
      %v3724 = vadd.bf16 %v3560, 1065369472
      %v3725 = vadd.bf16 %v3563, 1065369472
      %v3726 = vadd.bf16 %v3566, 1065369472
      %v3727 = vadd.bf16 %v3569, 1065369472
      %v3728 = vadd.bf16 %v3572, 1065369472
      %v3729 = vadd.bf16 %v3575, 1065369472
      %v3730 = vadd.bf16 %v3578, 1065369472
      %v3731 = vadd.bf16 %v3581, 1065369472
      %v3732 = vadd.bf16 %v3584, 1065369472
      %v3733 = vadd.bf16 %v3587, 1065369472
      %v3734 = vadd.bf16 %v3590, 1065369472
      %v3735 = vadd.bf16 %v3593, 1065369472
      %v3736 = vadd.bf16 %v3596, 1065369472
      %v3737 = vadd.bf16 %v3599, 1065369472
      %v3738 = vadd.bf16 %v3602, 1065369472
      %v3739 = vadd.bf16 %v3605, 1065369472
      %v3740 = vadd.bf16 %v3608, 1065369472
      %v3741 = vadd.bf16 %v3611, 1065369472
      %v3742 = vadd.bf16 %v3614, 1065369472
      %v3743 = vadd.bf16 %v3617, 1065369472
      %v3744 = vadd.bf16 %v3620, 1065369472
      %v3745 = vadd.bf16 %v3623, 1065369472
      %v3746 = vadd.bf16 %v3626, 1065369472
      %v3747 = vadd.bf16 %v3629, 1065369472
      %v3748 = vadd.bf16 %v3632, 1065369472
      %v3749 = vadd.bf16 %v3635, 1065369472
      %v3750 = vadd.bf16 %v3638, 1065369472
      %v3751 = vadd.bf16 %v3641, 1065369472
      %v3752 = vadd.bf16 %v3644, 1065369472
      %v3753 = vadd.bf16 %v3647, 1065369472
      %v3754 = vadd.bf16 %v3650, 1065369472
      %v3755 = vadd.bf16 %v3653, 1065369472
      %v3756 = vadd.bf16 %v3656, 1065369472
      %v3757 = vadd.bf16 %v3659, 1065369472
      %v3758 = vadd.bf16 %v3662, 1065369472
      %v3759 = vadd.bf16 %v3665, 1065369472
      %v3760 = vadd.bf16 %v3668, 1065369472
      %v3761 = vadd.bf16 %v3671, 1065369472
      %v3762 = vadd.bf16 %v3674, 1065369472
      %v3763 = vadd.bf16 %v3677, 1065369472
      %v3764 = vadd.bf16 %v3680, 1065369472
      %v3765 = vadd.bf16 %v3683, 1065369472
      %v3766 = vadd.bf16 %v3686, 1065369472
      %v3767 = vadd.bf16 %v3689, 1065369472
      %v3768 = vadd.bf16 %v3692, 1065369472
      %v3769 = vadd.bf16 %v3695, 1065369472
      %v3770 = vadd.bf16 %v3698, 1065369472
      %v3771 = vadd.bf16 %v3701, 1065369472
      %v3772 = vadd.bf16 %v3704, 1065369472
      %v3773 = vadd.bf16 %v3707, 1065369472
      %v3774 = vadd.bf16 %v3710, 1065369472
      %v3775 = vadd.bf16 %v3713, 1065369472
      %v3776 = vadd.bf16 %v3716, 1065369472
      %v3777 = vadd.bf16 %v3719, 1065369472
      %v3778 = vadd.bf16 %v3722, 1065369472
      %v3779 = vrcp.bf16.pop %v3723
      %v3780 = vmul.bf16 1065369472, %v3779
      %v3781 = vrcp.bf16.pop %v3724
      %v3782 = vmul.bf16 1065369472, %v3781
      %v3783 = vrcp.bf16.pop %v3725
      %v3784 = vmul.bf16 1065369472, %v3783
      %v3785 = vrcp.bf16.pop %v3726
      %v3786 = vmul.bf16 1065369472, %v3785
      %v3787 = vrcp.bf16.pop %v3727
      %v3788 = vmul.bf16 1065369472, %v3787
      %v3789 = vrcp.bf16.pop %v3728
      %v3790 = vmul.bf16 1065369472, %v3789
      %v3791 = vrcp.bf16.pop %v3729
      %v3792 = vmul.bf16 1065369472, %v3791
      %v3793 = vrcp.bf16.pop %v3730
      %v3794 = vmul.bf16 1065369472, %v3793
      %v3795 = vrcp.bf16.pop %v3731
      %v3796 = vmul.bf16 1065369472, %v3795
      %v3797 = vrcp.bf16.pop %v3732
      %v3798 = vmul.bf16 1065369472, %v3797
      %v3799 = vrcp.bf16.pop %v3733
      %v3800 = vmul.bf16 1065369472, %v3799
      %v3801 = vrcp.bf16.pop %v3734
      %v3802 = vmul.bf16 1065369472, %v3801
      %v3803 = vrcp.bf16.pop %v3735
      %v3804 = vmul.bf16 1065369472, %v3803
      %v3805 = vrcp.bf16.pop %v3736
      %v3806 = vmul.bf16 1065369472, %v3805
      %v3807 = vrcp.bf16.pop %v3737
      %v3808 = vmul.bf16 1065369472, %v3807
      %v3809 = vrcp.bf16.pop %v3738
      %v3810 = vmul.bf16 1065369472, %v3809
      %v3811 = vrcp.bf16.pop %v3739
      %v3812 = vmul.bf16 1065369472, %v3811
      %v3813 = vrcp.bf16.pop %v3740
      %v3814 = vmul.bf16 1065369472, %v3813
      %v3815 = vrcp.bf16.pop %v3741
      %v3816 = vmul.bf16 1065369472, %v3815
      %v3817 = vrcp.bf16.pop %v3742
      %v3818 = vmul.bf16 1065369472, %v3817
      %v3819 = vrcp.bf16.pop %v3743
      %v3820 = vmul.bf16 1065369472, %v3819
      %v3821 = vrcp.bf16.pop %v3744
      %v3822 = vmul.bf16 1065369472, %v3821
      %v3823 = vrcp.bf16.pop %v3745
      %v3824 = vmul.bf16 1065369472, %v3823
      %v3825 = vrcp.bf16.pop %v3746
      %v3826 = vmul.bf16 1065369472, %v3825
      %v3827 = vrcp.bf16.pop %v3747
      %v3828 = vmul.bf16 1065369472, %v3827
      %v3829 = vrcp.bf16.pop %v3748
      %v3830 = vmul.bf16 1065369472, %v3829
      %v3831 = vrcp.bf16.pop %v3749
      %v3832 = vmul.bf16 1065369472, %v3831
      %v3833 = vrcp.bf16.pop %v3750
      %v3834 = vmul.bf16 1065369472, %v3833
      %v3835 = vrcp.bf16.pop %v3751
      %v3836 = vmul.bf16 1065369472, %v3835
      %v3837 = vrcp.bf16.pop %v3752
      %v3838 = vmul.bf16 1065369472, %v3837
      %v3839 = vrcp.bf16.pop %v3753
      %v3840 = vmul.bf16 1065369472, %v3839
      %v3841 = vrcp.bf16.pop %v3754
      %v3842 = vmul.bf16 1065369472, %v3841
      %v3843 = vrcp.bf16.pop %v3755
      %v3844 = vmul.bf16 1065369472, %v3843
      %v3845 = vrcp.bf16.pop %v3756
      %v3846 = vmul.bf16 1065369472, %v3845
      %v3847 = vrcp.bf16.pop %v3757
      %v3848 = vmul.bf16 1065369472, %v3847
      %v3849 = vrcp.bf16.pop %v3758
      %v3850 = vmul.bf16 1065369472, %v3849
      %v3851 = vrcp.bf16.pop %v3759
      %v3852 = vmul.bf16 1065369472, %v3851
      %v3853 = vrcp.bf16.pop %v3760
      %v3854 = vmul.bf16 1065369472, %v3853
      %v3855 = vrcp.bf16.pop %v3761
      %v3856 = vmul.bf16 1065369472, %v3855
      %v3857 = vrcp.bf16.pop %v3762
      %v3858 = vmul.bf16 1065369472, %v3857
      %v3859 = vrcp.bf16.pop %v3763
      %v3860 = vmul.bf16 1065369472, %v3859
      %v3861 = vrcp.bf16.pop %v3764
      %v3862 = vmul.bf16 1065369472, %v3861
      %v3863 = vrcp.bf16.pop %v3765
      %v3864 = vmul.bf16 1065369472, %v3863
      %v3865 = vrcp.bf16.pop %v3766
      %v3866 = vmul.bf16 1065369472, %v3865
      %v3867 = vrcp.bf16.pop %v3767
      %v3868 = vmul.bf16 1065369472, %v3867
      %v3869 = vrcp.bf16.pop %v3768
      %v3870 = vmul.bf16 1065369472, %v3869
      %v3871 = vrcp.bf16.pop %v3769
      %v3872 = vmul.bf16 1065369472, %v3871
      %v3873 = vrcp.bf16.pop %v3770
      %v3874 = vmul.bf16 1065369472, %v3873
      %v3875 = vrcp.bf16.pop %v3771
      %v3876 = vmul.bf16 1065369472, %v3875
      %v3877 = vrcp.bf16.pop %v3772
      %v3878 = vmul.bf16 1065369472, %v3877
      %v3879 = vrcp.bf16.pop %v3773
      %v3880 = vmul.bf16 1065369472, %v3879
      %v3881 = vrcp.bf16.pop %v3774
      %v3882 = vmul.bf16 1065369472, %v3881
      %v3883 = vrcp.bf16.pop %v3775
      %v3884 = vmul.bf16 1065369472, %v3883
      %v3885 = vrcp.bf16.pop %v3776
      %v3886 = vmul.bf16 1065369472, %v3885
      %v3887 = vrcp.bf16.pop %v3777
      %v3888 = vmul.bf16 1065369472, %v3887
      %v3889 = vrcp.bf16.pop %v3778
      %v3890 = vmul.bf16 1065369472, %v3889
      %v3947 = vunpack.c.l.b16 %v3780
      %v3948 = vunpack.c.l.b16 %v3782
      %v3949 = vunpack.c.l.b16 %v3784
      %v3950 = vunpack.c.l.b16 %v3786
      %v3951 = vunpack.c.l.b16 %v3788
      %v3952 = vunpack.c.l.b16 %v3790
      %v3953 = vunpack.c.l.b16 %v3792
      %v3954 = vunpack.c.h.b16 %v3780
      %v3955 = vunpack.c.h.b16 %v3782
      %v3956 = vunpack.c.h.b16 %v3784
      %v3957 = vunpack.c.h.b16 %v3786
      %v3958 = vunpack.c.h.b16 %v3788
      %v3959 = vunpack.c.h.b16 %v3790
      %v3960 = vunpack.c.h.b16 %v3792
      %v3961 = vunpack.c.l.b16 %v3794
      %v3962 = vunpack.c.l.b16 %v3796
      %v3963 = vunpack.c.l.b16 %v3798
      %v3964 = vunpack.c.l.b16 %v3800
      %v3965 = vunpack.c.l.b16 %v3802
      %v3966 = vunpack.c.l.b16 %v3804
      %v3967 = vunpack.c.l.b16 %v3806
      %v3968 = vunpack.c.h.b16 %v3794
      %v3969 = vunpack.c.h.b16 %v3796
      %v3970 = vunpack.c.h.b16 %v3798
      %v3971 = vunpack.c.h.b16 %v3800
      %v3972 = vunpack.c.h.b16 %v3802
      %v3973 = vunpack.c.h.b16 %v3804
      %v3974 = vunpack.c.h.b16 %v3806
      %v3975 = vunpack.c.l.b16 %v3808
      %v3976 = vunpack.c.l.b16 %v3810
      %v3977 = vunpack.c.l.b16 %v3812
      %v3978 = vunpack.c.l.b16 %v3814
      %v3979 = vunpack.c.l.b16 %v3816
      %v3980 = vunpack.c.l.b16 %v3818
      %v3981 = vunpack.c.l.b16 %v3820
      %v3982 = vunpack.c.h.b16 %v3808
      %v3983 = vunpack.c.h.b16 %v3810
      %v3984 = vunpack.c.h.b16 %v3812
      %v3985 = vunpack.c.h.b16 %v3814
      %v3986 = vunpack.c.h.b16 %v3816
      %v3987 = vunpack.c.h.b16 %v3818
      %v3988 = vunpack.c.h.b16 %v3820
      %v3989 = vunpack.c.l.b16 %v3822
      %v3990 = vunpack.c.l.b16 %v3824
      %v3991 = vunpack.c.l.b16 %v3826
      %v3992 = vunpack.c.l.b16 %v3828
      %v3993 = vunpack.c.l.b16 %v3830
      %v3994 = vunpack.c.l.b16 %v3832
      %v3995 = vunpack.c.l.b16 %v3834
      %v3996 = vunpack.c.h.b16 %v3822
      %v3997 = vunpack.c.h.b16 %v3824
      %v3998 = vunpack.c.h.b16 %v3826
      %v3999 = vunpack.c.h.b16 %v3828
      %v4000 = vunpack.c.h.b16 %v3830
      %v4001 = vunpack.c.h.b16 %v3832
      %v4002 = vunpack.c.h.b16 %v3834
      %v4003 = vunpack.c.l.b16 %v3836
      %v4004 = vunpack.c.l.b16 %v3838
      %v4005 = vunpack.c.l.b16 %v3840
      %v4006 = vunpack.c.l.b16 %v3842
      %v4007 = vunpack.c.l.b16 %v3844
      %v4008 = vunpack.c.l.b16 %v3846
      %v4009 = vunpack.c.l.b16 %v3848
      %v4010 = vunpack.c.h.b16 %v3836
      %v4011 = vunpack.c.h.b16 %v3838
      %v4012 = vunpack.c.h.b16 %v3840
      %v4013 = vunpack.c.h.b16 %v3842
      %v4014 = vunpack.c.h.b16 %v3844
      %v4015 = vunpack.c.h.b16 %v3846
      %v4016 = vunpack.c.h.b16 %v3848
      %v4017 = vunpack.c.l.b16 %v3850
      %v4018 = vunpack.c.l.b16 %v3852
      %v4019 = vunpack.c.l.b16 %v3854
      %v4020 = vunpack.c.l.b16 %v3856
      %v4021 = vunpack.c.l.b16 %v3858
      %v4022 = vunpack.c.l.b16 %v3860
      %v4023 = vunpack.c.l.b16 %v3862
      %v4024 = vunpack.c.h.b16 %v3850
      %v4025 = vunpack.c.h.b16 %v3852
      %v4026 = vunpack.c.h.b16 %v3854
      %v4027 = vunpack.c.h.b16 %v3856
      %v4028 = vunpack.c.h.b16 %v3858
      %v4029 = vunpack.c.h.b16 %v3860
      %v4030 = vunpack.c.h.b16 %v3862
      %v4031 = vunpack.c.l.b16 %v3864
      %v4032 = vunpack.c.l.b16 %v3866
      %v4033 = vunpack.c.l.b16 %v3868
      %v4034 = vunpack.c.l.b16 %v3870
      %v4035 = vunpack.c.l.b16 %v3872
      %v4036 = vunpack.c.l.b16 %v3874
      %v4037 = vunpack.c.l.b16 %v3876
      %v4038 = vunpack.c.h.b16 %v3864
      %v4039 = vunpack.c.h.b16 %v3866
      %v4040 = vunpack.c.h.b16 %v3868
      %v4041 = vunpack.c.h.b16 %v3870
      %v4042 = vunpack.c.h.b16 %v3872
      %v4043 = vunpack.c.h.b16 %v3874
      %v4044 = vunpack.c.h.b16 %v3876
      %v4045 = vunpack.c.l.b16 %v3878
      %v4046 = vunpack.c.l.b16 %v3880
      %v4047 = vunpack.c.l.b16 %v3882
      %v4048 = vunpack.c.l.b16 %v3884
      %v4049 = vunpack.c.l.b16 %v3886
      %v4050 = vunpack.c.l.b16 %v3888
      %v4051 = vunpack.c.l.b16 %v3890
      %v4052 = vunpack.c.h.b16 %v3878
      %v4053 = vunpack.c.h.b16 %v3880
      %v4054 = vunpack.c.h.b16 %v3882
      %v4055 = vunpack.c.h.b16 %v3884
      %v4056 = vunpack.c.h.b16 %v3886
      %v4057 = vunpack.c.h.b16 %v3888
      %v4058 = vunpack.c.h.b16 %v3890
      %v4059 = vpack.c.b16 %v3948, %v3947
      %v4060 = vpack.c.b16 %v3950, %v3949
      %v4061 = vpack.c.b16 %v3952, %v3951
      %v4062 = vpack.c.b16 %v3953, %v3953
      %v4063 = vpack.c.b16 %v3955, %v3954
      %v4064 = vpack.c.b16 %v3957, %v3956
      %v4065 = vpack.c.b16 %v3959, %v3958
      %v4066 = vpack.c.b16 %v3960, %v3960
      %v4067 = vpack.c.b16 %v3962, %v3961
      %v4068 = vpack.c.b16 %v3964, %v3963
      %v4069 = vpack.c.b16 %v3966, %v3965
      %v4070 = vpack.c.b16 %v3967, %v3967
      %v4071 = vpack.c.b16 %v3969, %v3968
      %v4072 = vpack.c.b16 %v3971, %v3970
      %v4073 = vpack.c.b16 %v3973, %v3972
      %v4074 = vpack.c.b16 %v3974, %v3974
      %v4075 = vpack.c.b16 %v3976, %v3975
      %v4076 = vpack.c.b16 %v3978, %v3977
      %v4077 = vpack.c.b16 %v3980, %v3979
      %v4078 = vpack.c.b16 %v3981, %v3981
      %v4079 = vpack.c.b16 %v3983, %v3982
      %v4080 = vpack.c.b16 %v3985, %v3984
      %v4081 = vpack.c.b16 %v3987, %v3986
      %v4082 = vpack.c.b16 %v3988, %v3988
      %v4083 = vpack.c.b16 %v3990, %v3989
      %v4084 = vpack.c.b16 %v3992, %v3991
      %v4085 = vpack.c.b16 %v3994, %v3993
      %v4086 = vpack.c.b16 %v3995, %v3995
      %v4087 = vpack.c.b16 %v3997, %v3996
      %v4088 = vpack.c.b16 %v3999, %v3998
      %v4089 = vpack.c.b16 %v4001, %v4000
      %v4090 = vpack.c.b16 %v4002, %v4002
      %v4091 = vpack.c.b16 %v4004, %v4003
      %v4092 = vpack.c.b16 %v4006, %v4005
      %v4093 = vpack.c.b16 %v4008, %v4007
      %v4094 = vpack.c.b16 %v4009, %v4009
      %v4095 = vpack.c.b16 %v4011, %v4010
      %v4096 = vpack.c.b16 %v4013, %v4012
      %v4097 = vpack.c.b16 %v4015, %v4014
      %v4098 = vpack.c.b16 %v4016, %v4016
      %v4099 = vpack.c.b16 %v4018, %v4017
      %v4100 = vpack.c.b16 %v4020, %v4019
      %v4101 = vpack.c.b16 %v4022, %v4021
      %v4102 = vpack.c.b16 %v4023, %v4023
      %v4103 = vpack.c.b16 %v4025, %v4024
      %v4104 = vpack.c.b16 %v4027, %v4026
      %v4105 = vpack.c.b16 %v4029, %v4028
      %v4106 = vpack.c.b16 %v4030, %v4030
      %v4107 = vpack.c.b16 %v4032, %v4031
      %v4108 = vpack.c.b16 %v4034, %v4033
      %v4109 = vpack.c.b16 %v4036, %v4035
      %v4110 = vpack.c.b16 %v4037, %v4037
      %v4111 = vpack.c.b16 %v4039, %v4038
      %v4112 = vpack.c.b16 %v4041, %v4040
      %v4113 = vpack.c.b16 %v4043, %v4042
      %v4114 = vpack.c.b16 %v4044, %v4044
      %v4115 = vpack.c.b16 %v4046, %v4045
      %v4116 = vpack.c.b16 %v4048, %v4047
      %v4117 = vpack.c.b16 %v4050, %v4049
      %v4118 = vpack.c.b16 %v4051, %v4051
      %v4119 = vpack.c.b16 %v4053, %v4052
      %v4120 = vpack.c.b16 %v4055, %v4054
      %v4121 = vpack.c.b16 %v4057, %v4056
      %v4122 = vpack.c.b16 %v4058, %v4058
      %4187 = vst [vmem:[%s496] sm:$0xff] %v4059
      %4188 = vst [vmem:[%s496 + $0x8] sm:$0xff] %v4060
      %4189 = vst [vmem:[%s496 + $0x10] sm:$0xff] %v4061
      %vm4190 = vcmask 125952
      %4191 = vst.msk [vmem:[%s496 + $0x18] sm:$0xf] %vm4190, %v4062
      %4192 = vst [vmem:[%s496 + $0x1c] sm:$0xff] %v4063
      %4193 = vst [vmem:[%s496 + $0x24] sm:$0xff] %v4064
      %4194 = vst [vmem:[%s496 + $0x2c] sm:$0xff] %v4065
      %4195 = vst.msk [vmem:[%s496 + $0x34] sm:$0xf] %vm4190, %v4066
      %4196 = vst [vmem:[%s496 + $0x38] sm:$0xff] %v4067
      %4197 = vst [vmem:[%s496 + $0x40] sm:$0xff] %v4068
      %4198 = vst [vmem:[%s496 + $0x48] sm:$0xff] %v4069
      %4199 = vst.msk [vmem:[%s496 + $0x50] sm:$0xf] %vm4190, %v4070
      %4200 = vst [vmem:[%s496 + $0x54] sm:$0xff] %v4071
      %4201 = vst [vmem:[%s496 + $0x5c] sm:$0xff] %v4072
      %4202 = vst [vmem:[%s496 + $0x64] sm:$0xff] %v4073
      %4203 = vst.msk [vmem:[%s496 + $0x6c] sm:$0xf] %vm4190, %v4074
      %4204 = vst [vmem:[%s496 + $0x70] sm:$0xff] %v4075
      %4205 = vst [vmem:[%s496 + $0x78] sm:$0xff] %v4076
      %4206 = vst [vmem:[%s496 + $0x80] sm:$0xff] %v4077
      %4207 = vst.msk [vmem:[%s496 + $0x88] sm:$0xf] %vm4190, %v4078
      %4208 = vst [vmem:[%s496 + $0x8c] sm:$0xff] %v4079
      %4209 = vst [vmem:[%s496 + $0x94] sm:$0xff] %v4080
      %4210 = vst [vmem:[%s496 + $0x9c] sm:$0xff] %v4081
      %4211 = vst.msk [vmem:[%s496 + $0xa4] sm:$0xf] %vm4190, %v4082
      %4212 = vst [vmem:[%s496 + $0xa8] sm:$0xff] %v4083
      %4213 = vst [vmem:[%s496 + $0xb0] sm:$0xff] %v4084
      %4214 = vst [vmem:[%s496 + $0xb8] sm:$0xff] %v4085
      %4215 = vst.msk [vmem:[%s496 + $0xc0] sm:$0xf] %vm4190, %v4086
      %4216 = vst [vmem:[%s496 + $0xc4] sm:$0xff] %v4087
      %4217 = vst [vmem:[%s496 + $0xcc] sm:$0xff] %v4088
      %4218 = vst [vmem:[%s496 + $0xd4] sm:$0xff] %v4089
      %4219 = vst.msk [vmem:[%s496 + $0xdc] sm:$0xf] %vm4190, %v4090
      %4220 = vst [vmem:[%s496 + $0xe0] sm:$0xff] %v4091
      %4221 = vst [vmem:[%s496 + $0xe8] sm:$0xff] %v4092
      %4222 = vst [vmem:[%s496 + $0xf0] sm:$0xff] %v4093
      %4223 = vst.msk [vmem:[%s496 + $0xf8] sm:$0xf] %vm4190, %v4094
      %4224 = vst [vmem:[%s496 + $0xfc] sm:$0xff] %v4095
      %4225 = vst [vmem:[%s496 + $0x104] sm:$0xff] %v4096
      %4226 = vst [vmem:[%s496 + $0x10c] sm:$0xff] %v4097
      %4227 = vst.msk [vmem:[%s496 + $0x114] sm:$0xf] %vm4190, %v4098
      %4228 = vst [vmem:[%s496 + $0x118] sm:$0xff] %v4099
      %4229 = vst [vmem:[%s496 + $0x120] sm:$0xff] %v4100
      %4230 = vst [vmem:[%s496 + $0x128] sm:$0xff] %v4101
      %4231 = vst.msk [vmem:[%s496 + $0x130] sm:$0xf] %vm4190, %v4102
      %4232 = vst [vmem:[%s496 + $0x134] sm:$0xff] %v4103
      %4233 = vst [vmem:[%s496 + $0x13c] sm:$0xff] %v4104
      %4234 = vst [vmem:[%s496 + $0x144] sm:$0xff] %v4105
      %4235 = vst.msk [vmem:[%s496 + $0x14c] sm:$0xf] %vm4190, %v4106
      %4236 = vst [vmem:[%s496 + $0x150] sm:$0xff] %v4107
      %4237 = vst [vmem:[%s496 + $0x158] sm:$0xff] %v4108
      %4238 = vst [vmem:[%s496 + $0x160] sm:$0xff] %v4109
      %4239 = vst.msk [vmem:[%s496 + $0x168] sm:$0xf] %vm4190, %v4110
      %4240 = vst [vmem:[%s496 + $0x16c] sm:$0xff] %v4111
      %4241 = vst [vmem:[%s496 + $0x174] sm:$0xff] %v4112
      %4242 = vst [vmem:[%s496 + $0x17c] sm:$0xff] %v4113
      %4243 = vst.msk [vmem:[%s496 + $0x184] sm:$0xf] %vm4190, %v4114
      %4244 = vst [vmem:[%s496 + $0x188] sm:$0xff] %v4115
      %4245 = vst [vmem:[%s496 + $0x190] sm:$0xff] %v4116
      %4246 = vst [vmem:[%s496 + $0x198] sm:$0xff] %v4117
      %4247 = vst.msk [vmem:[%s496 + $0x1a0] sm:$0xf] %vm4190, %v4118
      %4248 = vst [vmem:[%s496 + $0x1a4] sm:$0xff] %v4119
      %4249 = vst [vmem:[%s496 + $0x1ac] sm:$0xff] %v4120
      %4250 = vst [vmem:[%s496 + $0x1b4] sm:$0xff] %v4121
      %4251 = vst.msk [vmem:[%s496 + $0x1bc] sm:$0xf] %vm4190, %v4122
      %s4252 = smul.u32 16, %s25
      %p4253 = scmp.lt.s32.totalorder %s4252, 31
      %s4254 = scalar_select %p4253, %s4252, 31
      %s4255 = smul.addr %s4254, 7
      %s4256 = smul.addr %s4255, 4
      %s4257 = scalar_lea.vmem %s14, %s4256
      // Predicated region
      $region77: #{tpu_custom_call.1} parent=75 // pred_check
        %p4258 = pneg %p347
      $region78: #{tpu_custom_call.1} parent=75 // pred_check_branch
        %4260 = sbr.rel (%p4258) target = $region80
      $region79: #{tpu_custom_call.1} parent=75 // pred_region
        %s4261 = smul.u32 16, %s25
      $region80: #{tpu_custom_call.1} parent=75 // pred_fallthru
        _
    $region76: #{tpu_custom_call.1} parent=5 // pred_fallthru
      _
    %p4262 = scmp.le.s32.totalorder 2, %s20
    // Predicated region
    $region81: #{tpu_custom_call.1} parent=5 // pred_check
      %p4263 = pneg %p4262
    $region82: #{tpu_custom_call.1} parent=5 // pred_check_branch
      %4265 = sbr.rel (%p4263) target = $region84
    $region83: #{tpu_custom_call.1} parent=5 // pred_region
      %s4266 = ssub.s32 %s20, 2
      // Predicated region
      $region85: #{tpu_custom_call.1} parent=83 // pred_check
        %p4267 = pneg %p353
      $region86: #{tpu_custom_call.1} parent=83 // pred_check_branch
        %4269 = sbr.rel (%p4267) target = $region88
      $region87: #{tpu_custom_call.1} parent=83 // pred_region
        %s4270 = smul.u32 16, %s26
        %p4271 = scmp.lt.s32.totalorder %s4270, 31
        %s4272 = scalar_select %p4271, %s4270, 31
        %s4273 = smul.addr %s4272, 7
        %s4274 = smul.addr %s4273, 4
        %s4275 = scalar_lea.vmem %s14, %s4274
      $region88: #{tpu_custom_call.1} parent=83 // pred_fallthru
        _
    $region84: #{tpu_custom_call.1} parent=5 // pred_fallthru
      _
  $region6: #{tpu_custom_call.1} parent=0 // loop_footer
    %s24 = sadd.s32 1, %s20
  $region7: #{tpu_custom_call.1} parent=0 // loop_footer_branch
    %19 = sbr.rel target = $region3
  $region8: #{tpu_custom_call.1} parent=0 // loop_exit
    _

</llo_original>
